<compile_context>
chip_gen: v7x
topology: tpu7x:2x2x1
jax: 0.10.0
libtpu: 0.0.40
codegen_flags: <defaults>
</compile_context>

<pallas_src>
import functools

import numpy as np
import jax
import jax.numpy as jnp
from jax.experimental import pallas as pl
from jax.experimental.pallas import tpu as pltpu

WINDOW = 11
PAD = WINDOW // 2
SIGMA = 1.5
MAX_VAL = 1.0
C1 = (0.01 * MAX_VAL) ** 2
C2 = (0.03 * MAX_VAL) ** 2
_LANE = 128


def _gauss1d(ws=WINDOW, sigma=SIGMA):
    # kornia.filters.get_gaussian_kernel1d: normalized gaussian, centered at ws//2
    x = np.arange(ws, dtype=np.float64) - ws // 2
    g = np.exp(-(x * x) / (2.0 * sigma * sigma))
    return g / g.sum()


_G = _gauss1d()


def _gauss_band(n):
    """(n, n) banded matrix encoding a zero-padded 1-D Gaussian convolution."""
    m = np.zeros((n, n), dtype=np.float64)
    for i in range(n):
        for d in range(-PAD, PAD + 1):
            j = i + d
            if 0 <= j < n:
                m[i, j] = _G[d + PAD]
    return m.astype(np.float32)


def _gauss_band_block(wt, d):
    """(wt, wt) Toeplitz block of the band matrix linking input column tile
    j+d to output column tile j (identical for every j, so only the 3 blocks
    d in {-1, 0, +1} are ever needed)."""
    m = np.zeros((wt, wt), dtype=np.float64)
    for r in range(wt):
        for c in range(wt):
            k = c - r - wt * d + PAD
            if 0 <= k < WINDOW:
                m[r, c] = _G[k]
    return m.astype(np.float32)


def _device_kind():
    try:
        return jax.devices()[0].device_kind.lower()
    except Exception:
        return ""


def _make_ssim_kernel(R, W, Hk, TB, per_channel_v, fuse_vertical, w_tiled, WT):
    nwt = W // WT if w_tiled else 1

    def split(v):
        # f32 -> (hi, lo) bf16 pair; hi + lo reproduces v to ~2^-16 relative.
        hi = v.astype(jnp.bfloat16)
        lo = (v - hi.astype(jnp.float32)).astype(jnp.bfloat16)
        return hi, lo

    def dot3(a, b):
        # 3-pass bf16 matmul of two f32 values given as (hi, lo) bf16 pairs:
        # a@b ~= ah@bh + ah@bl + al@bh  (Precision.HIGH / bf16x3 scheme), each
        # pass a native single-pass bf16 MXU dot with f32 accumulation.
        ah, al = a
        bh, bl = b
        d = functools.partial(jnp.dot, preferred_element_type=jnp.float32)
        return d(ah, bh) + d(ah, bl) + d(al, bh)

    def kernel(x_ref, y_ref, gv_ref, gw_ref, out_ref):
        x = x_ref[...].astype(jnp.float32)
        y = y_ref[...].astype(jnp.float32)

        # Fused horizontal pass: the five images that need blurring are stacked
        # along sublanes, so the column-filter weights are pushed to the MXU
        # once per pass while all 5R rows stream through.
        s = split(jnp.concatenate([x, y, x * x, y * y, x * y], axis=0))  # (5R, W)

        if w_tiled:
            # Block-banded horizontal filter: only the diagonal and the two
            # adjacent column tiles contribute (band half-width 5 << WT).
            a_prev = split(gw_ref[0 * WT:1 * WT, :])   # input tile j-1 -> out tile j
            a_diag = split(gw_ref[1 * WT:2 * WT, :])
            a_next = split(gw_ref[2 * WT:3 * WT, :])   # input tile j+1 -> out tile j

            def s_tile(j):
                return (s[0][:, j * WT:(j + 1) * WT],
                        s[1][:, j * WT:(j + 1) * WT])

            cols = []
            for j in range(nwt):
                acc = dot3(s_tile(j), a_diag)
                if j > 0:
                    acc = acc + dot3(s_tile(j - 1), a_prev)
                if j < nwt - 1:
                    acc = acc + dot3(s_tile(j + 1), a_next)
                cols.append(acc)
            t = jnp.concatenate(cols, axis=1)                          # (5R, W)
        else:
            t = dot3(s, split(gw_ref[...]))                            # (5R, W)

        # Vertical pass.
        gv = split(gv_ref[...])
        t_parts = [t[i * R:(i + 1) * R, :] for i in range(5)]

        def vconv(m):
            if per_channel_v:
                # Per-channel (Hk, Hk) filter avoids the TB-fold MAC
                # redundancy of a block-diagonal (R, R) filter.
                return jnp.concatenate(
                    [dot3(gv, split(m[c * Hk:(c + 1) * Hk, :])) for c in range(TB)],
                    axis=0)
            return dot3(gv, split(m))

        if fuse_vertical:
            # Lane-aligned fusion (W % 128 == 0): the row filter streams once
            # over all five blurred images side by side.
            u = vconv(jnp.concatenate(t_parts, axis=1))                # (R, 5W)
            outs = [u[:, i * W:(i + 1) * W] for i in range(5)]
        else:
            outs = [vconv(m) for m in t_parts]
        mu1, mu2, e_xx, e_yy, e_xy = outs

        mu1_sq = mu1 * mu1
        mu2_sq = mu2 * mu2
        mu1_mu2 = mu1 * mu2
        sigma1_sq = e_xx - mu1_sq
        sigma2_sq = e_yy - mu2_sq
        sigma12 = e_xy - mu1_mu2

        num = (2.0 * mu1_mu2 + C1) * (2.0 * sigma12 + C2)
        den = (mu1_sq + mu2_sq + C1) * (sigma1_sq + sigma2_sq + C2)
        ssim_map = num / den

        # kornia: torch.clamp(1 - ssim_map, 0, 1) / 2, mean taken in wrapper.
        loss = jnp.clip(1.0 - ssim_map, 0.0, 1.0) * 0.5

        # Per-block scalar partial sum -> no carried accumulator, so the grid
        # axis stays race-free under "parallel".
        out_ref[0, 0] = jnp.sum(loss)

    return kernel


def _ssim_loss_impl(x, y):
    """x, y: (N, C, H, W) arrays in [0, 1]. Returns scalar mean SSIM loss."""
    N, C, H, W = x.shape
    B = N * C

    kind = _device_kind()
    is_v5e = ("v5 lite" in kind) or ("v5e" in kind)
    is_v7 = "v7" in kind

    # Pad H up to a multiple of 8 (sublane tile) if needed; zeroed filter rows
    # make padded rows contribute exactly 0 loss.
    Hk = -(-H // 8) * 8

    # ---- channels-per-block heuristic (generation aware) --------------------
    target_rows = 128 if is_v5e else 256            # fill MXU M/K per chip gen
    f32_tile_budget = (1 << 20) if is_v7 else (2 << 20)   # keep (R, W) f32 tile small
    rows_budget = max(8, f32_tile_budget // (W * 4))
    tb_cap = max(1, min(B, target_rows // Hk, rows_budget // Hk))

    divisors = [d for d in range(1, tb_cap + 1) if B % d == 0]
    best = max(divisors)
    if is_v7:
        even = [d for d in divisors if (B // d) % 2 == 0]
        if even and max(even) * 2 >= best:
            best = max(even)                        # balance the 2 TCs on v7x
    if best * 2 >= tb_cap:                          # good fill without padding B
        TB, B_pad = best, B
    else:                                           # rare fallback: pad channels
        TB = tb_cap
        B_pad = -(-B // TB) * TB
    n_blocks = B_pad // TB
    R = TB * Hk

    per_channel_v = (Hk >= 64) and (TB > 1)

    # ---- horizontal-filter tiling for large, lane-aligned W -----------------
    w_tiled = False
    WT = W
    if W % _LANE == 0 and W // _LANE >= 4:
        WT = 256 if ((not is_v5e) and W % 256 == 0 and W >= 3 * 256) else _LANE
        w_tiled = True
    fuse_vertical = (W % _LANE == 0)

    # ---- inputs: stacked rows, pad only when unavoidable ---------------------
    xb = x.reshape(B, H, W)
    yb = y.reshape(B, H, W)
    if B_pad != B or Hk != H:
        padc = ((0, B_pad - B), (0, Hk - H), (0, 0))
        xb = jnp.pad(xb, padc)
        yb = jnp.pad(yb, padc)
    xf = xb.reshape(B_pad * Hk, W)   # free metadata reshape (row-major)
    yf = yb.reshape(B_pad * Hk, W)

    # ---- filter operands (numpy at trace time; device-cached under jit) -----
    gh = _gauss_band(Hk)
    if Hk != H:
        gh[H:, :] = 0.0              # padded output rows -> exactly 0 loss
    if per_channel_v or TB == 1:
        gv = gh
    else:
        gv = np.kron(np.eye(TB, dtype=np.float32), gh)
    gv = jnp.asarray(gv)

    if w_tiled:
        gw = np.concatenate([_gauss_band_block(WT, -1),
                             _gauss_band_block(WT, 0),
                             _gauss_band_block(WT, +1)], axis=0)
    else:
        gw = _gauss_band(W)
    gw = jnp.asarray(gw)

    kernel = _make_ssim_kernel(R, W, Hk, TB, per_channel_v, fuse_vertical,
                               w_tiled, WT)

    # ---- VMEM budget & cost hints --------------------------------------------
    in_bytes = 2 * 2 * R * W * x.dtype.itemsize            # double-buffered x, y
    const_bytes = 2 * 4 * (gv.size + gw.size)               # filter operands
    tmp_bytes = 160 * R * W                                  # stacked temps (f32+bf16)
    est = in_bytes + const_bytes + tmp_bytes
    cap = (56 << 20) if is_v7 else (96 << 20)
    vmem_limit = int(min(cap, max(2 * est, 32 << 20)))

    h_macs = 5 * n_blocks * R * W * ((3 * WT) if w_tiled else W)
    v_macs = n_blocks * 5 * W * ((TB * Hk * Hk) if per_channel_v else R * R)
    cost = pl.CostEstimate(
        flops=int(2 * 3 * (h_macs + v_macs) + 25 * n_blocks * R * W),
        transcendentals=0,
        bytes_accessed=int(xf.size * xf.dtype.itemsize +
                           yf.size * yf.dtype.itemsize +
                           4 * (gv.size + gw.size) + 4 * n_blocks))

    partials = pl.pallas_call(
        kernel,
        out_shape=jax.ShapeDtypeStruct((n_blocks, 1), jnp.float32),
        grid=(n_blocks,),
        in_specs=[
            pl.BlockSpec((R, W), lambda g: (g, 0)),
            pl.BlockSpec((R, W), lambda g: (g, 0)),
            pl.BlockSpec(gv.shape, lambda g: (0, 0)),   # constant -> fetched once
            pl.BlockSpec(gw.shape, lambda g: (0, 0)),   # constant -> fetched once
        ],
        out_specs=pl.BlockSpec((1, 1), lambda g: (g, 0),
                               memory_space=pltpu.SMEM),
        compiler_params=pltpu.CompilerParams(
            dimension_semantics=("parallel",),
            vmem_limit_bytes=vmem_limit),
        cost_estimate=cost,
    )(xf, yf, gv, gw)

    return jnp.sum(partials) / jnp.float32(N * C * H * W)


ssim_loss = jax.jit(_ssim_loss_impl)


def _ssim_loss_ref(x, y):
    """Pure-JAX f32 reference with the original tap-by-tap math."""
    N, C, H, W = x.shape
    g = jnp.asarray(_G, dtype=jnp.float32)
    pad_cfg = ((0, 0), (0, 0), (PAD, PAD), (PAD, PAD))
    xp = jnp.pad(x.astype(jnp.float32), pad_cfg)
    yp = jnp.pad(y.astype(jnp.float32), pad_cfg)

    def sep_conv(img):
        tmp = sum(g[j] * img[..., :, j:j + W] for j in range(WINDOW))
        out = sum(g[i] * tmp[..., i:i + H, :] for i in range(WINDOW))
        return out

    mu1, mu2 = sep_conv(xp), sep_conv(yp)
    s11 = sep_conv(xp * xp) - mu1 * mu1
    s22 = sep_conv(yp * yp) - mu2 * mu2
    s12 = sep_conv(xp * yp) - mu1 * mu2
    ssim_map = ((2 * mu1 * mu2 + C1) * (2 * s12 + C2)) / \
               ((mu1 * mu1 + mu2 * mu2 + C1) * (s11 + s22 + C2))
    return jnp.mean(jnp.clip(1.0 - ssim_map, 0.0, 1.0) * 0.5)


if __name__ == "__main__":
    key = jax.random.PRNGKey(0)
    k1, k2 = jax.random.split(key)
    N, C, H, W = 2, 4, 16, 16
    x = jax.random.uniform(k1, (N, C, H, W), dtype=jnp.float32)
    y = jax.random.uniform(k2, (N, C, H, W), dtype=jnp.float32)

    out = ssim_loss(x, y)
    out = jax.block_until_ready(out)

    ref = _ssim_loss_ref(x, y)
    # Tolerance sized for the 3-pass bf16 (Precision.HIGH) accumulation; a
    # single-pass bf16 (DEFAULT) path would miss this by >10x.
    np.testing.assert_allclose(np.asarray(out), np.asarray(ref),
                               rtol=5e-4, atol=5e-5)

    print("KERNEL_OK")
</pallas_src>

<mosaic_0001>
module attributes {stable_mosaic.version = 11 : i64} {
  func.func @kernel(%arg0: i32, %arg1: memref<128x16xf32, #tpu.memory_space<vmem>>, %arg2: memref<128x16xf32, #tpu.memory_space<vmem>>, %arg3: memref<128x128xf32, #tpu.memory_space<vmem>>, %arg4: memref<16x16xf32, #tpu.memory_space<vmem>>, %arg5: memref<1x1xf32, #tpu.memory_space<smem>>) attributes {dimension_semantics = [#tpu.dimension_semantics<parallel>], iteration_bounds = array<i64: 1>, scalar_prefetch = 0 : i64, scratch_operands = 0 : i64, tpu.core_type = #tpu.core_type<tc>, window_params = [{transform_indices = @transform_0, window_bounds = array<i64: 128, 16>}, {transform_indices = @transform_1, window_bounds = array<i64: 128, 16>}, {pipeline_mode = #tpu.pipeline_mode<synchronous>, transform_indices = @transform_2, window_bounds = array<i64: 128, 128>}, {pipeline_mode = #tpu.pipeline_mode<synchronous>, transform_indices = @transform_3, window_bounds = array<i64: 16, 16>}, {transform_indices = @transform_4, window_bounds = array<i64: 1, 1>}]} {
    %c0 = arith.constant 0 : index
    %c0_0 = arith.constant 0 : index
    %0 = vector.load %arg1[%c0, %c0_0] : memref<128x16xf32, #tpu.memory_space<vmem>>, vector<128x16xf32>
    %c0_1 = arith.constant 0 : index
    %c0_2 = arith.constant 0 : index
    %1 = vector.load %arg2[%c0_1, %c0_2] : memref<128x16xf32, #tpu.memory_space<vmem>>, vector<128x16xf32>
    %2 = arith.mulf %0, %0 : vector<128x16xf32>
    %3 = arith.mulf %1, %1 : vector<128x16xf32>
    %4 = arith.mulf %0, %1 : vector<128x16xf32>
    %5 = tpu.concatenate %0, %1, %2, %3, %4 in 0 : vector<128x16xf32>, vector<128x16xf32>, vector<128x16xf32>, vector<128x16xf32>, vector<128x16xf32> -> vector<640x16xf32>
    %6 = arith.truncf %5 : vector<640x16xf32> to vector<640x16xbf16>
    %7 = arith.extf %6 : vector<640x16xbf16> to vector<640x16xf32>
    %8 = arith.subf %5, %7 : vector<640x16xf32>
    %9 = arith.truncf %8 : vector<640x16xf32> to vector<640x16xbf16>
    %c0_3 = arith.constant 0 : index
    %c0_4 = arith.constant 0 : index
    %10 = vector.load %arg4[%c0_3, %c0_4] : memref<16x16xf32, #tpu.memory_space<vmem>>, vector<16x16xf32>
    %11 = arith.truncf %10 : vector<16x16xf32> to vector<16x16xbf16>
    %12 = arith.extf %11 : vector<16x16xbf16> to vector<16x16xf32>
    %13 = arith.subf %10, %12 : vector<16x16xf32>
    %14 = arith.truncf %13 : vector<16x16xf32> to vector<16x16xbf16>
    %cst = arith.constant dense<0.000000e+00> : vector<640x16xf32>
    %15 = tpu.matmul %6, %11, %cst {dimension_numbers = #tpu.dot_dimension_numbers<[1], [0], [0], [1], [0, 0, 1, 1], [], []>} : vector<640x16xbf16>, vector<16x16xbf16>, vector<640x16xf32> -> vector<640x16xf32>
    %cst_5 = arith.constant dense<0.000000e+00> : vector<640x16xf32>
    %16 = tpu.matmul %6, %14, %cst_5 {dimension_numbers = #tpu.dot_dimension_numbers<[1], [0], [0], [1], [0, 0, 1, 1], [], []>} : vector<640x16xbf16>, vector<16x16xbf16>, vector<640x16xf32> -> vector<640x16xf32>
    %17 = arith.addf %15, %16 : vector<640x16xf32>
    %cst_6 = arith.constant dense<0.000000e+00> : vector<640x16xf32>
    %18 = tpu.matmul %9, %11, %cst_6 {dimension_numbers = #tpu.dot_dimension_numbers<[1], [0], [0], [1], [0, 0, 1, 1], [], []>} : vector<640x16xbf16>, vector<16x16xbf16>, vector<640x16xf32> -> vector<640x16xf32>
    %19 = arith.addf %17, %18 : vector<640x16xf32>
    %c0_7 = arith.constant 0 : index
    %c0_8 = arith.constant 0 : index
    %20 = vector.load %arg3[%c0_7, %c0_8] : memref<128x128xf32, #tpu.memory_space<vmem>>, vector<128x128xf32>
    %21 = arith.truncf %20 : vector<128x128xf32> to vector<128x128xbf16>
    %22 = arith.extf %21 : vector<128x128xbf16> to vector<128x128xf32>
    %23 = arith.subf %20, %22 : vector<128x128xf32>
    %24 = arith.truncf %23 : vector<128x128xf32> to vector<128x128xbf16>
    %25 = vector.extract_strided_slice %19 {offsets = [0, 0], sizes = [128, 16], strides = [1, 1]} : vector<640x16xf32> to vector<128x16xf32>
    %26 = vector.extract_strided_slice %19 {offsets = [128, 0], sizes = [128, 16], strides = [1, 1]} : vector<640x16xf32> to vector<128x16xf32>
    %27 = vector.extract_strided_slice %19 {offsets = [256, 0], sizes = [128, 16], strides = [1, 1]} : vector<640x16xf32> to vector<128x16xf32>
    %28 = vector.extract_strided_slice %19 {offsets = [384, 0], sizes = [128, 16], strides = [1, 1]} : vector<640x16xf32> to vector<128x16xf32>
    %29 = vector.extract_strided_slice %19 {offsets = [512, 0], sizes = [128, 16], strides = [1, 1]} : vector<640x16xf32> to vector<128x16xf32>
    %30 = arith.truncf %25 : vector<128x16xf32> to vector<128x16xbf16>
    %31 = arith.extf %30 : vector<128x16xbf16> to vector<128x16xf32>
    %32 = arith.subf %25, %31 : vector<128x16xf32>
    %33 = arith.truncf %32 : vector<128x16xf32> to vector<128x16xbf16>
    %cst_9 = arith.constant dense<0.000000e+00> : vector<128x16xf32>
    %34 = tpu.matmul %21, %30, %cst_9 {dimension_numbers = #tpu.dot_dimension_numbers<[1], [0], [0], [1], [0, 0, 1, 1], [], []>} : vector<128x128xbf16>, vector<128x16xbf16>, vector<128x16xf32> -> vector<128x16xf32>
    %cst_10 = arith.constant dense<0.000000e+00> : vector<128x16xf32>
    %35 = tpu.matmul %21, %33, %cst_10 {dimension_numbers = #tpu.dot_dimension_numbers<[1], [0], [0], [1], [0, 0, 1, 1], [], []>} : vector<128x128xbf16>, vector<128x16xbf16>, vector<128x16xf32> -> vector<128x16xf32>
    %36 = arith.addf %34, %35 : vector<128x16xf32>
    %cst_11 = arith.constant dense<0.000000e+00> : vector<128x16xf32>
    %37 = tpu.matmul %24, %30, %cst_11 {dimension_numbers = #tpu.dot_dimension_numbers<[1], [0], [0], [1], [0, 0, 1, 1], [], []>} : vector<128x128xbf16>, vector<128x16xbf16>, vector<128x16xf32> -> vector<128x16xf32>
    %38 = arith.addf %36, %37 : vector<128x16xf32>
    %39 = arith.truncf %26 : vector<128x16xf32> to vector<128x16xbf16>
    %40 = arith.extf %39 : vector<128x16xbf16> to vector<128x16xf32>
    %41 = arith.subf %26, %40 : vector<128x16xf32>
    %42 = arith.truncf %41 : vector<128x16xf32> to vector<128x16xbf16>
    %cst_12 = arith.constant dense<0.000000e+00> : vector<128x16xf32>
    %43 = tpu.matmul %21, %39, %cst_12 {dimension_numbers = #tpu.dot_dimension_numbers<[1], [0], [0], [1], [0, 0, 1, 1], [], []>} : vector<128x128xbf16>, vector<128x16xbf16>, vector<128x16xf32> -> vector<128x16xf32>
    %cst_13 = arith.constant dense<0.000000e+00> : vector<128x16xf32>
    %44 = tpu.matmul %21, %42, %cst_13 {dimension_numbers = #tpu.dot_dimension_numbers<[1], [0], [0], [1], [0, 0, 1, 1], [], []>} : vector<128x128xbf16>, vector<128x16xbf16>, vector<128x16xf32> -> vector<128x16xf32>
    %45 = arith.addf %43, %44 : vector<128x16xf32>
    %cst_14 = arith.constant dense<0.000000e+00> : vector<128x16xf32>
    %46 = tpu.matmul %24, %39, %cst_14 {dimension_numbers = #tpu.dot_dimension_numbers<[1], [0], [0], [1], [0, 0, 1, 1], [], []>} : vector<128x128xbf16>, vector<128x16xbf16>, vector<128x16xf32> -> vector<128x16xf32>
    %47 = arith.addf %45, %46 : vector<128x16xf32>
    %48 = arith.truncf %27 : vector<128x16xf32> to vector<128x16xbf16>
    %49 = arith.extf %48 : vector<128x16xbf16> to vector<128x16xf32>
    %50 = arith.subf %27, %49 : vector<128x16xf32>
    %51 = arith.truncf %50 : vector<128x16xf32> to vector<128x16xbf16>
    %cst_15 = arith.constant dense<0.000000e+00> : vector<128x16xf32>
    %52 = tpu.matmul %21, %48, %cst_15 {dimension_numbers = #tpu.dot_dimension_numbers<[1], [0], [0], [1], [0, 0, 1, 1], [], []>} : vector<128x128xbf16>, vector<128x16xbf16>, vector<128x16xf32> -> vector<128x16xf32>
    %cst_16 = arith.constant dense<0.000000e+00> : vector<128x16xf32>
    %53 = tpu.matmul %21, %51, %cst_16 {dimension_numbers = #tpu.dot_dimension_numbers<[1], [0], [0], [1], [0, 0, 1, 1], [], []>} : vector<128x128xbf16>, vector<128x16xbf16>, vector<128x16xf32> -> vector<128x16xf32>
    %54 = arith.addf %52, %53 : vector<128x16xf32>
    %cst_17 = arith.constant dense<0.000000e+00> : vector<128x16xf32>
    %55 = tpu.matmul %24, %48, %cst_17 {dimension_numbers = #tpu.dot_dimension_numbers<[1], [0], [0], [1], [0, 0, 1, 1], [], []>} : vector<128x128xbf16>, vector<128x16xbf16>, vector<128x16xf32> -> vector<128x16xf32>
    %56 = arith.addf %54, %55 : vector<128x16xf32>
    %57 = arith.truncf %28 : vector<128x16xf32> to vector<128x16xbf16>
    %58 = arith.extf %57 : vector<128x16xbf16> to vector<128x16xf32>
    %59 = arith.subf %28, %58 : vector<128x16xf32>
    %60 = arith.truncf %59 : vector<128x16xf32> to vector<128x16xbf16>
    %cst_18 = arith.constant dense<0.000000e+00> : vector<128x16xf32>
    %61 = tpu.matmul %21, %57, %cst_18 {dimension_numbers = #tpu.dot_dimension_numbers<[1], [0], [0], [1], [0, 0, 1, 1], [], []>} : vector<128x128xbf16>, vector<128x16xbf16>, vector<128x16xf32> -> vector<128x16xf32>
    %cst_19 = arith.constant dense<0.000000e+00> : vector<128x16xf32>
    %62 = tpu.matmul %21, %60, %cst_19 {dimension_numbers = #tpu.dot_dimension_numbers<[1], [0], [0], [1], [0, 0, 1, 1], [], []>} : vector<128x128xbf16>, vector<128x16xbf16>, vector<128x16xf32> -> vector<128x16xf32>
    %63 = arith.addf %61, %62 : vector<128x16xf32>
    %cst_20 = arith.constant dense<0.000000e+00> : vector<128x16xf32>
    %64 = tpu.matmul %24, %57, %cst_20 {dimension_numbers = #tpu.dot_dimension_numbers<[1], [0], [0], [1], [0, 0, 1, 1], [], []>} : vector<128x128xbf16>, vector<128x16xbf16>, vector<128x16xf32> -> vector<128x16xf32>
    %65 = arith.addf %63, %64 : vector<128x16xf32>
    %66 = arith.truncf %29 : vector<128x16xf32> to vector<128x16xbf16>
    %67 = arith.extf %66 : vector<128x16xbf16> to vector<128x16xf32>
    %68 = arith.subf %29, %67 : vector<128x16xf32>
    %69 = arith.truncf %68 : vector<128x16xf32> to vector<128x16xbf16>
    %cst_21 = arith.constant dense<0.000000e+00> : vector<128x16xf32>
    %70 = tpu.matmul %21, %66, %cst_21 {dimension_numbers = #tpu.dot_dimension_numbers<[1], [0], [0], [1], [0, 0, 1, 1], [], []>} : vector<128x128xbf16>, vector<128x16xbf16>, vector<128x16xf32> -> vector<128x16xf32>
    %cst_22 = arith.constant dense<0.000000e+00> : vector<128x16xf32>
    %71 = tpu.matmul %21, %69, %cst_22 {dimension_numbers = #tpu.dot_dimension_numbers<[1], [0], [0], [1], [0, 0, 1, 1], [], []>} : vector<128x128xbf16>, vector<128x16xbf16>, vector<128x16xf32> -> vector<128x16xf32>
    %72 = arith.addf %70, %71 : vector<128x16xf32>
    %cst_23 = arith.constant dense<0.000000e+00> : vector<128x16xf32>
    %73 = tpu.matmul %24, %66, %cst_23 {dimension_numbers = #tpu.dot_dimension_numbers<[1], [0], [0], [1], [0, 0, 1, 1], [], []>} : vector<128x128xbf16>, vector<128x16xbf16>, vector<128x16xf32> -> vector<128x16xf32>
    %74 = arith.addf %72, %73 : vector<128x16xf32>
    %75 = arith.mulf %38, %38 : vector<128x16xf32>
    %76 = arith.mulf %47, %47 : vector<128x16xf32>
    %77 = arith.mulf %38, %47 : vector<128x16xf32>
    %78 = arith.subf %56, %75 : vector<128x16xf32>
    %79 = arith.subf %65, %76 : vector<128x16xf32>
    %80 = arith.subf %74, %77 : vector<128x16xf32>
    %cst_24 = arith.constant 2.000000e+00 : f32
    %81 = vector.broadcast %cst_24 : f32 to vector<128x16xf32>
    %82 = arith.mulf %81, %77 : vector<128x16xf32>
    %cst_25 = arith.constant 9.99999974E-5 : f32
    %83 = vector.broadcast %cst_25 : f32 to vector<128x16xf32>
    %84 = arith.addf %82, %83 : vector<128x16xf32>
    %cst_26 = arith.constant 2.000000e+00 : f32
    %85 = vector.broadcast %cst_26 : f32 to vector<128x16xf32>
    %86 = arith.mulf %85, %80 : vector<128x16xf32>
    %cst_27 = arith.constant 8.99999984E-4 : f32
    %87 = vector.broadcast %cst_27 : f32 to vector<128x16xf32>
    %88 = arith.addf %86, %87 : vector<128x16xf32>
    %89 = arith.mulf %84, %88 : vector<128x16xf32>
    %90 = arith.addf %75, %76 : vector<128x16xf32>
    %cst_28 = arith.constant 9.99999974E-5 : f32
    %91 = vector.broadcast %cst_28 : f32 to vector<128x16xf32>
    %92 = arith.addf %90, %91 : vector<128x16xf32>
    %93 = arith.addf %78, %79 : vector<128x16xf32>
    %cst_29 = arith.constant 8.99999984E-4 : f32
    %94 = vector.broadcast %cst_29 : f32 to vector<128x16xf32>
    %95 = arith.addf %93, %94 : vector<128x16xf32>
    %96 = arith.mulf %92, %95 : vector<128x16xf32>
    %97 = arith.divf %89, %96 : vector<128x16xf32>
    %cst_30 = arith.constant 1.000000e+00 : f32
    %98 = vector.broadcast %cst_30 : f32 to vector<128x16xf32>
    %99 = arith.subf %98, %97 : vector<128x16xf32>
    %cst_31 = arith.constant 0.000000e+00 : f32
    %cst_32 = arith.constant 1.000000e+00 : f32
    %100 = vector.broadcast %cst_31 : f32 to vector<128x16xf32>
    %101 = arith.maximumf %100, %99 : vector<128x16xf32>
    %102 = vector.broadcast %cst_32 : f32 to vector<128x16xf32>
    %103 = arith.minimumf %102, %101 : vector<128x16xf32>
    %cst_33 = arith.constant 5.000000e-01 : f32
    %104 = vector.broadcast %cst_33 : f32 to vector<128x16xf32>
    %105 = arith.mulf %103, %104 : vector<128x16xf32>
    %106 = vector.shape_cast %105 : vector<128x16xf32> to vector<1x128x16xf32>
    %cst_34 = arith.constant dense<0.000000e+00> : vector<1xf32>
    %107 = vector.multi_reduction <add>, %106, %cst_34 [1, 2] : vector<1x128x16xf32> to vector<1xf32>
    %108 = vector.shape_cast %107 : vector<1xf32> to vector<1x1x1xf32>
    %109 = vector.extract %108[0, 0, 0] : f32 from vector<1x1x1xf32>
    %c0_35 = arith.constant 0 : index
    %c0_36 = arith.constant 0 : index
    %110 = memref.load %arg5[%c0_35, %c0_36] : memref<1x1xf32, #tpu.memory_space<smem>>
    memref.store %109, %arg5[%c0_35, %c0_36] : memref<1x1xf32, #tpu.memory_space<smem>>
    return
  }
  func.func @transform_0(%arg0: i32) -> (i32, i32) {
    %c0_i32 = arith.constant 0 : i32
    %c0_i32_0 = arith.constant 0 : i32
    return %arg0, %c0_i32 : i32, i32
  }
  func.func @transform_1(%arg0: i32) -> (i32, i32) {
    %c0_i32 = arith.constant 0 : i32
    %c0_i32_0 = arith.constant 0 : i32
    return %arg0, %c0_i32 : i32, i32
  }
  func.func @transform_2(%arg0: i32) -> (i32, i32) {
    %c0_i32 = arith.constant 0 : i32
    %c0_i32_0 = arith.constant 0 : i32
    %c0_i32_1 = arith.constant 0 : i32
    return %c0_i32, %c0_i32_0 : i32, i32
  }
  func.func @transform_3(%arg0: i32) -> (i32, i32) {
    %c0_i32 = arith.constant 0 : i32
    %c0_i32_0 = arith.constant 0 : i32
    %c0_i32_1 = arith.constant 0 : i32
    return %c0_i32, %c0_i32_0 : i32, i32
  }
  func.func @transform_4(%arg0: i32) -> (i32, i32) {
    %c0_i32 = arith.constant 0 : i32
    %c0_i32_0 = arith.constant 0 : i32
    return %arg0, %c0_i32 : i32, i32
  }
}

</mosaic_0001>

<llo_original>
// kernel: _ssim_loss_impl.1
$region0: #{_ssim_loss_impl.1}
  #allocation0 [shape = 'u32[]', space=smem, size = 0x4, offset = 0x4, fixed_abs, tag = 'smem constant byte address 0x4 - core index']
  #allocation1 [shape = 'u32[144,128]{1,0:T(1,128)}', space=vmem, size = 0x12000, scoped, tag = 'internal scratch']
  %s0 = inlined_call_operand.hbm [shape: f32[128,16], index: 0, kind: input, shape index: {}]
  %s1 = inlined_call_operand.hbm [shape: f32[128,16], index: 1, kind: input, shape index: {}]
  %s2 = inlined_call_operand.hbm [shape: f32[128,128], index: 2, kind: input, shape index: {}]
  %s3 = inlined_call_operand.vmem [shape: f32[16,16], index: 3, kind: input, shape index: {}]
  %s4 = inlined_call_operand.hbm [shape: f32[1,1], index: 4, kind: output, shape index: {}]
  %s5 = sld [smem:[#allocation0]]
  $region38: #{_ssim_loss_impl.1} parent=0
    _
  %s7 = ssub.s32 1, %s5
  %s8 = scalar_select 0, %s7, %s5
  $region1: #{_ssim_loss_impl.1} parent=0
    #allocation2 [shape = 'u8[65536]{0}', space=vmem, size = 0x10000, scoped, tag = 'input window, operand 0, single buffered']
    #allocation3 [shape = 's32[1]{0}', space=sflag, size = 0x4, scoped, tag = 'scoped memory for _ssim_loss_impl.1']
    #allocation4 [shape = 's32[1]{0}', space=sflag, size = 0x4, scoped, tag = 'scoped memory for _ssim_loss_impl.1']
    #allocation5 [shape = 'u8[65536]{0}', space=vmem, size = 0x10000, scoped, tag = 'input window, operand 1, single buffered']
    #allocation6 [shape = 's32[1]{0}', space=sflag, size = 0x4, scoped, tag = 'scoped memory for _ssim_loss_impl.1']
    #allocation7 [shape = 'u8[65536]{0}', space=vmem, size = 0x10000, scoped, tag = 'input window, operand 2, single buffered']
    #allocation8 [shape = 'u8[512]{0}', space=smem, size = 0x200, scoped, tag = 'output window, operand 0, single buffered']
    %9 = vsyncpa [#allocation3], 0
    %10 = vsyncpa [#allocation6], 0
    %11 = vsyncpa [#allocation4], 0
    // Predicated region
    $region2: #{_ssim_loss_impl.1} parent=1 // pred_check
      _
    $region3: #{_ssim_loss_impl.1} parent=1 // pred_check_branch
      %13 = sbr.rel (0) target = $region5
    $region4: #{_ssim_loss_impl.1} parent=1 // pred_region
      %s15 = ssub.s32 2048, 2048
      %16 = vsyncadd [#allocation3], %s15
      %s17 = sshll.u32 [#allocation2], 4
      %s18 = int_to_ptr.vmem [resolvable:$true] %s17
      %23 = dma.hbm_to_vmem [thread:$0]  %s0, 2048, %s18, [#allocation3], 128, 128, 8
    $region5: #{_ssim_loss_impl.1} parent=1 // pred_fallthru
      _
    // Predicated region
    $region6: #{_ssim_loss_impl.1} parent=1 // pred_check
      _
    $region7: #{_ssim_loss_impl.1} parent=1 // pred_check_branch
      %25 = sbr.rel (0) target = $region9
    $region8: #{_ssim_loss_impl.1} parent=1 // pred_region
      %s27 = ssub.s32 2048, 2048
      %28 = vsyncadd [#allocation6], %s27
      %s29 = sshll.u32 [#allocation5], 4
      %s30 = int_to_ptr.vmem [resolvable:$true] %s29
      %35 = dma.hbm_to_vmem [thread:$0]  %s1, 2048, %s30, [#allocation6], 128, 128, 8
    $region9: #{_ssim_loss_impl.1} parent=1 // pred_fallthru
      _
    // Predicated region
    $region10: #{_ssim_loss_impl.1} parent=1 // pred_check
      _
    $region11: #{_ssim_loss_impl.1} parent=1 // pred_check_branch
      %37 = sbr.rel (0) target = $region13
    $region12: #{_ssim_loss_impl.1} parent=1 // pred_region
      %s39 = ssub.s32 2048, 2048
      %40 = vsyncadd [#allocation6], %s39
      %s41 = sshll.u32 [#allocation7], 4
      %s42 = int_to_ptr.vmem [resolvable:$true] %s41
      %47 = dma.hbm_to_vmem [thread:$0]  %s2, 2048, %s42, [#allocation6], 128, 128, 8
    $region13: #{_ssim_loss_impl.1} parent=1 // pred_fallthru
      _
    // Predicated region
    $region14: #{_ssim_loss_impl.1} parent=1 // pred_check
      _
    $region15: #{_ssim_loss_impl.1} parent=1 // pred_check_branch
      %49 = sbr.rel (0) target = $region17
    $region16: #{_ssim_loss_impl.1} parent=1 // pred_region
      _
    $region17: #{_ssim_loss_impl.1} parent=1 // pred_fallthru
      _
    // Predicated region
    $region18: #{_ssim_loss_impl.1} parent=1 // pred_check
      _
    $region19: #{_ssim_loss_impl.1} parent=1 // pred_check_branch
      %51 = sbr.rel (0) target = $region21
    $region20: #{_ssim_loss_impl.1} parent=1 // pred_region
      %52 = dma.done [#allocation3], 2048
    $region21: #{_ssim_loss_impl.1} parent=1 // pred_fallthru
      _
    // Predicated region
    $region22: #{_ssim_loss_impl.1} parent=1 // pred_check
      _
    $region23: #{_ssim_loss_impl.1} parent=1 // pred_check_branch
      %54 = sbr.rel (0) target = $region25
    $region24: #{_ssim_loss_impl.1} parent=1 // pred_region
      %55 = dma.done [#allocation6], 2048
    $region25: #{_ssim_loss_impl.1} parent=1 // pred_fallthru
      _
    // Predicated region
    $region26: #{_ssim_loss_impl.1} parent=1 // pred_check
      _
    $region27: #{_ssim_loss_impl.1} parent=1 // pred_check_branch
      %57 = sbr.rel (0) target = $region29
    $region28: #{_ssim_loss_impl.1} parent=1 // pred_region
      %58 = dma.done [#allocation6], 2048
    $region29: #{_ssim_loss_impl.1} parent=1 // pred_fallthru
      _
    %v60 = vld [vmem:[#allocation2] sm:$0xff]
    %v61 = vld [vmem:[#allocation2 + $0x8] sm:$0xff]
    %v62 = vld [vmem:[#allocation2 + $0x10] sm:$0xff]
    %v63 = vld [vmem:[#allocation2 + $0x18] sm:$0xff]
    %v64 = vld [vmem:[#allocation2 + $0x20] sm:$0xff]
    %v65 = vld [vmem:[#allocation2 + $0x28] sm:$0xff]
    %v66 = vld [vmem:[#allocation2 + $0x30] sm:$0xff]
    %v67 = vld [vmem:[#allocation2 + $0x38] sm:$0xff]
    %v68 = vld [vmem:[#allocation2 + $0x40] sm:$0xff]
    %v69 = vld [vmem:[#allocation2 + $0x48] sm:$0xff]
    %v70 = vld [vmem:[#allocation2 + $0x50] sm:$0xff]
    %v71 = vld [vmem:[#allocation2 + $0x58] sm:$0xff]
    %v72 = vld [vmem:[#allocation2 + $0x60] sm:$0xff]
    %v73 = vld [vmem:[#allocation2 + $0x68] sm:$0xff]
    %v74 = vld [vmem:[#allocation2 + $0x70] sm:$0xff]
    %v75 = vld [vmem:[#allocation2 + $0x78] sm:$0xff]
    %v76 = vld [vmem:[#allocation5] sm:$0xff]
    %v77 = vld [vmem:[#allocation5 + $0x8] sm:$0xff]
    %v78 = vld [vmem:[#allocation5 + $0x10] sm:$0xff]
    %v79 = vld [vmem:[#allocation5 + $0x18] sm:$0xff]
    %v80 = vld [vmem:[#allocation5 + $0x20] sm:$0xff]
    %v81 = vld [vmem:[#allocation5 + $0x28] sm:$0xff]
    %v82 = vld [vmem:[#allocation5 + $0x30] sm:$0xff]
    %v83 = vld [vmem:[#allocation5 + $0x38] sm:$0xff]
    %v84 = vld [vmem:[#allocation5 + $0x40] sm:$0xff]
    %v85 = vld [vmem:[#allocation5 + $0x48] sm:$0xff]
    %v86 = vld [vmem:[#allocation5 + $0x50] sm:$0xff]
    %v87 = vld [vmem:[#allocation5 + $0x58] sm:$0xff]
    %v88 = vld [vmem:[#allocation5 + $0x60] sm:$0xff]
    %v89 = vld [vmem:[#allocation5 + $0x68] sm:$0xff]
    %v90 = vld [vmem:[#allocation5 + $0x70] sm:$0xff]
    %v91 = vld [vmem:[#allocation5 + $0x78] sm:$0xff]
    %v92 = vmul.f32 %v60, %v60
    %v93 = vmul.f32 %v61, %v61
    %v94 = vmul.f32 %v62, %v62
    %v95 = vmul.f32 %v63, %v63
    %v96 = vmul.f32 %v64, %v64
    %v97 = vmul.f32 %v65, %v65
    %v98 = vmul.f32 %v66, %v66
    %v99 = vmul.f32 %v67, %v67
    %v100 = vmul.f32 %v68, %v68
    %v101 = vmul.f32 %v69, %v69
    %v102 = vmul.f32 %v70, %v70
    %v103 = vmul.f32 %v71, %v71
    %v104 = vmul.f32 %v72, %v72
    %v105 = vmul.f32 %v73, %v73
    %v106 = vmul.f32 %v74, %v74
    %v107 = vmul.f32 %v75, %v75
    %v108 = vmul.f32 %v76, %v76
    %v109 = vmul.f32 %v77, %v77
    %v110 = vmul.f32 %v78, %v78
    %v111 = vmul.f32 %v79, %v79
    %v112 = vmul.f32 %v80, %v80
    %v113 = vmul.f32 %v81, %v81
    %v114 = vmul.f32 %v82, %v82
    %v115 = vmul.f32 %v83, %v83
    %v116 = vmul.f32 %v84, %v84
    %v117 = vmul.f32 %v85, %v85
    %v118 = vmul.f32 %v86, %v86
    %v119 = vmul.f32 %v87, %v87
    %v120 = vmul.f32 %v88, %v88
    %v121 = vmul.f32 %v89, %v89
    %v122 = vmul.f32 %v90, %v90
    %v123 = vmul.f32 %v91, %v91
    %v124 = vmul.f32 %v60, %v76
    %v125 = vmul.f32 %v61, %v77
    %v126 = vmul.f32 %v62, %v78
    %v127 = vmul.f32 %v63, %v79
    %v128 = vmul.f32 %v64, %v80
    %v129 = vmul.f32 %v65, %v81
    %v130 = vmul.f32 %v66, %v82
    %v131 = vmul.f32 %v67, %v83
    %v132 = vmul.f32 %v68, %v84
    %v133 = vmul.f32 %v69, %v85
    %v134 = vmul.f32 %v70, %v86
    %v135 = vmul.f32 %v71, %v87
    %v136 = vmul.f32 %v72, %v88
    %v137 = vmul.f32 %v73, %v89
    %v138 = vmul.f32 %v74, %v90
    %v139 = vmul.f32 %v75, %v91
    %v140 = vpack.c.bf16 %v61, %v60
    %v141 = vpack.c.bf16 %v63, %v62
    %v142 = vpack.c.bf16 %v65, %v64
    %v143 = vpack.c.bf16 %v67, %v66
    %v144 = vpack.c.bf16 %v69, %v68
    %v145 = vpack.c.bf16 %v71, %v70
    %v146 = vpack.c.bf16 %v73, %v72
    %v147 = vpack.c.bf16 %v75, %v74
    %v148 = vpack.c.bf16 %v77, %v76
    %v149 = vpack.c.bf16 %v79, %v78
    %v150 = vpack.c.bf16 %v81, %v80
    %v151 = vpack.c.bf16 %v83, %v82
    %v152 = vpack.c.bf16 %v85, %v84
    %v153 = vpack.c.bf16 %v87, %v86
    %v154 = vpack.c.bf16 %v89, %v88
    %v155 = vpack.c.bf16 %v91, %v90
    %v156 = vpack.c.bf16 %v93, %v92
    %v157 = vpack.c.bf16 %v95, %v94
    %v158 = vpack.c.bf16 %v97, %v96
    %v159 = vpack.c.bf16 %v99, %v98
    %v160 = vpack.c.bf16 %v101, %v100
    %v161 = vpack.c.bf16 %v103, %v102
    %v162 = vpack.c.bf16 %v105, %v104
    %v163 = vpack.c.bf16 %v107, %v106
    %v164 = vpack.c.bf16 %v109, %v108
    %v165 = vpack.c.bf16 %v111, %v110
    %v166 = vpack.c.bf16 %v113, %v112
    %v167 = vpack.c.bf16 %v115, %v114
    %v168 = vpack.c.bf16 %v117, %v116
    %v169 = vpack.c.bf16 %v119, %v118
    %v170 = vpack.c.bf16 %v121, %v120
    %v171 = vpack.c.bf16 %v123, %v122
    %v172 = vpack.c.bf16 %v125, %v124
    %v173 = vpack.c.bf16 %v127, %v126
    %v174 = vpack.c.bf16 %v129, %v128
    %v175 = vpack.c.bf16 %v131, %v130
    %v176 = vpack.c.bf16 %v133, %v132
    %v177 = vpack.c.bf16 %v135, %v134
    %v178 = vpack.c.bf16 %v137, %v136
    %v179 = vpack.c.bf16 %v139, %v138
    %v180 = vunpack.c.l.bf16 %v140
    %v181 = vunpack.c.h.bf16 %v140
    %v182 = vunpack.c.l.bf16 %v141
    %v183 = vunpack.c.h.bf16 %v141
    %v184 = vunpack.c.l.bf16 %v142
    %v185 = vunpack.c.h.bf16 %v142
    %v186 = vunpack.c.l.bf16 %v143
    %v187 = vunpack.c.h.bf16 %v143
    %v188 = vunpack.c.l.bf16 %v144
    %v189 = vunpack.c.h.bf16 %v144
    %v190 = vunpack.c.l.bf16 %v145
    %v191 = vunpack.c.h.bf16 %v145
    %v192 = vunpack.c.l.bf16 %v146
    %v193 = vunpack.c.h.bf16 %v146
    %v194 = vunpack.c.l.bf16 %v147
    %v195 = vunpack.c.h.bf16 %v147
    %v196 = vunpack.c.l.bf16 %v148
    %v197 = vunpack.c.h.bf16 %v148
    %v198 = vunpack.c.l.bf16 %v149
    %v199 = vunpack.c.h.bf16 %v149
    %v200 = vunpack.c.l.bf16 %v150
    %v201 = vunpack.c.h.bf16 %v150
    %v202 = vunpack.c.l.bf16 %v151
    %v203 = vunpack.c.h.bf16 %v151
    %v204 = vunpack.c.l.bf16 %v152
    %v205 = vunpack.c.h.bf16 %v152
    %v206 = vunpack.c.l.bf16 %v153
    %v207 = vunpack.c.h.bf16 %v153
    %v208 = vunpack.c.l.bf16 %v154
    %v209 = vunpack.c.h.bf16 %v154
    %v210 = vunpack.c.l.bf16 %v155
    %v211 = vunpack.c.h.bf16 %v155
    %v212 = vunpack.c.l.bf16 %v156
    %v213 = vunpack.c.h.bf16 %v156
    %v214 = vunpack.c.l.bf16 %v157
    %v215 = vunpack.c.h.bf16 %v157
    %v216 = vunpack.c.l.bf16 %v158
    %v217 = vunpack.c.h.bf16 %v158
    %v218 = vunpack.c.l.bf16 %v159
    %v219 = vunpack.c.h.bf16 %v159
    %v220 = vunpack.c.l.bf16 %v160
    %v221 = vunpack.c.h.bf16 %v160
    %v222 = vunpack.c.l.bf16 %v161
    %v223 = vunpack.c.h.bf16 %v161
    %v224 = vunpack.c.l.bf16 %v162
    %v225 = vunpack.c.h.bf16 %v162
    %v226 = vunpack.c.l.bf16 %v163
    %v227 = vunpack.c.h.bf16 %v163
    %v228 = vunpack.c.l.bf16 %v164
    %v229 = vunpack.c.h.bf16 %v164
    %v230 = vunpack.c.l.bf16 %v165
    %v231 = vunpack.c.h.bf16 %v165
    %v232 = vunpack.c.l.bf16 %v166
    %v233 = vunpack.c.h.bf16 %v166
    %v234 = vunpack.c.l.bf16 %v167
    %v235 = vunpack.c.h.bf16 %v167
    %v236 = vunpack.c.l.bf16 %v168
    %v237 = vunpack.c.h.bf16 %v168
    %v238 = vunpack.c.l.bf16 %v169
    %v239 = vunpack.c.h.bf16 %v169
    %v240 = vunpack.c.l.bf16 %v170
    %v241 = vunpack.c.h.bf16 %v170
    %v242 = vunpack.c.l.bf16 %v171
    %v243 = vunpack.c.h.bf16 %v171
    %v244 = vunpack.c.l.bf16 %v172
    %v245 = vunpack.c.h.bf16 %v172
    %v246 = vunpack.c.l.bf16 %v173
    %v247 = vunpack.c.h.bf16 %v173
    %v248 = vunpack.c.l.bf16 %v174
    %v249 = vunpack.c.h.bf16 %v174
    %v250 = vunpack.c.l.bf16 %v175
    %v251 = vunpack.c.h.bf16 %v175
    %v252 = vunpack.c.l.bf16 %v176
    %v253 = vunpack.c.h.bf16 %v176
    %v254 = vunpack.c.l.bf16 %v177
    %v255 = vunpack.c.h.bf16 %v177
    %v256 = vunpack.c.l.bf16 %v178
    %v257 = vunpack.c.h.bf16 %v178
    %v258 = vunpack.c.l.bf16 %v179
    %v259 = vunpack.c.h.bf16 %v179
    %v260 = vsub.f32 %v60, %v180
    %v261 = vsub.f32 %v61, %v181
    %v262 = vsub.f32 %v62, %v182
    %v263 = vsub.f32 %v63, %v183
    %v264 = vsub.f32 %v64, %v184
    %v265 = vsub.f32 %v65, %v185
    %v266 = vsub.f32 %v66, %v186
    %v267 = vsub.f32 %v67, %v187
    %v268 = vsub.f32 %v68, %v188
    %v269 = vsub.f32 %v69, %v189
    %v270 = vsub.f32 %v70, %v190
    %v271 = vsub.f32 %v71, %v191
    %v272 = vsub.f32 %v72, %v192
    %v273 = vsub.f32 %v73, %v193
    %v274 = vsub.f32 %v74, %v194
    %v275 = vsub.f32 %v75, %v195
    %v276 = vsub.f32 %v76, %v196
    %v277 = vsub.f32 %v77, %v197
    %v278 = vsub.f32 %v78, %v198
    %v279 = vsub.f32 %v79, %v199
    %v280 = vsub.f32 %v80, %v200
    %v281 = vsub.f32 %v81, %v201
    %v282 = vsub.f32 %v82, %v202
    %v283 = vsub.f32 %v83, %v203
    %v284 = vsub.f32 %v84, %v204
    %v285 = vsub.f32 %v85, %v205
    %v286 = vsub.f32 %v86, %v206
    %v287 = vsub.f32 %v87, %v207
    %v288 = vsub.f32 %v88, %v208
    %v289 = vsub.f32 %v89, %v209
    %v290 = vsub.f32 %v90, %v210
    %v291 = vsub.f32 %v91, %v211
    %v292 = vsub.f32 %v92, %v212
    %v293 = vsub.f32 %v93, %v213
    %v294 = vsub.f32 %v94, %v214
    %v295 = vsub.f32 %v95, %v215
    %v296 = vsub.f32 %v96, %v216
    %v297 = vsub.f32 %v97, %v217
    %v298 = vsub.f32 %v98, %v218
    %v299 = vsub.f32 %v99, %v219
    %v300 = vsub.f32 %v100, %v220
    %v301 = vsub.f32 %v101, %v221
    %v302 = vsub.f32 %v102, %v222
    %v303 = vsub.f32 %v103, %v223
    %v304 = vsub.f32 %v104, %v224
    %v305 = vsub.f32 %v105, %v225
    %v306 = vsub.f32 %v106, %v226
    %v307 = vsub.f32 %v107, %v227
    %v308 = vsub.f32 %v108, %v228
    %v309 = vsub.f32 %v109, %v229
    %v310 = vsub.f32 %v110, %v230
    %v311 = vsub.f32 %v111, %v231
    %v312 = vsub.f32 %v112, %v232
    %v313 = vsub.f32 %v113, %v233
    %v314 = vsub.f32 %v114, %v234
    %v315 = vsub.f32 %v115, %v235
    %v316 = vsub.f32 %v116, %v236
    %v317 = vsub.f32 %v117, %v237
    %v318 = vsub.f32 %v118, %v238
    %v319 = vsub.f32 %v119, %v239
    %v320 = vsub.f32 %v120, %v240
    %v321 = vsub.f32 %v121, %v241
    %v322 = vsub.f32 %v122, %v242
    %v323 = vsub.f32 %v123, %v243
    %v324 = vsub.f32 %v124, %v244
    %v325 = vsub.f32 %v125, %v245
    %v326 = vsub.f32 %v126, %v246
    %v327 = vsub.f32 %v127, %v247
    %v328 = vsub.f32 %v128, %v248
    %v329 = vsub.f32 %v129, %v249
    %v330 = vsub.f32 %v130, %v250
    %v331 = vsub.f32 %v131, %v251
    %v332 = vsub.f32 %v132, %v252
    %v333 = vsub.f32 %v133, %v253
    %v334 = vsub.f32 %v134, %v254
    %v335 = vsub.f32 %v135, %v255
    %v336 = vsub.f32 %v136, %v256
    %v337 = vsub.f32 %v137, %v257
    %v338 = vsub.f32 %v138, %v258
    %v339 = vsub.f32 %v139, %v259
    %v340 = vpack.c.bf16 %v261, %v260
    %v341 = vpack.c.bf16 %v263, %v262
    %v342 = vpack.c.bf16 %v265, %v264
    %v343 = vpack.c.bf16 %v267, %v266
    %v344 = vpack.c.bf16 %v269, %v268
    %v345 = vpack.c.bf16 %v271, %v270
    %v346 = vpack.c.bf16 %v273, %v272
    %v347 = vpack.c.bf16 %v275, %v274
    %v348 = vpack.c.bf16 %v277, %v276
    %v349 = vpack.c.bf16 %v279, %v278
    %v350 = vpack.c.bf16 %v281, %v280
    %v351 = vpack.c.bf16 %v283, %v282
    %v352 = vpack.c.bf16 %v285, %v284
    %v353 = vpack.c.bf16 %v287, %v286
    %v354 = vpack.c.bf16 %v289, %v288
    %v355 = vpack.c.bf16 %v291, %v290
    %v356 = vpack.c.bf16 %v293, %v292
    %v357 = vpack.c.bf16 %v295, %v294
    %v358 = vpack.c.bf16 %v297, %v296
    %v359 = vpack.c.bf16 %v299, %v298
    %v360 = vpack.c.bf16 %v301, %v300
    %v361 = vpack.c.bf16 %v303, %v302
    %v362 = vpack.c.bf16 %v305, %v304
    %v363 = vpack.c.bf16 %v307, %v306
    %v364 = vpack.c.bf16 %v309, %v308
    %v365 = vpack.c.bf16 %v311, %v310
    %v366 = vpack.c.bf16 %v313, %v312
    %v367 = vpack.c.bf16 %v315, %v314
    %v368 = vpack.c.bf16 %v317, %v316
    %v369 = vpack.c.bf16 %v319, %v318
    %v370 = vpack.c.bf16 %v321, %v320
    %v371 = vpack.c.bf16 %v323, %v322
    %v372 = vpack.c.bf16 %v325, %v324
    %v373 = vpack.c.bf16 %v327, %v326
    %v374 = vpack.c.bf16 %v329, %v328
    %v375 = vpack.c.bf16 %v331, %v330
    %v376 = vpack.c.bf16 %v333, %v332
    %v377 = vpack.c.bf16 %v335, %v334
    %v378 = vpack.c.bf16 %v337, %v336
    %v379 = vpack.c.bf16 %v339, %v338
    %v380 = vld [vmem:[%s3] sm:$0xff]
    %v381 = vld [vmem:[%s3 + $0x8] sm:$0xff]
    %v382 = vpack.c.bf16 %v381, %v380
    %v383 = vunpack.c.l.bf16 %v382
    %v384 = vunpack.c.h.bf16 %v382
    %v385 = vsub.f32 %v380, %v383
    %v386 = vsub.f32 %v381, %v384
    %v387 = vpack.c.bf16 %v386, %v385
    %vm388 = vcmask 130048
    %v390 = vsel %vm388, %v140, 0
    %v393 = vsel %vm388, %v141, 0
    %v396 = vsel %vm388, %v142, 0
    %v399 = vsel %vm388, %v143, 0
    %v402 = vsel %vm388, %v144, 0
    %v405 = vsel %vm388, %v145, 0
    %v408 = vsel %vm388, %v146, 0
    %v411 = vsel %vm388, %v147, 0
    %v414 = vsel %vm388, %v148, 0
    %v417 = vsel %vm388, %v149, 0
    %v420 = vsel %vm388, %v150, 0
    %v423 = vsel %vm388, %v151, 0
    %v426 = vsel %vm388, %v152, 0
    %v429 = vsel %vm388, %v153, 0
    %v432 = vsel %vm388, %v154, 0
    %v435 = vsel %vm388, %v155, 0
    %v438 = vsel %vm388, %v156, 0
    %v441 = vsel %vm388, %v157, 0
    %v444 = vsel %vm388, %v158, 0
    %v447 = vsel %vm388, %v159, 0
    %v450 = vsel %vm388, %v160, 0
    %v453 = vsel %vm388, %v161, 0
    %v456 = vsel %vm388, %v162, 0
    %v459 = vsel %vm388, %v163, 0
    %v462 = vsel %vm388, %v164, 0
    %v465 = vsel %vm388, %v165, 0
    %v468 = vsel %vm388, %v166, 0
    %v471 = vsel %vm388, %v167, 0
    %v474 = vsel %vm388, %v168, 0
    %v477 = vsel %vm388, %v169, 0
    %v480 = vsel %vm388, %v170, 0
    %v483 = vsel %vm388, %v171, 0
    %v486 = vsel %vm388, %v172, 0
    %v489 = vsel %vm388, %v173, 0
    %v492 = vsel %vm388, %v174, 0
    %v495 = vsel %vm388, %v175, 0
    %v498 = vsel %vm388, %v176, 0
    %v501 = vsel %vm388, %v177, 0
    %v504 = vsel %vm388, %v178, 0
    %v507 = vsel %vm388, %v179, 0
    %509 = vmatprep.subr.bf16.mxu0 0
    %510 = vmatpush1.bf16.msra.mxu0 %v387
    %511 = vmatprep.subr.bf16.mxu0 0
    %512 = vmatpush1.bf16.msra.mxu0 0
    %513 = vmatprep.subr.bf16.mxu0 0
    %514 = vmatpush1.bf16.msra.mxu0 0
    %515 = vmatprep.subr.bf16.mxu0 0
    %516 = vmatpush1.bf16.msra.mxu0 0
    %517 = vmatprep.subr.bf16.mxu0 0
    %518 = vmatpush1.bf16.msra.mxu0 0
    %519 = vmatprep.subr.bf16.mxu0 0
    %520 = vmatpush1.bf16.msra.mxu0 0
    %521 = vmatprep.subr.bf16.mxu0 0
    %522 = vmatpush1.bf16.msra.mxu0 0
    %523 = vmatprep.subr.bf16.mxu0 0
    %524 = vmatpush1.bf16.msra.mxu0 0
    %525 = vmatprep.subr.bf16.mxu0 0
    %526 = vmatpush1.bf16.msra.mxu0 0
    %527 = vmatprep.subr.bf16.mxu0 0
    %528 = vmatpush1.bf16.msra.mxu0 0
    %529 = vmatprep.subr.bf16.mxu0 0
    %530 = vmatpush1.bf16.msra.mxu0 0
    %531 = vmatprep.subr.bf16.mxu0 0
    %532 = vmatpush1.bf16.msra.mxu0 0
    %533 = vmatprep.subr.bf16.mxu0 0
    %534 = vmatpush1.bf16.msra.mxu0 0
    %535 = vmatprep.subr.bf16.mxu0 0
    %536 = vmatpush1.bf16.msra.mxu0 0
    %537 = vmatprep.subr.bf16.mxu0 0
    %538 = vmatpush1.bf16.msra.mxu0 0
    %539 = vmatprep.subr.bf16.mxu0 0
    %540 = vmatpush1.bf16.msra.mxu0 0
    %541 = vmatprep.mubr.bf16.mxu0 0
    %542 = vmatmul.mubr.bf16.gmra.mrb[0].mxu0 %v390
    %v543 = vpop.f32.mrb[0].mxu0
    %v544 = vadd.f32 0.0, %v543
    %v545 = vpop.f32.mrb[0].mxu0
    %v546 = vpop.f32.mrb[0].mxu0
    %v547 = vadd.f32 0.0, %v546
    %v548 = vpop.f32.mrb[0].mxu0
    %549 = vmatprep.mubr.bf16.mxu0 0
    %550 = vmatmul.mubr.bf16.gmra.mrb[0].mxu0 %v393
    %v551 = vpop.f32.mrb[0].mxu0
    %v552 = vadd.f32 0.0, %v551
    %v553 = vpop.f32.mrb[0].mxu0
    %v554 = vpop.f32.mrb[0].mxu0
    %v555 = vadd.f32 0.0, %v554
    %v556 = vpop.f32.mrb[0].mxu0
    %557 = vmatprep.mubr.bf16.mxu0 0
    %558 = vmatmul.mubr.bf16.gmra.mrb[0].mxu0 %v396
    %v559 = vpop.f32.mrb[0].mxu0
    %v560 = vadd.f32 0.0, %v559
    %v561 = vpop.f32.mrb[0].mxu0
    %v562 = vpop.f32.mrb[0].mxu0
    %v563 = vadd.f32 0.0, %v562
    %v564 = vpop.f32.mrb[0].mxu0
    %565 = vmatprep.mubr.bf16.mxu0 0
    %566 = vmatmul.mubr.bf16.gmra.mrb[0].mxu0 %v399
    %v567 = vpop.f32.mrb[0].mxu0
    %v568 = vadd.f32 0.0, %v567
    %v569 = vpop.f32.mrb[0].mxu0
    %v570 = vpop.f32.mrb[0].mxu0
    %v571 = vadd.f32 0.0, %v570
    %v572 = vpop.f32.mrb[0].mxu0
    %573 = vmatprep.mubr.bf16.mxu0 0
    %574 = vmatmul.mubr.bf16.gmra.mrb[0].mxu0 %v402
    %v575 = vpop.f32.mrb[0].mxu0
    %v576 = vadd.f32 0.0, %v575
    %v577 = vpop.f32.mrb[0].mxu0
    %v578 = vpop.f32.mrb[0].mxu0
    %v579 = vadd.f32 0.0, %v578
    %v580 = vpop.f32.mrb[0].mxu0
    %581 = vmatprep.mubr.bf16.mxu0 0
    %582 = vmatmul.mubr.bf16.gmra.mrb[0].mxu0 %v405
    %v583 = vpop.f32.mrb[0].mxu0
    %v584 = vadd.f32 0.0, %v583
    %v585 = vpop.f32.mrb[0].mxu0
    %v586 = vpop.f32.mrb[0].mxu0
    %v587 = vadd.f32 0.0, %v586
    %v588 = vpop.f32.mrb[0].mxu0
    %589 = vmatprep.mubr.bf16.mxu0 0
    %590 = vmatmul.mubr.bf16.gmra.mrb[0].mxu0 %v408
    %v591 = vpop.f32.mrb[0].mxu0
    %v592 = vadd.f32 0.0, %v591
    %v593 = vpop.f32.mrb[0].mxu0
    %v594 = vpop.f32.mrb[0].mxu0
    %v595 = vadd.f32 0.0, %v594
    %v596 = vpop.f32.mrb[0].mxu0
    %597 = vmatprep.mubr.bf16.mxu0 0
    %598 = vmatmul.mubr.bf16.gmra.mrb[0].mxu0 %v411
    %v599 = vpop.f32.mrb[0].mxu0
    %v600 = vadd.f32 0.0, %v599
    %v601 = vpop.f32.mrb[0].mxu0
    %v602 = vpop.f32.mrb[0].mxu0
    %v603 = vadd.f32 0.0, %v602
    %v604 = vpop.f32.mrb[0].mxu0
    %605 = vmatprep.mubr.bf16.mxu0 0
    %606 = vmatmul.mubr.bf16.gmra.mrb[0].mxu0 %v414
    %v607 = vpop.f32.mrb[0].mxu0
    %v608 = vadd.f32 0.0, %v607
    %v609 = vpop.f32.mrb[0].mxu0
    %v610 = vpop.f32.mrb[0].mxu0
    %v611 = vadd.f32 0.0, %v610
    %v612 = vpop.f32.mrb[0].mxu0
    %613 = vmatprep.mubr.bf16.mxu0 0
    %614 = vmatmul.mubr.bf16.gmra.mrb[0].mxu0 %v417
    %v615 = vpop.f32.mrb[0].mxu0
    %v616 = vadd.f32 0.0, %v615
    %v617 = vpop.f32.mrb[0].mxu0
    %v618 = vpop.f32.mrb[0].mxu0
    %v619 = vadd.f32 0.0, %v618
    %v620 = vpop.f32.mrb[0].mxu0
    %621 = vmatprep.mubr.bf16.mxu0 0
    %622 = vmatmul.mubr.bf16.gmra.mrb[0].mxu0 %v420
    %v623 = vpop.f32.mrb[0].mxu0
    %v624 = vadd.f32 0.0, %v623
    %v625 = vpop.f32.mrb[0].mxu0
    %v626 = vpop.f32.mrb[0].mxu0
    %v627 = vadd.f32 0.0, %v626
    %v628 = vpop.f32.mrb[0].mxu0
    %629 = vmatprep.mubr.bf16.mxu0 0
    %630 = vmatmul.mubr.bf16.gmra.mrb[0].mxu0 %v423
    %v631 = vpop.f32.mrb[0].mxu0
    %v632 = vadd.f32 0.0, %v631
    %v633 = vpop.f32.mrb[0].mxu0
    %v634 = vpop.f32.mrb[0].mxu0
    %v635 = vadd.f32 0.0, %v634
    %v636 = vpop.f32.mrb[0].mxu0
    %637 = vmatprep.mubr.bf16.mxu0 0
    %638 = vmatmul.mubr.bf16.gmra.mrb[0].mxu0 %v426
    %v639 = vpop.f32.mrb[0].mxu0
    %v640 = vadd.f32 0.0, %v639
    %v641 = vpop.f32.mrb[0].mxu0
    %v642 = vpop.f32.mrb[0].mxu0
    %v643 = vadd.f32 0.0, %v642
    %v644 = vpop.f32.mrb[0].mxu0
    %645 = vmatprep.mubr.bf16.mxu0 0
    %646 = vmatmul.mubr.bf16.gmra.mrb[0].mxu0 %v429
    %v647 = vpop.f32.mrb[0].mxu0
    %v648 = vadd.f32 0.0, %v647
    %v649 = vpop.f32.mrb[0].mxu0
    %v650 = vpop.f32.mrb[0].mxu0
    %v651 = vadd.f32 0.0, %v650
    %v652 = vpop.f32.mrb[0].mxu0
    %653 = vmatprep.mubr.bf16.mxu0 0
    %654 = vmatmul.mubr.bf16.gmra.mrb[0].mxu0 %v432
    %v655 = vpop.f32.mrb[0].mxu0
    %v656 = vadd.f32 0.0, %v655
    %v657 = vpop.f32.mrb[0].mxu0
    %v658 = vpop.f32.mrb[0].mxu0
    %v659 = vadd.f32 0.0, %v658
    %v660 = vpop.f32.mrb[0].mxu0
    %661 = vmatprep.mubr.bf16.mxu0 0
    %662 = vmatmul.mubr.bf16.gmra.mrb[0].mxu0 %v435
    %v663 = vpop.f32.mrb[0].mxu0
    %v664 = vadd.f32 0.0, %v663
    %v665 = vpop.f32.mrb[0].mxu0
    %v666 = vpop.f32.mrb[0].mxu0
    %v667 = vadd.f32 0.0, %v666
    %v668 = vpop.f32.mrb[0].mxu0
    %669 = vmatprep.mubr.bf16.mxu0 0
    %670 = vmatmul.mubr.bf16.gmra.mrb[0].mxu0 %v438
    %v671 = vpop.f32.mrb[0].mxu0
    %v672 = vadd.f32 0.0, %v671
    %v673 = vpop.f32.mrb[0].mxu0
    %v674 = vpop.f32.mrb[0].mxu0
    %v675 = vadd.f32 0.0, %v674
    %v676 = vpop.f32.mrb[0].mxu0
    %677 = vmatprep.mubr.bf16.mxu0 0
    %678 = vmatmul.mubr.bf16.gmra.mrb[0].mxu0 %v441
    %v679 = vpop.f32.mrb[0].mxu0
    %v680 = vadd.f32 0.0, %v679
    %v681 = vpop.f32.mrb[0].mxu0
    %v682 = vpop.f32.mrb[0].mxu0
    %v683 = vadd.f32 0.0, %v682
    %v684 = vpop.f32.mrb[0].mxu0
    %685 = vmatprep.mubr.bf16.mxu0 0
    %686 = vmatmul.mubr.bf16.gmra.mrb[0].mxu0 %v444
    %v687 = vpop.f32.mrb[0].mxu0
    %v688 = vadd.f32 0.0, %v687
    %v689 = vpop.f32.mrb[0].mxu0
    %v690 = vpop.f32.mrb[0].mxu0
    %v691 = vadd.f32 0.0, %v690
    %v692 = vpop.f32.mrb[0].mxu0
    %693 = vmatprep.mubr.bf16.mxu0 0
    %694 = vmatmul.mubr.bf16.gmra.mrb[0].mxu0 %v447
    %v695 = vpop.f32.mrb[0].mxu0
    %v696 = vadd.f32 0.0, %v695
    %v697 = vpop.f32.mrb[0].mxu0
    %v698 = vpop.f32.mrb[0].mxu0
    %v699 = vadd.f32 0.0, %v698
    %v700 = vpop.f32.mrb[0].mxu0
    %701 = vmatprep.mubr.bf16.mxu0 0
    %702 = vmatmul.mubr.bf16.gmra.mrb[0].mxu0 %v450
    %v703 = vpop.f32.mrb[0].mxu0
    %v704 = vadd.f32 0.0, %v703
    %v705 = vpop.f32.mrb[0].mxu0
    %v706 = vpop.f32.mrb[0].mxu0
    %v707 = vadd.f32 0.0, %v706
    %v708 = vpop.f32.mrb[0].mxu0
    %709 = vmatprep.mubr.bf16.mxu0 0
    %710 = vmatmul.mubr.bf16.gmra.mrb[0].mxu0 %v453
    %v711 = vpop.f32.mrb[0].mxu0
    %v712 = vadd.f32 0.0, %v711
    %v713 = vpop.f32.mrb[0].mxu0
    %v714 = vpop.f32.mrb[0].mxu0
    %v715 = vadd.f32 0.0, %v714
    %v716 = vpop.f32.mrb[0].mxu0
    %717 = vmatprep.mubr.bf16.mxu0 0
    %718 = vmatmul.mubr.bf16.gmra.mrb[0].mxu0 %v456
    %v719 = vpop.f32.mrb[0].mxu0
    %v720 = vadd.f32 0.0, %v719
    %v721 = vpop.f32.mrb[0].mxu0
    %v722 = vpop.f32.mrb[0].mxu0
    %v723 = vadd.f32 0.0, %v722
    %v724 = vpop.f32.mrb[0].mxu0
    %725 = vmatprep.mubr.bf16.mxu0 0
    %726 = vmatmul.mubr.bf16.gmra.mrb[0].mxu0 %v459
    %v727 = vpop.f32.mrb[0].mxu0
    %v728 = vadd.f32 0.0, %v727
    %v729 = vpop.f32.mrb[0].mxu0
    %v730 = vpop.f32.mrb[0].mxu0
    %v731 = vadd.f32 0.0, %v730
    %v732 = vpop.f32.mrb[0].mxu0
    %733 = vmatprep.mubr.bf16.mxu0 0
    %734 = vmatmul.mubr.bf16.gmra.mrb[0].mxu0 %v462
    %v735 = vpop.f32.mrb[0].mxu0
    %v736 = vadd.f32 0.0, %v735
    %v737 = vpop.f32.mrb[0].mxu0
    %v738 = vpop.f32.mrb[0].mxu0
    %v739 = vadd.f32 0.0, %v738
    %v740 = vpop.f32.mrb[0].mxu0
    %741 = vmatprep.mubr.bf16.mxu0 0
    %742 = vmatmul.mubr.bf16.gmra.mrb[0].mxu0 %v465
    %v743 = vpop.f32.mrb[0].mxu0
    %v744 = vadd.f32 0.0, %v743
    %v745 = vpop.f32.mrb[0].mxu0
    %v746 = vpop.f32.mrb[0].mxu0
    %v747 = vadd.f32 0.0, %v746
    %v748 = vpop.f32.mrb[0].mxu0
    %749 = vmatprep.mubr.bf16.mxu0 0
    %750 = vmatmul.mubr.bf16.gmra.mrb[0].mxu0 %v468
    %v751 = vpop.f32.mrb[0].mxu0
    %v752 = vadd.f32 0.0, %v751
    %v753 = vpop.f32.mrb[0].mxu0
    %v754 = vpop.f32.mrb[0].mxu0
    %v755 = vadd.f32 0.0, %v754
    %v756 = vpop.f32.mrb[0].mxu0
    %757 = vmatprep.mubr.bf16.mxu0 0
    %758 = vmatmul.mubr.bf16.gmra.mrb[0].mxu0 %v471
    %v759 = vpop.f32.mrb[0].mxu0
    %v760 = vadd.f32 0.0, %v759
    %v761 = vpop.f32.mrb[0].mxu0
    %v762 = vpop.f32.mrb[0].mxu0
    %v763 = vadd.f32 0.0, %v762
    %v764 = vpop.f32.mrb[0].mxu0
    %765 = vmatprep.mubr.bf16.mxu0 0
    %766 = vmatmul.mubr.bf16.gmra.mrb[0].mxu0 %v474
    %v767 = vpop.f32.mrb[0].mxu0
    %v768 = vadd.f32 0.0, %v767
    %v769 = vpop.f32.mrb[0].mxu0
    %v770 = vpop.f32.mrb[0].mxu0
    %v771 = vadd.f32 0.0, %v770
    %v772 = vpop.f32.mrb[0].mxu0
    %773 = vmatprep.mubr.bf16.mxu0 0
    %774 = vmatmul.mubr.bf16.gmra.mrb[0].mxu0 %v477
    %v775 = vpop.f32.mrb[0].mxu0
    %v776 = vadd.f32 0.0, %v775
    %v777 = vpop.f32.mrb[0].mxu0
    %v778 = vpop.f32.mrb[0].mxu0
    %v779 = vadd.f32 0.0, %v778
    %v780 = vpop.f32.mrb[0].mxu0
    %781 = vmatprep.mubr.bf16.mxu0 0
    %782 = vmatmul.mubr.bf16.gmra.mrb[0].mxu0 %v480
    %v783 = vpop.f32.mrb[0].mxu0
    %v784 = vadd.f32 0.0, %v783
    %v785 = vpop.f32.mrb[0].mxu0
    %v786 = vpop.f32.mrb[0].mxu0
    %v787 = vadd.f32 0.0, %v786
    %v788 = vpop.f32.mrb[0].mxu0
    %789 = vmatprep.mubr.bf16.mxu0 0
    %790 = vmatmul.mubr.bf16.gmra.mrb[0].mxu0 %v483
    %v791 = vpop.f32.mrb[0].mxu0
    %v792 = vadd.f32 0.0, %v791
    %v793 = vpop.f32.mrb[0].mxu0
    %v794 = vpop.f32.mrb[0].mxu0
    %v795 = vadd.f32 0.0, %v794
    %v796 = vpop.f32.mrb[0].mxu0
    %797 = vmatprep.mubr.bf16.mxu0 0
    %798 = vmatmul.mubr.bf16.gmra.mrb[0].mxu0 %v486
    %v799 = vpop.f32.mrb[0].mxu0
    %v800 = vadd.f32 0.0, %v799
    %v801 = vpop.f32.mrb[0].mxu0
    %v802 = vpop.f32.mrb[0].mxu0
    %v803 = vadd.f32 0.0, %v802
    %v804 = vpop.f32.mrb[0].mxu0
    %805 = vmatprep.mubr.bf16.mxu0 0
    %806 = vmatmul.mubr.bf16.gmra.mrb[0].mxu0 %v489
    %v807 = vpop.f32.mrb[0].mxu0
    %v808 = vadd.f32 0.0, %v807
    %v809 = vpop.f32.mrb[0].mxu0
    %v810 = vpop.f32.mrb[0].mxu0
    %v811 = vadd.f32 0.0, %v810
    %v812 = vpop.f32.mrb[0].mxu0
    %813 = vmatprep.mubr.bf16.mxu0 0
    %814 = vmatmul.mubr.bf16.gmra.mrb[0].mxu0 %v492
    %v815 = vpop.f32.mrb[0].mxu0
    %v816 = vadd.f32 0.0, %v815
    %v817 = vpop.f32.mrb[0].mxu0
    %v818 = vpop.f32.mrb[0].mxu0
    %v819 = vadd.f32 0.0, %v818
    %v820 = vpop.f32.mrb[0].mxu0
    %821 = vmatprep.mubr.bf16.mxu0 0
    %822 = vmatmul.mubr.bf16.gmra.mrb[0].mxu0 %v495
    %v823 = vpop.f32.mrb[0].mxu0
    %v824 = vadd.f32 0.0, %v823
    %v825 = vpop.f32.mrb[0].mxu0
    %v826 = vpop.f32.mrb[0].mxu0
    %v827 = vadd.f32 0.0, %v826
    %v828 = vpop.f32.mrb[0].mxu0
    %829 = vmatprep.mubr.bf16.mxu0 0
    %830 = vmatmul.mubr.bf16.gmra.mrb[0].mxu0 %v498
    %v831 = vpop.f32.mrb[0].mxu0
    %v832 = vadd.f32 0.0, %v831
    %v833 = vpop.f32.mrb[0].mxu0
    %v834 = vpop.f32.mrb[0].mxu0
    %v835 = vadd.f32 0.0, %v834
    %v836 = vpop.f32.mrb[0].mxu0
    %837 = vmatprep.mubr.bf16.mxu0 0
    %838 = vmatmul.mubr.bf16.gmra.mrb[0].mxu0 %v501
    %v839 = vpop.f32.mrb[0].mxu0
    %v840 = vadd.f32 0.0, %v839
    %v841 = vpop.f32.mrb[0].mxu0
    %v842 = vpop.f32.mrb[0].mxu0
    %v843 = vadd.f32 0.0, %v842
    %v844 = vpop.f32.mrb[0].mxu0
    %845 = vmatprep.mubr.bf16.mxu0 0
    %846 = vmatmul.mubr.bf16.gmra.mrb[0].mxu0 %v504
    %v847 = vpop.f32.mrb[0].mxu0
    %v848 = vadd.f32 0.0, %v847
    %v849 = vpop.f32.mrb[0].mxu0
    %v850 = vpop.f32.mrb[0].mxu0
    %v851 = vadd.f32 0.0, %v850
    %v852 = vpop.f32.mrb[0].mxu0
    %853 = vmatprep.mubr.bf16.mxu0 0
    %854 = vmatmul.mubr.bf16.gmra.mrb[0].mxu0 %v507
    %v855 = vpop.f32.mrb[0].mxu0
    %v856 = vadd.f32 0.0, %v855
    %v857 = vpop.f32.mrb[0].mxu0
    %v858 = vpop.f32.mrb[0].mxu0
    %v859 = vadd.f32 0.0, %v858
    %v860 = vpop.f32.mrb[0].mxu0
    %861 = vdwg.mxu0
    %862 = vmatprep.subr.bf16.mxu0 0
    %863 = vmatpush1.bf16.msra.mxu0 %v382
    %864 = vmatprep.subr.bf16.mxu0 0
    %865 = vmatpush1.bf16.msra.mxu0 0
    %866 = vmatprep.subr.bf16.mxu0 0
    %867 = vmatpush1.bf16.msra.mxu0 0
    %868 = vmatprep.subr.bf16.mxu0 0
    %869 = vmatpush1.bf16.msra.mxu0 0
    %870 = vmatprep.subr.bf16.mxu0 0
    %871 = vmatpush1.bf16.msra.mxu0 0
    %872 = vmatprep.subr.bf16.mxu0 0
    %873 = vmatpush1.bf16.msra.mxu0 0
    %874 = vmatprep.subr.bf16.mxu0 0
    %875 = vmatpush1.bf16.msra.mxu0 0
    %876 = vmatprep.subr.bf16.mxu0 0
    %877 = vmatpush1.bf16.msra.mxu0 0
    %878 = vmatprep.subr.bf16.mxu0 0
    %879 = vmatpush1.bf16.msra.mxu0 0
    %880 = vmatprep.subr.bf16.mxu0 0
    %881 = vmatpush1.bf16.msra.mxu0 0
    %882 = vmatprep.subr.bf16.mxu0 0
    %883 = vmatpush1.bf16.msra.mxu0 0
    %884 = vmatprep.subr.bf16.mxu0 0
    %885 = vmatpush1.bf16.msra.mxu0 0
    %886 = vmatprep.subr.bf16.mxu0 0
    %887 = vmatpush1.bf16.msra.mxu0 0
    %888 = vmatprep.subr.bf16.mxu0 0
    %889 = vmatpush1.bf16.msra.mxu0 0
    %890 = vmatprep.subr.bf16.mxu0 0
    %891 = vmatpush1.bf16.msra.mxu0 0
    %892 = vmatprep.subr.bf16.mxu0 0
    %893 = vmatpush1.bf16.msra.mxu0 0
    %894 = vmatprep.mubr.bf16.mxu0 0
    %895 = vmatmul.mubr.bf16.gmra.mrb[0].mxu0 %v390
    %v896 = vpop.f32.mrb[0].mxu0
    %v897 = vadd.f32 %v544, %v896
    %v898 = vpop.f32.mrb[0].mxu0
    %v899 = vpop.f32.mrb[0].mxu0
    %v900 = vadd.f32 %v547, %v899
    %v901 = vpop.f32.mrb[0].mxu0
    %902 = vmatprep.mubr.bf16.mxu0 0
    %903 = vmatmul.mubr.bf16.gmra.mrb[0].mxu0 %v393
    %v904 = vpop.f32.mrb[0].mxu0
    %v905 = vadd.f32 %v552, %v904
    %v906 = vpop.f32.mrb[0].mxu0
    %v907 = vpop.f32.mrb[0].mxu0
    %v908 = vadd.f32 %v555, %v907
    %v909 = vpop.f32.mrb[0].mxu0
    %910 = vmatprep.mubr.bf16.mxu0 0
    %911 = vmatmul.mubr.bf16.gmra.mrb[0].mxu0 %v396
    %v912 = vpop.f32.mrb[0].mxu0
    %v913 = vadd.f32 %v560, %v912
    %v914 = vpop.f32.mrb[0].mxu0
    %v915 = vpop.f32.mrb[0].mxu0
    %v916 = vadd.f32 %v563, %v915
    %v917 = vpop.f32.mrb[0].mxu0
    %918 = vmatprep.mubr.bf16.mxu0 0
    %919 = vmatmul.mubr.bf16.gmra.mrb[0].mxu0 %v399
    %v920 = vpop.f32.mrb[0].mxu0
    %v921 = vadd.f32 %v568, %v920
    %v922 = vpop.f32.mrb[0].mxu0
    %v923 = vpop.f32.mrb[0].mxu0
    %v924 = vadd.f32 %v571, %v923
    %v925 = vpop.f32.mrb[0].mxu0
    %926 = vmatprep.mubr.bf16.mxu0 0
    %927 = vmatmul.mubr.bf16.gmra.mrb[0].mxu0 %v402
    %v928 = vpop.f32.mrb[0].mxu0
    %v929 = vadd.f32 %v576, %v928
    %v930 = vpop.f32.mrb[0].mxu0
    %v931 = vpop.f32.mrb[0].mxu0
    %v932 = vadd.f32 %v579, %v931
    %v933 = vpop.f32.mrb[0].mxu0
    %934 = vmatprep.mubr.bf16.mxu0 0
    %935 = vmatmul.mubr.bf16.gmra.mrb[0].mxu0 %v405
    %v936 = vpop.f32.mrb[0].mxu0
    %v937 = vadd.f32 %v584, %v936
    %v938 = vpop.f32.mrb[0].mxu0
    %v939 = vpop.f32.mrb[0].mxu0
    %v940 = vadd.f32 %v587, %v939
    %v941 = vpop.f32.mrb[0].mxu0
    %942 = vmatprep.mubr.bf16.mxu0 0
    %943 = vmatmul.mubr.bf16.gmra.mrb[0].mxu0 %v408
    %v944 = vpop.f32.mrb[0].mxu0
    %v945 = vadd.f32 %v592, %v944
    %v946 = vpop.f32.mrb[0].mxu0
    %v947 = vpop.f32.mrb[0].mxu0
    %v948 = vadd.f32 %v595, %v947
    %v949 = vpop.f32.mrb[0].mxu0
    %950 = vmatprep.mubr.bf16.mxu0 0
    %951 = vmatmul.mubr.bf16.gmra.mrb[0].mxu0 %v411
    %v952 = vpop.f32.mrb[0].mxu0
    %v953 = vadd.f32 %v600, %v952
    %v954 = vpop.f32.mrb[0].mxu0
    %v955 = vpop.f32.mrb[0].mxu0
    %v956 = vadd.f32 %v603, %v955
    %v957 = vpop.f32.mrb[0].mxu0
    %958 = vmatprep.mubr.bf16.mxu0 0
    %959 = vmatmul.mubr.bf16.gmra.mrb[0].mxu0 %v414
    %v960 = vpop.f32.mrb[0].mxu0
    %v961 = vadd.f32 %v608, %v960
    %v962 = vpop.f32.mrb[0].mxu0
    %v963 = vpop.f32.mrb[0].mxu0
    %v964 = vadd.f32 %v611, %v963
    %v965 = vpop.f32.mrb[0].mxu0
    %966 = vmatprep.mubr.bf16.mxu0 0
    %967 = vmatmul.mubr.bf16.gmra.mrb[0].mxu0 %v417
    %v968 = vpop.f32.mrb[0].mxu0
    %v969 = vadd.f32 %v616, %v968
    %v970 = vpop.f32.mrb[0].mxu0
    %v971 = vpop.f32.mrb[0].mxu0
    %v972 = vadd.f32 %v619, %v971
    %v973 = vpop.f32.mrb[0].mxu0
    %974 = vmatprep.mubr.bf16.mxu0 0
    %975 = vmatmul.mubr.bf16.gmra.mrb[0].mxu0 %v420
    %v976 = vpop.f32.mrb[0].mxu0
    %v977 = vadd.f32 %v624, %v976
    %v978 = vpop.f32.mrb[0].mxu0
    %v979 = vpop.f32.mrb[0].mxu0
    %v980 = vadd.f32 %v627, %v979
    %v981 = vpop.f32.mrb[0].mxu0
    %982 = vmatprep.mubr.bf16.mxu0 0
    %983 = vmatmul.mubr.bf16.gmra.mrb[0].mxu0 %v423
    %v984 = vpop.f32.mrb[0].mxu0
    %v985 = vadd.f32 %v632, %v984
    %v986 = vpop.f32.mrb[0].mxu0
    %v987 = vpop.f32.mrb[0].mxu0
    %v988 = vadd.f32 %v635, %v987
    %v989 = vpop.f32.mrb[0].mxu0
    %990 = vmatprep.mubr.bf16.mxu0 0
    %991 = vmatmul.mubr.bf16.gmra.mrb[0].mxu0 %v426
    %v992 = vpop.f32.mrb[0].mxu0
    %v993 = vadd.f32 %v640, %v992
    %v994 = vpop.f32.mrb[0].mxu0
    %v995 = vpop.f32.mrb[0].mxu0
    %v996 = vadd.f32 %v643, %v995
    %v997 = vpop.f32.mrb[0].mxu0
    %998 = vmatprep.mubr.bf16.mxu0 0
    %999 = vmatmul.mubr.bf16.gmra.mrb[0].mxu0 %v429
    %v1000 = vpop.f32.mrb[0].mxu0
    %v1001 = vadd.f32 %v648, %v1000
    %v1002 = vpop.f32.mrb[0].mxu0
    %v1003 = vpop.f32.mrb[0].mxu0
    %v1004 = vadd.f32 %v651, %v1003
    %v1005 = vpop.f32.mrb[0].mxu0
    %1006 = vmatprep.mubr.bf16.mxu0 0
    %1007 = vmatmul.mubr.bf16.gmra.mrb[0].mxu0 %v432
    %v1008 = vpop.f32.mrb[0].mxu0
    %v1009 = vadd.f32 %v656, %v1008
    %v1010 = vpop.f32.mrb[0].mxu0
    %v1011 = vpop.f32.mrb[0].mxu0
    %v1012 = vadd.f32 %v659, %v1011
    %v1013 = vpop.f32.mrb[0].mxu0
    %1014 = vmatprep.mubr.bf16.mxu0 0
    %1015 = vmatmul.mubr.bf16.gmra.mrb[0].mxu0 %v435
    %v1016 = vpop.f32.mrb[0].mxu0
    %v1017 = vadd.f32 %v664, %v1016
    %v1018 = vpop.f32.mrb[0].mxu0
    %v1019 = vpop.f32.mrb[0].mxu0
    %v1020 = vadd.f32 %v667, %v1019
    %v1021 = vpop.f32.mrb[0].mxu0
    %1022 = vmatprep.mubr.bf16.mxu0 0
    %1023 = vmatmul.mubr.bf16.gmra.mrb[0].mxu0 %v438
    %v1024 = vpop.f32.mrb[0].mxu0
    %v1025 = vadd.f32 %v672, %v1024
    %v1026 = vpop.f32.mrb[0].mxu0
    %v1027 = vpop.f32.mrb[0].mxu0
    %v1028 = vadd.f32 %v675, %v1027
    %v1029 = vpop.f32.mrb[0].mxu0
    %1030 = vmatprep.mubr.bf16.mxu0 0
    %1031 = vmatmul.mubr.bf16.gmra.mrb[0].mxu0 %v441
    %v1032 = vpop.f32.mrb[0].mxu0
    %v1033 = vadd.f32 %v680, %v1032
    %v1034 = vpop.f32.mrb[0].mxu0
    %v1035 = vpop.f32.mrb[0].mxu0
    %v1036 = vadd.f32 %v683, %v1035
    %v1037 = vpop.f32.mrb[0].mxu0
    %1038 = vmatprep.mubr.bf16.mxu0 0
    %1039 = vmatmul.mubr.bf16.gmra.mrb[0].mxu0 %v444
    %v1040 = vpop.f32.mrb[0].mxu0
    %v1041 = vadd.f32 %v688, %v1040
    %v1042 = vpop.f32.mrb[0].mxu0
    %v1043 = vpop.f32.mrb[0].mxu0
    %v1044 = vadd.f32 %v691, %v1043
    %v1045 = vpop.f32.mrb[0].mxu0
    %1046 = vmatprep.mubr.bf16.mxu0 0
    %1047 = vmatmul.mubr.bf16.gmra.mrb[0].mxu0 %v447
    %v1048 = vpop.f32.mrb[0].mxu0
    %v1049 = vadd.f32 %v696, %v1048
    %v1050 = vpop.f32.mrb[0].mxu0
    %v1051 = vpop.f32.mrb[0].mxu0
    %v1052 = vadd.f32 %v699, %v1051
    %v1053 = vpop.f32.mrb[0].mxu0
    %1054 = vmatprep.mubr.bf16.mxu0 0
    %1055 = vmatmul.mubr.bf16.gmra.mrb[0].mxu0 %v450
    %v1056 = vpop.f32.mrb[0].mxu0
    %v1057 = vadd.f32 %v704, %v1056
    %v1058 = vpop.f32.mrb[0].mxu0
    %v1059 = vpop.f32.mrb[0].mxu0
    %v1060 = vadd.f32 %v707, %v1059
    %v1061 = vpop.f32.mrb[0].mxu0
    %1062 = vmatprep.mubr.bf16.mxu0 0
    %1063 = vmatmul.mubr.bf16.gmra.mrb[0].mxu0 %v453
    %v1064 = vpop.f32.mrb[0].mxu0
    %v1065 = vadd.f32 %v712, %v1064
    %v1066 = vpop.f32.mrb[0].mxu0
    %v1067 = vpop.f32.mrb[0].mxu0
    %v1068 = vadd.f32 %v715, %v1067
    %v1069 = vpop.f32.mrb[0].mxu0
    %1070 = vmatprep.mubr.bf16.mxu0 0
    %1071 = vmatmul.mubr.bf16.gmra.mrb[0].mxu0 %v456
    %v1072 = vpop.f32.mrb[0].mxu0
    %v1073 = vadd.f32 %v720, %v1072
    %v1074 = vpop.f32.mrb[0].mxu0
    %v1075 = vpop.f32.mrb[0].mxu0
    %v1076 = vadd.f32 %v723, %v1075
    %v1077 = vpop.f32.mrb[0].mxu0
    %1078 = vmatprep.mubr.bf16.mxu0 0
    %1079 = vmatmul.mubr.bf16.gmra.mrb[0].mxu0 %v459
    %v1080 = vpop.f32.mrb[0].mxu0
    %v1081 = vadd.f32 %v728, %v1080
    %v1082 = vpop.f32.mrb[0].mxu0
    %v1083 = vpop.f32.mrb[0].mxu0
    %v1084 = vadd.f32 %v731, %v1083
    %v1085 = vpop.f32.mrb[0].mxu0
    %1086 = vmatprep.mubr.bf16.mxu0 0
    %1087 = vmatmul.mubr.bf16.gmra.mrb[0].mxu0 %v462
    %v1088 = vpop.f32.mrb[0].mxu0
    %v1089 = vadd.f32 %v736, %v1088
    %v1090 = vpop.f32.mrb[0].mxu0
    %v1091 = vpop.f32.mrb[0].mxu0
    %v1092 = vadd.f32 %v739, %v1091
    %v1093 = vpop.f32.mrb[0].mxu0
    %1094 = vmatprep.mubr.bf16.mxu0 0
    %1095 = vmatmul.mubr.bf16.gmra.mrb[0].mxu0 %v465
    %v1096 = vpop.f32.mrb[0].mxu0
    %v1097 = vadd.f32 %v744, %v1096
    %v1098 = vpop.f32.mrb[0].mxu0
    %v1099 = vpop.f32.mrb[0].mxu0
    %v1100 = vadd.f32 %v747, %v1099
    %v1101 = vpop.f32.mrb[0].mxu0
    %1102 = vmatprep.mubr.bf16.mxu0 0
    %1103 = vmatmul.mubr.bf16.gmra.mrb[0].mxu0 %v468
    %v1104 = vpop.f32.mrb[0].mxu0
    %v1105 = vadd.f32 %v752, %v1104
    %v1106 = vpop.f32.mrb[0].mxu0
    %v1107 = vpop.f32.mrb[0].mxu0
    %v1108 = vadd.f32 %v755, %v1107
    %v1109 = vpop.f32.mrb[0].mxu0
    %1110 = vmatprep.mubr.bf16.mxu0 0
    %1111 = vmatmul.mubr.bf16.gmra.mrb[0].mxu0 %v471
    %v1112 = vpop.f32.mrb[0].mxu0
    %v1113 = vadd.f32 %v760, %v1112
    %v1114 = vpop.f32.mrb[0].mxu0
    %v1115 = vpop.f32.mrb[0].mxu0
    %v1116 = vadd.f32 %v763, %v1115
    %v1117 = vpop.f32.mrb[0].mxu0
    %1118 = vmatprep.mubr.bf16.mxu0 0
    %1119 = vmatmul.mubr.bf16.gmra.mrb[0].mxu0 %v474
    %v1120 = vpop.f32.mrb[0].mxu0
    %v1121 = vadd.f32 %v768, %v1120
    %v1122 = vpop.f32.mrb[0].mxu0
    %v1123 = vpop.f32.mrb[0].mxu0
    %v1124 = vadd.f32 %v771, %v1123
    %v1125 = vpop.f32.mrb[0].mxu0
    %1126 = vmatprep.mubr.bf16.mxu0 0
    %1127 = vmatmul.mubr.bf16.gmra.mrb[0].mxu0 %v477
    %v1128 = vpop.f32.mrb[0].mxu0
    %v1129 = vadd.f32 %v776, %v1128
    %v1130 = vpop.f32.mrb[0].mxu0
    %v1131 = vpop.f32.mrb[0].mxu0
    %v1132 = vadd.f32 %v779, %v1131
    %v1133 = vpop.f32.mrb[0].mxu0
    %1134 = vmatprep.mubr.bf16.mxu0 0
    %1135 = vmatmul.mubr.bf16.gmra.mrb[0].mxu0 %v480
    %v1136 = vpop.f32.mrb[0].mxu0
    %v1137 = vadd.f32 %v784, %v1136
    %v1138 = vpop.f32.mrb[0].mxu0
    %v1139 = vpop.f32.mrb[0].mxu0
    %v1140 = vadd.f32 %v787, %v1139
    %v1141 = vpop.f32.mrb[0].mxu0
    %1142 = vmatprep.mubr.bf16.mxu0 0
    %1143 = vmatmul.mubr.bf16.gmra.mrb[0].mxu0 %v483
    %v1144 = vpop.f32.mrb[0].mxu0
    %v1145 = vadd.f32 %v792, %v1144
    %v1146 = vpop.f32.mrb[0].mxu0
    %v1147 = vpop.f32.mrb[0].mxu0
    %v1148 = vadd.f32 %v795, %v1147
    %v1149 = vpop.f32.mrb[0].mxu0
    %1150 = vmatprep.mubr.bf16.mxu0 0
    %1151 = vmatmul.mubr.bf16.gmra.mrb[0].mxu0 %v486
    %v1152 = vpop.f32.mrb[0].mxu0
    %v1153 = vadd.f32 %v800, %v1152
    %v1154 = vpop.f32.mrb[0].mxu0
    %v1155 = vpop.f32.mrb[0].mxu0
    %v1156 = vadd.f32 %v803, %v1155
    %v1157 = vpop.f32.mrb[0].mxu0
    %1158 = vmatprep.mubr.bf16.mxu0 0
    %1159 = vmatmul.mubr.bf16.gmra.mrb[0].mxu0 %v489
    %v1160 = vpop.f32.mrb[0].mxu0
    %v1161 = vadd.f32 %v808, %v1160
    %v1162 = vpop.f32.mrb[0].mxu0
    %v1163 = vpop.f32.mrb[0].mxu0
    %v1164 = vadd.f32 %v811, %v1163
    %v1165 = vpop.f32.mrb[0].mxu0
    %1166 = vmatprep.mubr.bf16.mxu0 0
    %1167 = vmatmul.mubr.bf16.gmra.mrb[0].mxu0 %v492
    %v1168 = vpop.f32.mrb[0].mxu0
    %v1169 = vadd.f32 %v816, %v1168
    %v1170 = vpop.f32.mrb[0].mxu0
    %v1171 = vpop.f32.mrb[0].mxu0
    %v1172 = vadd.f32 %v819, %v1171
    %v1173 = vpop.f32.mrb[0].mxu0
    %1174 = vmatprep.mubr.bf16.mxu0 0
    %1175 = vmatmul.mubr.bf16.gmra.mrb[0].mxu0 %v495
    %v1176 = vpop.f32.mrb[0].mxu0
    %v1177 = vadd.f32 %v824, %v1176
    %v1178 = vpop.f32.mrb[0].mxu0
    %v1179 = vpop.f32.mrb[0].mxu0
    %v1180 = vadd.f32 %v827, %v1179
    %v1181 = vpop.f32.mrb[0].mxu0
    %1182 = vmatprep.mubr.bf16.mxu0 0
    %1183 = vmatmul.mubr.bf16.gmra.mrb[0].mxu0 %v498
    %v1184 = vpop.f32.mrb[0].mxu0
    %v1185 = vadd.f32 %v832, %v1184
    %v1186 = vpop.f32.mrb[0].mxu0
    %v1187 = vpop.f32.mrb[0].mxu0
    %v1188 = vadd.f32 %v835, %v1187
    %v1189 = vpop.f32.mrb[0].mxu0
    %1190 = vmatprep.mubr.bf16.mxu0 0
    %1191 = vmatmul.mubr.bf16.gmra.mrb[0].mxu0 %v501
    %v1192 = vpop.f32.mrb[0].mxu0
    %v1193 = vadd.f32 %v840, %v1192
    %v1194 = vpop.f32.mrb[0].mxu0
    %v1195 = vpop.f32.mrb[0].mxu0
    %v1196 = vadd.f32 %v843, %v1195
    %v1197 = vpop.f32.mrb[0].mxu0
    %1198 = vmatprep.mubr.bf16.mxu0 0
    %1199 = vmatmul.mubr.bf16.gmra.mrb[0].mxu0 %v504
    %v1200 = vpop.f32.mrb[0].mxu0
    %v1201 = vadd.f32 %v848, %v1200
    %v1202 = vpop.f32.mrb[0].mxu0
    %v1203 = vpop.f32.mrb[0].mxu0
    %v1204 = vadd.f32 %v851, %v1203
    %v1205 = vpop.f32.mrb[0].mxu0
    %1206 = vmatprep.mubr.bf16.mxu0 0
    %1207 = vmatmul.mubr.bf16.gmra.mrb[0].mxu0 %v507
    %v1208 = vpop.f32.mrb[0].mxu0
    %v1209 = vadd.f32 %v856, %v1208
    %v1210 = vpop.f32.mrb[0].mxu0
    %v1211 = vpop.f32.mrb[0].mxu0
    %v1212 = vadd.f32 %v859, %v1211
    %v1213 = vpop.f32.mrb[0].mxu0
    %1214 = vdwg.mxu0
    %v1216 = vsel %vm388, %v340, 0
    %v1219 = vsel %vm388, %v341, 0
    %v1222 = vsel %vm388, %v342, 0
    %v1225 = vsel %vm388, %v343, 0
    %v1228 = vsel %vm388, %v344, 0
    %v1231 = vsel %vm388, %v345, 0
    %v1234 = vsel %vm388, %v346, 0
    %v1237 = vsel %vm388, %v347, 0
    %v1240 = vsel %vm388, %v348, 0
    %v1243 = vsel %vm388, %v349, 0
    %v1246 = vsel %vm388, %v350, 0
    %v1249 = vsel %vm388, %v351, 0
    %v1252 = vsel %vm388, %v352, 0
    %v1255 = vsel %vm388, %v353, 0
    %v1258 = vsel %vm388, %v354, 0
    %v1261 = vsel %vm388, %v355, 0
    %v1264 = vsel %vm388, %v356, 0
    %v1267 = vsel %vm388, %v357, 0
    %v1270 = vsel %vm388, %v358, 0
    %v1273 = vsel %vm388, %v359, 0
    %v1276 = vsel %vm388, %v360, 0
    %v1279 = vsel %vm388, %v361, 0
    %v1282 = vsel %vm388, %v362, 0
    %v1285 = vsel %vm388, %v363, 0
    %v1288 = vsel %vm388, %v364, 0
    %v1291 = vsel %vm388, %v365, 0
    %v1294 = vsel %vm388, %v366, 0
    %v1297 = vsel %vm388, %v367, 0
    %v1300 = vsel %vm388, %v368, 0
    %v1303 = vsel %vm388, %v369, 0
    %v1306 = vsel %vm388, %v370, 0
    %v1309 = vsel %vm388, %v371, 0
    %v1312 = vsel %vm388, %v372, 0
    %v1315 = vsel %vm388, %v373, 0
    %v1318 = vsel %vm388, %v374, 0
    %v1321 = vsel %vm388, %v375, 0
    %v1324 = vsel %vm388, %v376, 0
    %v1327 = vsel %vm388, %v377, 0
    %v1330 = vsel %vm388, %v378, 0
    %v1333 = vsel %vm388, %v379, 0
    %1335 = vmatprep.subr.bf16.mxu0 0
    %1336 = vmatpush1.bf16.msra.mxu0 %v382
    %1337 = vmatprep.subr.bf16.mxu0 0
    %1338 = vmatpush1.bf16.msra.mxu0 0
    %1339 = vmatprep.subr.bf16.mxu0 0
    %1340 = vmatpush1.bf16.msra.mxu0 0
    %1341 = vmatprep.subr.bf16.mxu0 0
    %1342 = vmatpush1.bf16.msra.mxu0 0
    %1343 = vmatprep.subr.bf16.mxu0 0
    %1344 = vmatpush1.bf16.msra.mxu0 0
    %1345 = vmatprep.subr.bf16.mxu0 0
    %1346 = vmatpush1.bf16.msra.mxu0 0
    %1347 = vmatprep.subr.bf16.mxu0 0
    %1348 = vmatpush1.bf16.msra.mxu0 0
    %1349 = vmatprep.subr.bf16.mxu0 0
    %1350 = vmatpush1.bf16.msra.mxu0 0
    %1351 = vmatprep.subr.bf16.mxu0 0
    %1352 = vmatpush1.bf16.msra.mxu0 0
    %1353 = vmatprep.subr.bf16.mxu0 0
    %1354 = vmatpush1.bf16.msra.mxu0 0
    %1355 = vmatprep.subr.bf16.mxu0 0
    %1356 = vmatpush1.bf16.msra.mxu0 0
    %1357 = vmatprep.subr.bf16.mxu0 0
    %1358 = vmatpush1.bf16.msra.mxu0 0
    %1359 = vmatprep.subr.bf16.mxu0 0
    %1360 = vmatpush1.bf16.msra.mxu0 0
    %1361 = vmatprep.subr.bf16.mxu0 0
    %1362 = vmatpush1.bf16.msra.mxu0 0
    %1363 = vmatprep.subr.bf16.mxu0 0
    %1364 = vmatpush1.bf16.msra.mxu0 0
    %1365 = vmatprep.subr.bf16.mxu0 0
    %1366 = vmatpush1.bf16.msra.mxu0 0
    %1367 = vmatprep.mubr.bf16.mxu0 0
    %1368 = vmatmul.mubr.bf16.gmra.mrb[0].mxu0 %v1216
    %v1369 = vpop.f32.mrb[0].mxu0
    %v1370 = vadd.f32 0.0, %v1369
    %v1371 = vpop.f32.mrb[0].mxu0
    %v1372 = vpop.f32.mrb[0].mxu0
    %v1373 = vadd.f32 0.0, %v1372
    %v1374 = vpop.f32.mrb[0].mxu0
    %1375 = vmatprep.mubr.bf16.mxu0 0
    %1376 = vmatmul.mubr.bf16.gmra.mrb[0].mxu0 %v1219
    %v1377 = vpop.f32.mrb[0].mxu0
    %v1378 = vadd.f32 0.0, %v1377
    %v1379 = vpop.f32.mrb[0].mxu0
    %v1380 = vpop.f32.mrb[0].mxu0
    %v1381 = vadd.f32 0.0, %v1380
    %v1382 = vpop.f32.mrb[0].mxu0
    %1383 = vmatprep.mubr.bf16.mxu0 0
    %1384 = vmatmul.mubr.bf16.gmra.mrb[0].mxu0 %v1222
    %v1385 = vpop.f32.mrb[0].mxu0
    %v1386 = vadd.f32 0.0, %v1385
    %v1387 = vpop.f32.mrb[0].mxu0
    %v1388 = vpop.f32.mrb[0].mxu0
    %v1389 = vadd.f32 0.0, %v1388
    %v1390 = vpop.f32.mrb[0].mxu0
    %1391 = vmatprep.mubr.bf16.mxu0 0
    %1392 = vmatmul.mubr.bf16.gmra.mrb[0].mxu0 %v1225
    %v1393 = vpop.f32.mrb[0].mxu0
    %v1394 = vadd.f32 0.0, %v1393
    %v1395 = vpop.f32.mrb[0].mxu0
    %v1396 = vpop.f32.mrb[0].mxu0
    %v1397 = vadd.f32 0.0, %v1396
    %v1398 = vpop.f32.mrb[0].mxu0
    %1399 = vmatprep.mubr.bf16.mxu0 0
    %1400 = vmatmul.mubr.bf16.gmra.mrb[0].mxu0 %v1228
    %v1401 = vpop.f32.mrb[0].mxu0
    %v1402 = vadd.f32 0.0, %v1401
    %v1403 = vpop.f32.mrb[0].mxu0
    %v1404 = vpop.f32.mrb[0].mxu0
    %v1405 = vadd.f32 0.0, %v1404
    %v1406 = vpop.f32.mrb[0].mxu0
    %1407 = vmatprep.mubr.bf16.mxu0 0
    %1408 = vmatmul.mubr.bf16.gmra.mrb[0].mxu0 %v1231
    %v1409 = vpop.f32.mrb[0].mxu0
    %v1410 = vadd.f32 0.0, %v1409
    %v1411 = vpop.f32.mrb[0].mxu0
    %v1412 = vpop.f32.mrb[0].mxu0
    %v1413 = vadd.f32 0.0, %v1412
    %v1414 = vpop.f32.mrb[0].mxu0
    %1415 = vmatprep.mubr.bf16.mxu0 0
    %1416 = vmatmul.mubr.bf16.gmra.mrb[0].mxu0 %v1234
    %v1417 = vpop.f32.mrb[0].mxu0
    %v1418 = vadd.f32 0.0, %v1417
    %v1419 = vpop.f32.mrb[0].mxu0
    %v1420 = vpop.f32.mrb[0].mxu0
    %v1421 = vadd.f32 0.0, %v1420
    %v1422 = vpop.f32.mrb[0].mxu0
    %1423 = vmatprep.mubr.bf16.mxu0 0
    %1424 = vmatmul.mubr.bf16.gmra.mrb[0].mxu0 %v1237
    %v1425 = vpop.f32.mrb[0].mxu0
    %v1426 = vadd.f32 0.0, %v1425
    %v1427 = vpop.f32.mrb[0].mxu0
    %v1428 = vpop.f32.mrb[0].mxu0
    %v1429 = vadd.f32 0.0, %v1428
    %v1430 = vpop.f32.mrb[0].mxu0
    %1431 = vmatprep.mubr.bf16.mxu0 0
    %1432 = vmatmul.mubr.bf16.gmra.mrb[0].mxu0 %v1240
    %v1433 = vpop.f32.mrb[0].mxu0
    %v1434 = vadd.f32 0.0, %v1433
    %v1435 = vpop.f32.mrb[0].mxu0
    %v1436 = vpop.f32.mrb[0].mxu0
    %v1437 = vadd.f32 0.0, %v1436
    %v1438 = vpop.f32.mrb[0].mxu0
    %1439 = vmatprep.mubr.bf16.mxu0 0
    %1440 = vmatmul.mubr.bf16.gmra.mrb[0].mxu0 %v1243
    %v1441 = vpop.f32.mrb[0].mxu0
    %v1442 = vadd.f32 0.0, %v1441
    %v1443 = vpop.f32.mrb[0].mxu0
    %v1444 = vpop.f32.mrb[0].mxu0
    %v1445 = vadd.f32 0.0, %v1444
    %v1446 = vpop.f32.mrb[0].mxu0
    %1447 = vmatprep.mubr.bf16.mxu0 0
    %1448 = vmatmul.mubr.bf16.gmra.mrb[0].mxu0 %v1246
    %v1449 = vpop.f32.mrb[0].mxu0
    %v1450 = vadd.f32 0.0, %v1449
    %v1451 = vpop.f32.mrb[0].mxu0
    %v1452 = vpop.f32.mrb[0].mxu0
    %v1453 = vadd.f32 0.0, %v1452
    %v1454 = vpop.f32.mrb[0].mxu0
    %1455 = vmatprep.mubr.bf16.mxu0 0
    %1456 = vmatmul.mubr.bf16.gmra.mrb[0].mxu0 %v1249
    %v1457 = vpop.f32.mrb[0].mxu0
    %v1458 = vadd.f32 0.0, %v1457
    %v1459 = vpop.f32.mrb[0].mxu0
    %v1460 = vpop.f32.mrb[0].mxu0
    %v1461 = vadd.f32 0.0, %v1460
    %v1462 = vpop.f32.mrb[0].mxu0
    %1463 = vmatprep.mubr.bf16.mxu0 0
    %1464 = vmatmul.mubr.bf16.gmra.mrb[0].mxu0 %v1252
    %v1465 = vpop.f32.mrb[0].mxu0
    %v1466 = vadd.f32 0.0, %v1465
    %v1467 = vpop.f32.mrb[0].mxu0
    %v1468 = vpop.f32.mrb[0].mxu0
    %v1469 = vadd.f32 0.0, %v1468
    %v1470 = vpop.f32.mrb[0].mxu0
    %1471 = vmatprep.mubr.bf16.mxu0 0
    %1472 = vmatmul.mubr.bf16.gmra.mrb[0].mxu0 %v1255
    %v1473 = vpop.f32.mrb[0].mxu0
    %v1474 = vadd.f32 0.0, %v1473
    %v1475 = vpop.f32.mrb[0].mxu0
    %v1476 = vpop.f32.mrb[0].mxu0
    %v1477 = vadd.f32 0.0, %v1476
    %v1478 = vpop.f32.mrb[0].mxu0
    %1479 = vmatprep.mubr.bf16.mxu0 0
    %1480 = vmatmul.mubr.bf16.gmra.mrb[0].mxu0 %v1258
    %v1481 = vpop.f32.mrb[0].mxu0
    %v1482 = vadd.f32 0.0, %v1481
    %v1483 = vpop.f32.mrb[0].mxu0
    %v1484 = vpop.f32.mrb[0].mxu0
    %v1485 = vadd.f32 0.0, %v1484
    %v1486 = vpop.f32.mrb[0].mxu0
    %1487 = vmatprep.mubr.bf16.mxu0 0
    %1488 = vmatmul.mubr.bf16.gmra.mrb[0].mxu0 %v1261
    %v1489 = vpop.f32.mrb[0].mxu0
    %v1490 = vadd.f32 0.0, %v1489
    %v1491 = vpop.f32.mrb[0].mxu0
    %v1492 = vpop.f32.mrb[0].mxu0
    %v1493 = vadd.f32 0.0, %v1492
    %v1494 = vpop.f32.mrb[0].mxu0
    %1495 = vmatprep.mubr.bf16.mxu0 0
    %1496 = vmatmul.mubr.bf16.gmra.mrb[0].mxu0 %v1264
    %v1497 = vpop.f32.mrb[0].mxu0
    %v1498 = vadd.f32 0.0, %v1497
    %v1499 = vpop.f32.mrb[0].mxu0
    %v1500 = vpop.f32.mrb[0].mxu0
    %v1501 = vadd.f32 0.0, %v1500
    %v1502 = vpop.f32.mrb[0].mxu0
    %1503 = vmatprep.mubr.bf16.mxu0 0
    %1504 = vmatmul.mubr.bf16.gmra.mrb[0].mxu0 %v1267
    %v1505 = vpop.f32.mrb[0].mxu0
    %v1506 = vadd.f32 0.0, %v1505
    %v1507 = vpop.f32.mrb[0].mxu0
    %v1508 = vpop.f32.mrb[0].mxu0
    %v1509 = vadd.f32 0.0, %v1508
    %v1510 = vpop.f32.mrb[0].mxu0
    %1511 = vmatprep.mubr.bf16.mxu0 0
    %1512 = vmatmul.mubr.bf16.gmra.mrb[0].mxu0 %v1270
    %v1513 = vpop.f32.mrb[0].mxu0
    %v1514 = vadd.f32 0.0, %v1513
    %v1515 = vpop.f32.mrb[0].mxu0
    %v1516 = vpop.f32.mrb[0].mxu0
    %v1517 = vadd.f32 0.0, %v1516
    %v1518 = vpop.f32.mrb[0].mxu0
    %1519 = vmatprep.mubr.bf16.mxu0 0
    %1520 = vmatmul.mubr.bf16.gmra.mrb[0].mxu0 %v1273
    %v1521 = vpop.f32.mrb[0].mxu0
    %v1522 = vadd.f32 0.0, %v1521
    %v1523 = vpop.f32.mrb[0].mxu0
    %v1524 = vpop.f32.mrb[0].mxu0
    %v1525 = vadd.f32 0.0, %v1524
    %v1526 = vpop.f32.mrb[0].mxu0
    %1527 = vmatprep.mubr.bf16.mxu0 0
    %1528 = vmatmul.mubr.bf16.gmra.mrb[0].mxu0 %v1276
    %v1529 = vpop.f32.mrb[0].mxu0
    %v1530 = vadd.f32 0.0, %v1529
    %v1531 = vpop.f32.mrb[0].mxu0
    %v1532 = vpop.f32.mrb[0].mxu0
    %v1533 = vadd.f32 0.0, %v1532
    %v1534 = vpop.f32.mrb[0].mxu0
    %1535 = vmatprep.mubr.bf16.mxu0 0
    %1536 = vmatmul.mubr.bf16.gmra.mrb[0].mxu0 %v1279
    %v1537 = vpop.f32.mrb[0].mxu0
    %v1538 = vadd.f32 0.0, %v1537
    %v1539 = vpop.f32.mrb[0].mxu0
    %v1540 = vpop.f32.mrb[0].mxu0
    %v1541 = vadd.f32 0.0, %v1540
    %v1542 = vpop.f32.mrb[0].mxu0
    %1543 = vmatprep.mubr.bf16.mxu0 0
    %1544 = vmatmul.mubr.bf16.gmra.mrb[0].mxu0 %v1282
    %v1545 = vpop.f32.mrb[0].mxu0
    %v1546 = vadd.f32 0.0, %v1545
    %v1547 = vpop.f32.mrb[0].mxu0
    %v1548 = vpop.f32.mrb[0].mxu0
    %v1549 = vadd.f32 0.0, %v1548
    %v1550 = vpop.f32.mrb[0].mxu0
    %1551 = vmatprep.mubr.bf16.mxu0 0
    %1552 = vmatmul.mubr.bf16.gmra.mrb[0].mxu0 %v1285
    %v1553 = vpop.f32.mrb[0].mxu0
    %v1554 = vadd.f32 0.0, %v1553
    %v1555 = vpop.f32.mrb[0].mxu0
    %v1556 = vpop.f32.mrb[0].mxu0
    %v1557 = vadd.f32 0.0, %v1556
    %v1558 = vpop.f32.mrb[0].mxu0
    %1559 = vmatprep.mubr.bf16.mxu0 0
    %1560 = vmatmul.mubr.bf16.gmra.mrb[0].mxu0 %v1288
    %v1561 = vpop.f32.mrb[0].mxu0
    %v1562 = vadd.f32 0.0, %v1561
    %v1563 = vpop.f32.mrb[0].mxu0
    %v1564 = vpop.f32.mrb[0].mxu0
    %v1565 = vadd.f32 0.0, %v1564
    %v1566 = vpop.f32.mrb[0].mxu0
    %1567 = vmatprep.mubr.bf16.mxu0 0
    %1568 = vmatmul.mubr.bf16.gmra.mrb[0].mxu0 %v1291
    %v1569 = vpop.f32.mrb[0].mxu0
    %v1570 = vadd.f32 0.0, %v1569
    %v1571 = vpop.f32.mrb[0].mxu0
    %v1572 = vpop.f32.mrb[0].mxu0
    %v1573 = vadd.f32 0.0, %v1572
    %v1574 = vpop.f32.mrb[0].mxu0
    %1575 = vmatprep.mubr.bf16.mxu0 0
    %1576 = vmatmul.mubr.bf16.gmra.mrb[0].mxu0 %v1294
    %v1577 = vpop.f32.mrb[0].mxu0
    %v1578 = vadd.f32 0.0, %v1577
    %v1579 = vpop.f32.mrb[0].mxu0
    %v1580 = vpop.f32.mrb[0].mxu0
    %v1581 = vadd.f32 0.0, %v1580
    %v1582 = vpop.f32.mrb[0].mxu0
    %1583 = vmatprep.mubr.bf16.mxu0 0
    %1584 = vmatmul.mubr.bf16.gmra.mrb[0].mxu0 %v1297
    %v1585 = vpop.f32.mrb[0].mxu0
    %v1586 = vadd.f32 0.0, %v1585
    %v1587 = vpop.f32.mrb[0].mxu0
    %v1588 = vpop.f32.mrb[0].mxu0
    %v1589 = vadd.f32 0.0, %v1588
    %v1590 = vpop.f32.mrb[0].mxu0
    %1591 = vmatprep.mubr.bf16.mxu0 0
    %1592 = vmatmul.mubr.bf16.gmra.mrb[0].mxu0 %v1300
    %v1593 = vpop.f32.mrb[0].mxu0
    %v1594 = vadd.f32 0.0, %v1593
    %v1595 = vpop.f32.mrb[0].mxu0
    %v1596 = vpop.f32.mrb[0].mxu0
    %v1597 = vadd.f32 0.0, %v1596
    %v1598 = vpop.f32.mrb[0].mxu0
    %1599 = vmatprep.mubr.bf16.mxu0 0
    %1600 = vmatmul.mubr.bf16.gmra.mrb[0].mxu0 %v1303
    %v1601 = vpop.f32.mrb[0].mxu0
    %v1602 = vadd.f32 0.0, %v1601
    %v1603 = vpop.f32.mrb[0].mxu0
    %v1604 = vpop.f32.mrb[0].mxu0
    %v1605 = vadd.f32 0.0, %v1604
    %v1606 = vpop.f32.mrb[0].mxu0
    %1607 = vmatprep.mubr.bf16.mxu0 0
    %1608 = vmatmul.mubr.bf16.gmra.mrb[0].mxu0 %v1306
    %v1609 = vpop.f32.mrb[0].mxu0
    %v1610 = vadd.f32 0.0, %v1609
    %v1611 = vpop.f32.mrb[0].mxu0
    %v1612 = vpop.f32.mrb[0].mxu0
    %v1613 = vadd.f32 0.0, %v1612
    %v1614 = vpop.f32.mrb[0].mxu0
    %1615 = vmatprep.mubr.bf16.mxu0 0
    %1616 = vmatmul.mubr.bf16.gmra.mrb[0].mxu0 %v1309
    %v1617 = vpop.f32.mrb[0].mxu0
    %v1618 = vadd.f32 0.0, %v1617
    %v1619 = vpop.f32.mrb[0].mxu0
    %v1620 = vpop.f32.mrb[0].mxu0
    %v1621 = vadd.f32 0.0, %v1620
    %v1622 = vpop.f32.mrb[0].mxu0
    %1623 = vmatprep.mubr.bf16.mxu0 0
    %1624 = vmatmul.mubr.bf16.gmra.mrb[0].mxu0 %v1312
    %v1625 = vpop.f32.mrb[0].mxu0
    %v1626 = vadd.f32 0.0, %v1625
    %v1627 = vpop.f32.mrb[0].mxu0
    %v1628 = vpop.f32.mrb[0].mxu0
    %v1629 = vadd.f32 0.0, %v1628
    %v1630 = vpop.f32.mrb[0].mxu0
    %1631 = vmatprep.mubr.bf16.mxu0 0
    %1632 = vmatmul.mubr.bf16.gmra.mrb[0].mxu0 %v1315
    %v1633 = vpop.f32.mrb[0].mxu0
    %v1634 = vadd.f32 0.0, %v1633
    %v1635 = vpop.f32.mrb[0].mxu0
    %v1636 = vpop.f32.mrb[0].mxu0
    %v1637 = vadd.f32 0.0, %v1636
    %v1638 = vpop.f32.mrb[0].mxu0
    %1639 = vmatprep.mubr.bf16.mxu0 0
    %1640 = vmatmul.mubr.bf16.gmra.mrb[0].mxu0 %v1318
    %v1641 = vpop.f32.mrb[0].mxu0
    %v1642 = vadd.f32 0.0, %v1641
    %v1643 = vpop.f32.mrb[0].mxu0
    %v1644 = vpop.f32.mrb[0].mxu0
    %v1645 = vadd.f32 0.0, %v1644
    %v1646 = vpop.f32.mrb[0].mxu0
    %1647 = vmatprep.mubr.bf16.mxu0 0
    %1648 = vmatmul.mubr.bf16.gmra.mrb[0].mxu0 %v1321
    %v1649 = vpop.f32.mrb[0].mxu0
    %v1650 = vadd.f32 0.0, %v1649
    %v1651 = vpop.f32.mrb[0].mxu0
    %v1652 = vpop.f32.mrb[0].mxu0
    %v1653 = vadd.f32 0.0, %v1652
    %v1654 = vpop.f32.mrb[0].mxu0
    %1655 = vmatprep.mubr.bf16.mxu0 0
    %1656 = vmatmul.mubr.bf16.gmra.mrb[0].mxu0 %v1324
    %v1657 = vpop.f32.mrb[0].mxu0
    %v1658 = vadd.f32 0.0, %v1657
    %v1659 = vpop.f32.mrb[0].mxu0
    %v1660 = vpop.f32.mrb[0].mxu0
    %v1661 = vadd.f32 0.0, %v1660
    %v1662 = vpop.f32.mrb[0].mxu0
    %1663 = vmatprep.mubr.bf16.mxu0 0
    %1664 = vmatmul.mubr.bf16.gmra.mrb[0].mxu0 %v1327
    %v1665 = vpop.f32.mrb[0].mxu0
    %v1666 = vadd.f32 0.0, %v1665
    %v1667 = vpop.f32.mrb[0].mxu0
    %v1668 = vpop.f32.mrb[0].mxu0
    %v1669 = vadd.f32 0.0, %v1668
    %v1670 = vpop.f32.mrb[0].mxu0
    %1671 = vmatprep.mubr.bf16.mxu0 0
    %1672 = vmatmul.mubr.bf16.gmra.mrb[0].mxu0 %v1330
    %v1673 = vpop.f32.mrb[0].mxu0
    %v1674 = vadd.f32 0.0, %v1673
    %v1675 = vpop.f32.mrb[0].mxu0
    %v1676 = vpop.f32.mrb[0].mxu0
    %v1677 = vadd.f32 0.0, %v1676
    %v1678 = vpop.f32.mrb[0].mxu0
    %1679 = vmatprep.mubr.bf16.mxu0 0
    %1680 = vmatmul.mubr.bf16.gmra.mrb[0].mxu0 %v1333
    %v1681 = vpop.f32.mrb[0].mxu0
    %v1682 = vadd.f32 0.0, %v1681
    %v1683 = vpop.f32.mrb[0].mxu0
    %v1684 = vpop.f32.mrb[0].mxu0
    %v1685 = vadd.f32 0.0, %v1684
    %v1686 = vpop.f32.mrb[0].mxu0
    %1687 = vdwg.mxu0
    %v1688 = vadd.f32 %v897, %v1370
    %v1689 = vadd.f32 %v900, %v1373
    %v1690 = vadd.f32 %v905, %v1378
    %v1691 = vadd.f32 %v908, %v1381
    %v1692 = vadd.f32 %v913, %v1386
    %v1693 = vadd.f32 %v916, %v1389
    %v1694 = vadd.f32 %v921, %v1394
    %v1695 = vadd.f32 %v924, %v1397
    %v1696 = vadd.f32 %v929, %v1402
    %v1697 = vadd.f32 %v932, %v1405
    %v1698 = vadd.f32 %v937, %v1410
    %v1699 = vadd.f32 %v940, %v1413
    %v1700 = vadd.f32 %v945, %v1418
    %v1701 = vadd.f32 %v948, %v1421
    %v1702 = vadd.f32 %v953, %v1426
    %v1703 = vadd.f32 %v956, %v1429
    %v1704 = vadd.f32 %v961, %v1434
    %v1705 = vadd.f32 %v964, %v1437
    %v1706 = vadd.f32 %v969, %v1442
    %v1707 = vadd.f32 %v972, %v1445
    %v1708 = vadd.f32 %v977, %v1450
    %v1709 = vadd.f32 %v980, %v1453
    %v1710 = vadd.f32 %v985, %v1458
    %v1711 = vadd.f32 %v988, %v1461
    %v1712 = vadd.f32 %v993, %v1466
    %v1713 = vadd.f32 %v996, %v1469
    %v1714 = vadd.f32 %v1001, %v1474
    %v1715 = vadd.f32 %v1004, %v1477
    %v1716 = vadd.f32 %v1009, %v1482
    %v1717 = vadd.f32 %v1012, %v1485
    %v1718 = vadd.f32 %v1017, %v1490
    %v1719 = vadd.f32 %v1020, %v1493
    %v1720 = vadd.f32 %v1025, %v1498
    %v1721 = vadd.f32 %v1028, %v1501
    %v1722 = vadd.f32 %v1033, %v1506
    %v1723 = vadd.f32 %v1036, %v1509
    %v1724 = vadd.f32 %v1041, %v1514
    %v1725 = vadd.f32 %v1044, %v1517
    %v1726 = vadd.f32 %v1049, %v1522
    %v1727 = vadd.f32 %v1052, %v1525
    %v1728 = vadd.f32 %v1057, %v1530
    %v1729 = vadd.f32 %v1060, %v1533
    %v1730 = vadd.f32 %v1065, %v1538
    %v1731 = vadd.f32 %v1068, %v1541
    %v1732 = vadd.f32 %v1073, %v1546
    %v1733 = vadd.f32 %v1076, %v1549
    %v1734 = vadd.f32 %v1081, %v1554
    %v1735 = vadd.f32 %v1084, %v1557
    %v1736 = vadd.f32 %v1089, %v1562
    %v1737 = vadd.f32 %v1092, %v1565
    %v1738 = vadd.f32 %v1097, %v1570
    %v1739 = vadd.f32 %v1100, %v1573
    %v1740 = vadd.f32 %v1105, %v1578
    %v1741 = vadd.f32 %v1108, %v1581
    %v1742 = vadd.f32 %v1113, %v1586
    %v1743 = vadd.f32 %v1116, %v1589
    %v1744 = vadd.f32 %v1121, %v1594
    %v1745 = vadd.f32 %v1124, %v1597
    %v1746 = vadd.f32 %v1129, %v1602
    %v1747 = vadd.f32 %v1132, %v1605
    %v1748 = vadd.f32 %v1137, %v1610
    %v1749 = vadd.f32 %v1140, %v1613
    %v1750 = vadd.f32 %v1145, %v1618
    %v1751 = vadd.f32 %v1148, %v1621
    %v1752 = vadd.f32 %v1153, %v1626
    %v1753 = vadd.f32 %v1156, %v1629
    %v1754 = vadd.f32 %v1161, %v1634
    %v1755 = vadd.f32 %v1164, %v1637
    %v1756 = vadd.f32 %v1169, %v1642
    %v1757 = vadd.f32 %v1172, %v1645
    %v1758 = vadd.f32 %v1177, %v1650
    %v1759 = vadd.f32 %v1180, %v1653
    %v1760 = vadd.f32 %v1185, %v1658
    %v1761 = vadd.f32 %v1188, %v1661
    %v1762 = vadd.f32 %v1193, %v1666
    %v1763 = vadd.f32 %v1196, %v1669
    %v1764 = vadd.f32 %v1201, %v1674
    %v1765 = vadd.f32 %v1204, %v1677
    %v1766 = vadd.f32 %v1209, %v1682
    %v1767 = vadd.f32 %v1212, %v1685
    %v1768 = vld [vmem:[#allocation7] sm:$0xff]
    %v1769 = vld [vmem:[#allocation7 + $0x8] sm:$0xff]
    %v1770 = vld [vmem:[#allocation7 + $0x10] sm:$0xff]
    %v1771 = vld [vmem:[#allocation7 + $0x18] sm:$0xff]
    %v1772 = vld [vmem:[#allocation7 + $0x20] sm:$0xff]
    %v1773 = vld [vmem:[#allocation7 + $0x28] sm:$0xff]
    %v1774 = vld [vmem:[#allocation7 + $0x30] sm:$0xff]
    %v1775 = vld [vmem:[#allocation7 + $0x38] sm:$0xff]
    %v1776 = vld [vmem:[#allocation7 + $0x40] sm:$0xff]
    %v1777 = vld [vmem:[#allocation7 + $0x48] sm:$0xff]
    %v1778 = vld [vmem:[#allocation7 + $0x50] sm:$0xff]
    %v1779 = vld [vmem:[#allocation7 + $0x58] sm:$0xff]
    %v1780 = vld [vmem:[#allocation7 + $0x60] sm:$0xff]
    %v1781 = vld [vmem:[#allocation7 + $0x68] sm:$0xff]
    %v1782 = vld [vmem:[#allocation7 + $0x70] sm:$0xff]
    %v1783 = vld [vmem:[#allocation7 + $0x78] sm:$0xff]
    %v1784 = vpack.c.bf16 %v1769, %v1768
    %v1785 = vpack.c.bf16 %v1771, %v1770
    %v1786 = vpack.c.bf16 %v1773, %v1772
    %v1787 = vpack.c.bf16 %v1775, %v1774
    %v1788 = vpack.c.bf16 %v1777, %v1776
    %v1789 = vpack.c.bf16 %v1779, %v1778
    %v1790 = vpack.c.bf16 %v1781, %v1780
    %v1791 = vpack.c.bf16 %v1783, %v1782
    %v1792 = vunpack.c.l.bf16 %v1784
    %v1793 = vunpack.c.h.bf16 %v1784
    %v1794 = vunpack.c.l.bf16 %v1785
    %v1795 = vunpack.c.h.bf16 %v1785
    %v1796 = vunpack.c.l.bf16 %v1786
    %v1797 = vunpack.c.h.bf16 %v1786
    %v1798 = vunpack.c.l.bf16 %v1787
    %v1799 = vunpack.c.h.bf16 %v1787
    %v1800 = vunpack.c.l.bf16 %v1788
    %v1801 = vunpack.c.h.bf16 %v1788
    %v1802 = vunpack.c.l.bf16 %v1789
    %v1803 = vunpack.c.h.bf16 %v1789
    %v1804 = vunpack.c.l.bf16 %v1790
    %v1805 = vunpack.c.h.bf16 %v1790
    %v1806 = vunpack.c.l.bf16 %v1791
    %v1807 = vunpack.c.h.bf16 %v1791
    %v1808 = vsub.f32 %v1768, %v1792
    %v1809 = vsub.f32 %v1769, %v1793
    %v1810 = vsub.f32 %v1770, %v1794
    %v1811 = vsub.f32 %v1771, %v1795
    %v1812 = vsub.f32 %v1772, %v1796
    %v1813 = vsub.f32 %v1773, %v1797
    %v1814 = vsub.f32 %v1774, %v1798
    %v1815 = vsub.f32 %v1775, %v1799
    %v1816 = vsub.f32 %v1776, %v1800
    %v1817 = vsub.f32 %v1777, %v1801
    %v1818 = vsub.f32 %v1778, %v1802
    %v1819 = vsub.f32 %v1779, %v1803
    %v1820 = vsub.f32 %v1780, %v1804
    %v1821 = vsub.f32 %v1781, %v1805
    %v1822 = vsub.f32 %v1782, %v1806
    %v1823 = vsub.f32 %v1783, %v1807
    %v1824 = vpack.c.bf16 %v1809, %v1808
    %v1825 = vpack.c.bf16 %v1811, %v1810
    %v1826 = vpack.c.bf16 %v1813, %v1812
    %v1827 = vpack.c.bf16 %v1815, %v1814
    %v1828 = vpack.c.bf16 %v1817, %v1816
    %v1829 = vpack.c.bf16 %v1819, %v1818
    %v1830 = vpack.c.bf16 %v1821, %v1820
    %v1831 = vpack.c.bf16 %v1823, %v1822
    %v1832 = vpack.c.bf16 %v1689, %v1688
    %v1833 = vpack.c.bf16 %v1691, %v1690
    %v1834 = vpack.c.bf16 %v1693, %v1692
    %v1835 = vpack.c.bf16 %v1695, %v1694
    %v1836 = vpack.c.bf16 %v1697, %v1696
    %v1837 = vpack.c.bf16 %v1699, %v1698
    %v1838 = vpack.c.bf16 %v1701, %v1700
    %v1839 = vpack.c.bf16 %v1703, %v1702
    %v1840 = vunpack.c.l.bf16 %v1832
    %v1841 = vunpack.c.h.bf16 %v1832
    %v1842 = vunpack.c.l.bf16 %v1833
    %v1843 = vunpack.c.h.bf16 %v1833
    %v1844 = vunpack.c.l.bf16 %v1834
    %v1845 = vunpack.c.h.bf16 %v1834
    %v1846 = vunpack.c.l.bf16 %v1835
    %v1847 = vunpack.c.h.bf16 %v1835
    %v1848 = vunpack.c.l.bf16 %v1836
    %v1849 = vunpack.c.h.bf16 %v1836
    %v1850 = vunpack.c.l.bf16 %v1837
    %v1851 = vunpack.c.h.bf16 %v1837
    %v1852 = vunpack.c.l.bf16 %v1838
    %v1853 = vunpack.c.h.bf16 %v1838
    %v1854 = vunpack.c.l.bf16 %v1839
    %v1855 = vunpack.c.h.bf16 %v1839
    %v1856 = vsub.f32 %v1688, %v1840
    %v1857 = vsub.f32 %v1689, %v1841
    %v1858 = vsub.f32 %v1690, %v1842
    %v1859 = vsub.f32 %v1691, %v1843
    %v1860 = vsub.f32 %v1692, %v1844
    %v1861 = vsub.f32 %v1693, %v1845
    %v1862 = vsub.f32 %v1694, %v1846
    %v1863 = vsub.f32 %v1695, %v1847
    %v1864 = vsub.f32 %v1696, %v1848
    %v1865 = vsub.f32 %v1697, %v1849
    %v1866 = vsub.f32 %v1698, %v1850
    %v1867 = vsub.f32 %v1699, %v1851
    %v1868 = vsub.f32 %v1700, %v1852
    %v1869 = vsub.f32 %v1701, %v1853
    %v1870 = vsub.f32 %v1702, %v1854
    %v1871 = vsub.f32 %v1703, %v1855
    %v1872 = vpack.c.bf16 %v1857, %v1856
    %v1873 = vpack.c.bf16 %v1859, %v1858
    %v1874 = vpack.c.bf16 %v1861, %v1860
    %v1875 = vpack.c.bf16 %v1863, %v1862
    %v1876 = vpack.c.bf16 %v1865, %v1864
    %v1877 = vpack.c.bf16 %v1867, %v1866
    %v1878 = vpack.c.bf16 %v1869, %v1868
    %v1879 = vpack.c.bf16 %v1871, %v1870
    %1880 = vmatprep.subr.bf16.mxu0 0
    %1881 = vmatpush1.bf16.msra.mxu0 %v1872
    %1882 = vmatprep.subr.bf16.mxu0 0
    %1883 = vmatpush1.bf16.msra.mxu0 %v1873
    %1884 = vmatprep.subr.bf16.mxu0 0
    %1885 = vmatpush1.bf16.msra.mxu0 %v1874
    %1886 = vmatprep.subr.bf16.mxu0 0
    %1887 = vmatpush1.bf16.msra.mxu0 %v1875
    %1888 = vmatprep.subr.bf16.mxu0 0
    %1889 = vmatpush1.bf16.msra.mxu0 %v1876
    %1890 = vmatprep.subr.bf16.mxu0 0
    %1891 = vmatpush1.bf16.msra.mxu0 %v1877
    %1892 = vmatprep.subr.bf16.mxu0 0
    %1893 = vmatpush1.bf16.msra.mxu0 %v1878
    %1894 = vmatprep.subr.bf16.mxu0 0
    %1895 = vmatpush1.bf16.msra.mxu0 %v1879
    %1896 = vmatprep.subr.bf16.mxu0 0
    %1897 = vmatpush1.bf16.msra.mxu0 0
    %1898 = vmatprep.subr.bf16.mxu0 0
    %1899 = vmatpush1.bf16.msra.mxu0 0
    %1900 = vmatprep.subr.bf16.mxu0 0
    %1901 = vmatpush1.bf16.msra.mxu0 0
    %1902 = vmatprep.subr.bf16.mxu0 0
    %1903 = vmatpush1.bf16.msra.mxu0 0
    %1904 = vmatprep.subr.bf16.mxu0 0
    %1905 = vmatpush1.bf16.msra.mxu0 0
    %1906 = vmatprep.subr.bf16.mxu0 0
    %1907 = vmatpush1.bf16.msra.mxu0 0
    %1908 = vmatprep.subr.bf16.mxu0 0
    %1909 = vmatpush1.bf16.msra.mxu0 0
    %1910 = vmatprep.subr.bf16.mxu0 0
    %1911 = vmatpush1.bf16.msra.mxu0 0
    %1912 = vmatprep.mubr.bf16.mxu0 0
    %1913 = vmatmul.mubr.bf16.gmra.mrb[0].mxu0 %v1784
    %v1914 = vpop.f32.mrb[0].mxu0
    %v1915 = vadd.f32 0.0, %v1914
    %v1916 = vpop.f32.mrb[0].mxu0
    %v1917 = vpop.f32.mrb[0].mxu0
    %v1918 = vadd.f32 0.0, %v1917
    %v1919 = vpop.f32.mrb[0].mxu0
    %1920 = vmatprep.mubr.bf16.mxu0 0
    %1921 = vmatmul.mubr.bf16.gmra.mrb[0].mxu0 %v1785
    %v1922 = vpop.f32.mrb[0].mxu0
    %v1923 = vadd.f32 0.0, %v1922
    %v1924 = vpop.f32.mrb[0].mxu0
    %v1925 = vpop.f32.mrb[0].mxu0
    %v1926 = vadd.f32 0.0, %v1925
    %v1927 = vpop.f32.mrb[0].mxu0
    %1928 = vmatprep.mubr.bf16.mxu0 0
    %1929 = vmatmul.mubr.bf16.gmra.mrb[0].mxu0 %v1786
    %v1930 = vpop.f32.mrb[0].mxu0
    %v1931 = vadd.f32 0.0, %v1930
    %v1932 = vpop.f32.mrb[0].mxu0
    %v1933 = vpop.f32.mrb[0].mxu0
    %v1934 = vadd.f32 0.0, %v1933
    %v1935 = vpop.f32.mrb[0].mxu0
    %1936 = vmatprep.mubr.bf16.mxu0 0
    %1937 = vmatmul.mubr.bf16.gmra.mrb[0].mxu0 %v1787
    %v1938 = vpop.f32.mrb[0].mxu0
    %v1939 = vadd.f32 0.0, %v1938
    %v1940 = vpop.f32.mrb[0].mxu0
    %v1941 = vpop.f32.mrb[0].mxu0
    %v1942 = vadd.f32 0.0, %v1941
    %v1943 = vpop.f32.mrb[0].mxu0
    %1944 = vmatprep.mubr.bf16.mxu0 0
    %1945 = vmatmul.mubr.bf16.gmra.mrb[0].mxu0 %v1788
    %v1946 = vpop.f32.mrb[0].mxu0
    %v1947 = vadd.f32 0.0, %v1946
    %v1948 = vpop.f32.mrb[0].mxu0
    %v1949 = vpop.f32.mrb[0].mxu0
    %v1950 = vadd.f32 0.0, %v1949
    %v1951 = vpop.f32.mrb[0].mxu0
    %1952 = vmatprep.mubr.bf16.mxu0 0
    %1953 = vmatmul.mubr.bf16.gmra.mrb[0].mxu0 %v1789
    %v1954 = vpop.f32.mrb[0].mxu0
    %v1955 = vadd.f32 0.0, %v1954
    %v1956 = vpop.f32.mrb[0].mxu0
    %v1957 = vpop.f32.mrb[0].mxu0
    %v1958 = vadd.f32 0.0, %v1957
    %v1959 = vpop.f32.mrb[0].mxu0
    %1960 = vmatprep.mubr.bf16.mxu0 0
    %1961 = vmatmul.mubr.bf16.gmra.mrb[0].mxu0 %v1790
    %v1962 = vpop.f32.mrb[0].mxu0
    %v1963 = vadd.f32 0.0, %v1962
    %v1964 = vpop.f32.mrb[0].mxu0
    %v1965 = vpop.f32.mrb[0].mxu0
    %v1966 = vadd.f32 0.0, %v1965
    %v1967 = vpop.f32.mrb[0].mxu0
    %1968 = vmatprep.mubr.bf16.mxu0 0
    %1969 = vmatmul.mubr.bf16.gmra.mrb[0].mxu0 %v1791
    %v1970 = vpop.f32.mrb[0].mxu0
    %v1971 = vadd.f32 0.0, %v1970
    %v1972 = vpop.f32.mrb[0].mxu0
    %v1973 = vpop.f32.mrb[0].mxu0
    %v1974 = vadd.f32 0.0, %v1973
    %v1975 = vpop.f32.mrb[0].mxu0
    %1976 = vdwg.mxu0
    %1977 = vmatprep.subr.bf16.mxu0 0
    %1978 = vmatpush1.bf16.msra.mxu0 %v1832
    %1979 = vmatprep.subr.bf16.mxu0 0
    %1980 = vmatpush1.bf16.msra.mxu0 %v1833
    %1981 = vmatprep.subr.bf16.mxu0 0
    %1982 = vmatpush1.bf16.msra.mxu0 %v1834
    %1983 = vmatprep.subr.bf16.mxu0 0
    %1984 = vmatpush1.bf16.msra.mxu0 %v1835
    %1985 = vmatprep.subr.bf16.mxu0 0
    %1986 = vmatpush1.bf16.msra.mxu0 %v1836
    %1987 = vmatprep.subr.bf16.mxu0 0
    %1988 = vmatpush1.bf16.msra.mxu0 %v1837
    %1989 = vmatprep.subr.bf16.mxu0 0
    %1990 = vmatpush1.bf16.msra.mxu0 %v1838
    %1991 = vmatprep.subr.bf16.mxu0 0
    %1992 = vmatpush1.bf16.msra.mxu0 %v1839
    %1993 = vmatprep.subr.bf16.mxu0 0
    %1994 = vmatpush1.bf16.msra.mxu0 0
    %1995 = vmatprep.subr.bf16.mxu0 0
    %1996 = vmatpush1.bf16.msra.mxu0 0
    %1997 = vmatprep.subr.bf16.mxu0 0
    %1998 = vmatpush1.bf16.msra.mxu0 0
    %1999 = vmatprep.subr.bf16.mxu0 0
    %2000 = vmatpush1.bf16.msra.mxu0 0
    %2001 = vmatprep.subr.bf16.mxu0 0
    %2002 = vmatpush1.bf16.msra.mxu0 0
    %2003 = vmatprep.subr.bf16.mxu0 0
    %2004 = vmatpush1.bf16.msra.mxu0 0
    %2005 = vmatprep.subr.bf16.mxu0 0
    %2006 = vmatpush1.bf16.msra.mxu0 0
    %2007 = vmatprep.subr.bf16.mxu0 0
    %2008 = vmatpush1.bf16.msra.mxu0 0
    %2009 = vmatprep.mubr.bf16.mxu0 0
    %2010 = vmatmul.mubr.bf16.gmra.mrb[0].mxu0 %v1784
    %v2011 = vpop.f32.mrb[0].mxu0
    %v2012 = vadd.f32 %v1915, %v2011
    %v2013 = vpop.f32.mrb[0].mxu0
    %v2014 = vpop.f32.mrb[0].mxu0
    %v2015 = vadd.f32 %v1918, %v2014
    %v2016 = vpop.f32.mrb[0].mxu0
    %2017 = vmatprep.mubr.bf16.mxu0 0
    %2018 = vmatmul.mubr.bf16.gmra.mrb[0].mxu0 %v1785
    %v2019 = vpop.f32.mrb[0].mxu0
    %v2020 = vadd.f32 %v1923, %v2019
    %v2021 = vpop.f32.mrb[0].mxu0
    %v2022 = vpop.f32.mrb[0].mxu0
    %v2023 = vadd.f32 %v1926, %v2022
    %v2024 = vpop.f32.mrb[0].mxu0
    %2025 = vmatprep.mubr.bf16.mxu0 0
    %2026 = vmatmul.mubr.bf16.gmra.mrb[0].mxu0 %v1786
    %v2027 = vpop.f32.mrb[0].mxu0
    %v2028 = vadd.f32 %v1931, %v2027
    %v2029 = vpop.f32.mrb[0].mxu0
    %v2030 = vpop.f32.mrb[0].mxu0
    %v2031 = vadd.f32 %v1934, %v2030
    %v2032 = vpop.f32.mrb[0].mxu0
    %2033 = vmatprep.mubr.bf16.mxu0 0
    %2034 = vmatmul.mubr.bf16.gmra.mrb[0].mxu0 %v1787
    %v2035 = vpop.f32.mrb[0].mxu0
    %v2036 = vadd.f32 %v1939, %v2035
    %v2037 = vpop.f32.mrb[0].mxu0
    %v2038 = vpop.f32.mrb[0].mxu0
    %v2039 = vadd.f32 %v1942, %v2038
    %v2040 = vpop.f32.mrb[0].mxu0
    %2041 = vmatprep.mubr.bf16.mxu0 0
    %2042 = vmatmul.mubr.bf16.gmra.mrb[0].mxu0 %v1788
    %v2043 = vpop.f32.mrb[0].mxu0
    %v2044 = vadd.f32 %v1947, %v2043
    %v2045 = vpop.f32.mrb[0].mxu0
    %v2046 = vpop.f32.mrb[0].mxu0
    %v2047 = vadd.f32 %v1950, %v2046
    %v2048 = vpop.f32.mrb[0].mxu0
    %2049 = vmatprep.mubr.bf16.mxu0 0
    %2050 = vmatmul.mubr.bf16.gmra.mrb[0].mxu0 %v1789
    %v2051 = vpop.f32.mrb[0].mxu0
    %v2052 = vadd.f32 %v1955, %v2051
    %v2053 = vpop.f32.mrb[0].mxu0
    %v2054 = vpop.f32.mrb[0].mxu0
    %v2055 = vadd.f32 %v1958, %v2054
    %v2056 = vpop.f32.mrb[0].mxu0
    %2057 = vmatprep.mubr.bf16.mxu0 0
    %2058 = vmatmul.mubr.bf16.gmra.mrb[0].mxu0 %v1790
    %v2059 = vpop.f32.mrb[0].mxu0
    %v2060 = vadd.f32 %v1963, %v2059
    %v2061 = vpop.f32.mrb[0].mxu0
    %v2062 = vpop.f32.mrb[0].mxu0
    %v2063 = vadd.f32 %v1966, %v2062
    %v2064 = vpop.f32.mrb[0].mxu0
    %2065 = vmatprep.mubr.bf16.mxu0 0
    %2066 = vmatmul.mubr.bf16.gmra.mrb[0].mxu0 %v1791
    %v2067 = vpop.f32.mrb[0].mxu0
    %v2068 = vadd.f32 %v1971, %v2067
    %v2069 = vpop.f32.mrb[0].mxu0
    %v2070 = vpop.f32.mrb[0].mxu0
    %v2071 = vadd.f32 %v1974, %v2070
    %v2072 = vpop.f32.mrb[0].mxu0
    %2073 = vdwg.mxu0
    %2074 = vmatprep.subr.bf16.mxu0 0
    %2075 = vmatpush1.bf16.msra.mxu0 %v1832
    %2076 = vmatprep.subr.bf16.mxu0 0
    %2077 = vmatpush1.bf16.msra.mxu0 %v1833
    %2078 = vmatprep.subr.bf16.mxu0 0
    %2079 = vmatpush1.bf16.msra.mxu0 %v1834
    %2080 = vmatprep.subr.bf16.mxu0 0
    %2081 = vmatpush1.bf16.msra.mxu0 %v1835
    %2082 = vmatprep.subr.bf16.mxu0 0
    %2083 = vmatpush1.bf16.msra.mxu0 %v1836
    %2084 = vmatprep.subr.bf16.mxu0 0
    %2085 = vmatpush1.bf16.msra.mxu0 %v1837
    %2086 = vmatprep.subr.bf16.mxu0 0
    %2087 = vmatpush1.bf16.msra.mxu0 %v1838
    %2088 = vmatprep.subr.bf16.mxu0 0
    %2089 = vmatpush1.bf16.msra.mxu0 %v1839
    %2090 = vmatprep.subr.bf16.mxu0 0
    %2091 = vmatpush1.bf16.msra.mxu0 0
    %2092 = vmatprep.subr.bf16.mxu0 0
    %2093 = vmatpush1.bf16.msra.mxu0 0
    %2094 = vmatprep.subr.bf16.mxu0 0
    %2095 = vmatpush1.bf16.msra.mxu0 0
    %2096 = vmatprep.subr.bf16.mxu0 0
    %2097 = vmatpush1.bf16.msra.mxu0 0
    %2098 = vmatprep.subr.bf16.mxu0 0
    %2099 = vmatpush1.bf16.msra.mxu0 0
    %2100 = vmatprep.subr.bf16.mxu0 0
    %2101 = vmatpush1.bf16.msra.mxu0 0
    %2102 = vmatprep.subr.bf16.mxu0 0
    %2103 = vmatpush1.bf16.msra.mxu0 0
    %2104 = vmatprep.subr.bf16.mxu0 0
    %2105 = vmatpush1.bf16.msra.mxu0 0
    %2106 = vmatprep.mubr.bf16.mxu0 0
    %2107 = vmatmul.mubr.bf16.gmra.mrb[0].mxu0 %v1824
    %v2108 = vpop.f32.mrb[0].mxu0
    %v2109 = vadd.f32 0.0, %v2108
    %v2110 = vpop.f32.mrb[0].mxu0
    %v2111 = vpop.f32.mrb[0].mxu0
    %v2112 = vadd.f32 0.0, %v2111
    %v2113 = vpop.f32.mrb[0].mxu0
    %2114 = vmatprep.mubr.bf16.mxu0 0
    %2115 = vmatmul.mubr.bf16.gmra.mrb[0].mxu0 %v1825
    %v2116 = vpop.f32.mrb[0].mxu0
    %v2117 = vadd.f32 0.0, %v2116
    %v2118 = vpop.f32.mrb[0].mxu0
    %v2119 = vpop.f32.mrb[0].mxu0
    %v2120 = vadd.f32 0.0, %v2119
    %v2121 = vpop.f32.mrb[0].mxu0
    %2122 = vmatprep.mubr.bf16.mxu0 0
    %2123 = vmatmul.mubr.bf16.gmra.mrb[0].mxu0 %v1826
    %v2124 = vpop.f32.mrb[0].mxu0
    %v2125 = vadd.f32 0.0, %v2124
    %v2126 = vpop.f32.mrb[0].mxu0
    %v2127 = vpop.f32.mrb[0].mxu0
    %v2128 = vadd.f32 0.0, %v2127
    %v2129 = vpop.f32.mrb[0].mxu0
    %2130 = vmatprep.mubr.bf16.mxu0 0
    %2131 = vmatmul.mubr.bf16.gmra.mrb[0].mxu0 %v1827
    %v2132 = vpop.f32.mrb[0].mxu0
    %v2133 = vadd.f32 0.0, %v2132
    %v2134 = vpop.f32.mrb[0].mxu0
    %v2135 = vpop.f32.mrb[0].mxu0
    %v2136 = vadd.f32 0.0, %v2135
    %v2137 = vpop.f32.mrb[0].mxu0
    %2138 = vmatprep.mubr.bf16.mxu0 0
    %2139 = vmatmul.mubr.bf16.gmra.mrb[0].mxu0 %v1828
    %v2140 = vpop.f32.mrb[0].mxu0
    %v2141 = vadd.f32 0.0, %v2140
    %v2142 = vpop.f32.mrb[0].mxu0
    %v2143 = vpop.f32.mrb[0].mxu0
    %v2144 = vadd.f32 0.0, %v2143
    %v2145 = vpop.f32.mrb[0].mxu0
    %2146 = vmatprep.mubr.bf16.mxu0 0
    %2147 = vmatmul.mubr.bf16.gmra.mrb[0].mxu0 %v1829
    %v2148 = vpop.f32.mrb[0].mxu0
    %v2149 = vadd.f32 0.0, %v2148
    %v2150 = vpop.f32.mrb[0].mxu0
    %v2151 = vpop.f32.mrb[0].mxu0
    %v2152 = vadd.f32 0.0, %v2151
    %v2153 = vpop.f32.mrb[0].mxu0
    %2154 = vmatprep.mubr.bf16.mxu0 0
    %2155 = vmatmul.mubr.bf16.gmra.mrb[0].mxu0 %v1830
    %v2156 = vpop.f32.mrb[0].mxu0
    %v2157 = vadd.f32 0.0, %v2156
    %v2158 = vpop.f32.mrb[0].mxu0
    %v2159 = vpop.f32.mrb[0].mxu0
    %v2160 = vadd.f32 0.0, %v2159
    %v2161 = vpop.f32.mrb[0].mxu0
    %2162 = vmatprep.mubr.bf16.mxu0 0
    %2163 = vmatmul.mubr.bf16.gmra.mrb[0].mxu0 %v1831
    %v2164 = vpop.f32.mrb[0].mxu0
    %v2165 = vadd.f32 0.0, %v2164
    %v2166 = vpop.f32.mrb[0].mxu0
    %v2167 = vpop.f32.mrb[0].mxu0
    %v2168 = vadd.f32 0.0, %v2167
    %v2169 = vpop.f32.mrb[0].mxu0
    %2170 = vdwg.mxu0
    %v2171 = vadd.f32 %v2012, %v2109
    %v2172 = vadd.f32 %v2015, %v2112
    %v2173 = vadd.f32 %v2020, %v2117
    %v2174 = vadd.f32 %v2023, %v2120
    %v2175 = vadd.f32 %v2028, %v2125
    %v2176 = vadd.f32 %v2031, %v2128
    %v2177 = vadd.f32 %v2036, %v2133
    %v2178 = vadd.f32 %v2039, %v2136
    %v2179 = vadd.f32 %v2044, %v2141
    %v2180 = vadd.f32 %v2047, %v2144
    %v2181 = vadd.f32 %v2052, %v2149
    %v2182 = vadd.f32 %v2055, %v2152
    %v2183 = vadd.f32 %v2060, %v2157
    %v2184 = vadd.f32 %v2063, %v2160
    %v2185 = vadd.f32 %v2068, %v2165
    %v2186 = vadd.f32 %v2071, %v2168
    %v2187 = vpack.c.bf16 %v1705, %v1704
    %v2188 = vpack.c.bf16 %v1707, %v1706
    %v2189 = vpack.c.bf16 %v1709, %v1708
    %v2190 = vpack.c.bf16 %v1711, %v1710
    %v2191 = vpack.c.bf16 %v1713, %v1712
    %v2192 = vpack.c.bf16 %v1715, %v1714
    %v2193 = vpack.c.bf16 %v1717, %v1716
    %v2194 = vpack.c.bf16 %v1719, %v1718
    %v2195 = vunpack.c.l.bf16 %v2187
    %v2196 = vunpack.c.h.bf16 %v2187
    %v2197 = vunpack.c.l.bf16 %v2188
    %v2198 = vunpack.c.h.bf16 %v2188
    %v2199 = vunpack.c.l.bf16 %v2189
    %v2200 = vunpack.c.h.bf16 %v2189
    %v2201 = vunpack.c.l.bf16 %v2190
    %v2202 = vunpack.c.h.bf16 %v2190
    %v2203 = vunpack.c.l.bf16 %v2191
    %v2204 = vunpack.c.h.bf16 %v2191
    %v2205 = vunpack.c.l.bf16 %v2192
    %v2206 = vunpack.c.h.bf16 %v2192
    %v2207 = vunpack.c.l.bf16 %v2193
    %v2208 = vunpack.c.h.bf16 %v2193
    %v2209 = vunpack.c.l.bf16 %v2194
    %v2210 = vunpack.c.h.bf16 %v2194
    %v2211 = vsub.f32 %v1704, %v2195
    %v2212 = vsub.f32 %v1705, %v2196
    %v2213 = vsub.f32 %v1706, %v2197
    %v2214 = vsub.f32 %v1707, %v2198
    %v2215 = vsub.f32 %v1708, %v2199
    %v2216 = vsub.f32 %v1709, %v2200
    %v2217 = vsub.f32 %v1710, %v2201
    %v2218 = vsub.f32 %v1711, %v2202
    %v2219 = vsub.f32 %v1712, %v2203
    %v2220 = vsub.f32 %v1713, %v2204
    %v2221 = vsub.f32 %v1714, %v2205
    %v2222 = vsub.f32 %v1715, %v2206
    %v2223 = vsub.f32 %v1716, %v2207
    %v2224 = vsub.f32 %v1717, %v2208
    %v2225 = vsub.f32 %v1718, %v2209
    %v2226 = vsub.f32 %v1719, %v2210
    %v2227 = vpack.c.bf16 %v2212, %v2211
    %v2228 = vpack.c.bf16 %v2214, %v2213
    %v2229 = vpack.c.bf16 %v2216, %v2215
    %v2230 = vpack.c.bf16 %v2218, %v2217
    %v2231 = vpack.c.bf16 %v2220, %v2219
    %v2232 = vpack.c.bf16 %v2222, %v2221
    %v2233 = vpack.c.bf16 %v2224, %v2223
    %v2234 = vpack.c.bf16 %v2226, %v2225
    %2235 = vmatprep.subr.bf16.mxu0 0
    %2236 = vmatpush1.bf16.msra.mxu0 %v2227
    %2237 = vmatprep.subr.bf16.mxu0 0
    %2238 = vmatpush1.bf16.msra.mxu0 %v2228
    %2239 = vmatprep.subr.bf16.mxu0 0
    %2240 = vmatpush1.bf16.msra.mxu0 %v2229
    %2241 = vmatprep.subr.bf16.mxu0 0
    %2242 = vmatpush1.bf16.msra.mxu0 %v2230
    %2243 = vmatprep.subr.bf16.mxu0 0
    %2244 = vmatpush1.bf16.msra.mxu0 %v2231
    %2245 = vmatprep.subr.bf16.mxu0 0
    %2246 = vmatpush1.bf16.msra.mxu0 %v2232
    %2247 = vmatprep.subr.bf16.mxu0 0
    %2248 = vmatpush1.bf16.msra.mxu0 %v2233
    %2249 = vmatprep.subr.bf16.mxu0 0
    %2250 = vmatpush1.bf16.msra.mxu0 %v2234
    %2251 = vmatprep.subr.bf16.mxu0 0
    %2252 = vmatpush1.bf16.msra.mxu0 0
    %2253 = vmatprep.subr.bf16.mxu0 0
    %2254 = vmatpush1.bf16.msra.mxu0 0
    %2255 = vmatprep.subr.bf16.mxu0 0
    %2256 = vmatpush1.bf16.msra.mxu0 0
    %2257 = vmatprep.subr.bf16.mxu0 0
    %2258 = vmatpush1.bf16.msra.mxu0 0
    %2259 = vmatprep.subr.bf16.mxu0 0
    %2260 = vmatpush1.bf16.msra.mxu0 0
    %2261 = vmatprep.subr.bf16.mxu0 0
    %2262 = vmatpush1.bf16.msra.mxu0 0
    %2263 = vmatprep.subr.bf16.mxu0 0
    %2264 = vmatpush1.bf16.msra.mxu0 0
    %2265 = vmatprep.subr.bf16.mxu0 0
    %2266 = vmatpush1.bf16.msra.mxu0 0
    %2267 = vmatprep.mubr.bf16.mxu0 0
    %2268 = vmatmul.mubr.bf16.gmra.mrb[0].mxu0 %v1784
    %v2269 = vpop.f32.mrb[0].mxu0
    %v2270 = vadd.f32 0.0, %v2269
    %v2271 = vpop.f32.mrb[0].mxu0
    %v2272 = vpop.f32.mrb[0].mxu0
    %v2273 = vadd.f32 0.0, %v2272
    %v2274 = vpop.f32.mrb[0].mxu0
    %2275 = vmatprep.mubr.bf16.mxu0 0
    %2276 = vmatmul.mubr.bf16.gmra.mrb[0].mxu0 %v1785
    %v2277 = vpop.f32.mrb[0].mxu0
    %v2278 = vadd.f32 0.0, %v2277
    %v2279 = vpop.f32.mrb[0].mxu0
    %v2280 = vpop.f32.mrb[0].mxu0
    %v2281 = vadd.f32 0.0, %v2280
    %v2282 = vpop.f32.mrb[0].mxu0
    %2283 = vmatprep.mubr.bf16.mxu0 0
    %2284 = vmatmul.mubr.bf16.gmra.mrb[0].mxu0 %v1786
    %v2285 = vpop.f32.mrb[0].mxu0
    %v2286 = vadd.f32 0.0, %v2285
    %v2287 = vpop.f32.mrb[0].mxu0
    %v2288 = vpop.f32.mrb[0].mxu0
    %v2289 = vadd.f32 0.0, %v2288
    %v2290 = vpop.f32.mrb[0].mxu0
    %2291 = vmatprep.mubr.bf16.mxu0 0
    %2292 = vmatmul.mubr.bf16.gmra.mrb[0].mxu0 %v1787
    %v2293 = vpop.f32.mrb[0].mxu0
    %v2294 = vadd.f32 0.0, %v2293
    %v2295 = vpop.f32.mrb[0].mxu0
    %v2296 = vpop.f32.mrb[0].mxu0
    %v2297 = vadd.f32 0.0, %v2296
    %v2298 = vpop.f32.mrb[0].mxu0
    %2299 = vmatprep.mubr.bf16.mxu0 0
    %2300 = vmatmul.mubr.bf16.gmra.mrb[0].mxu0 %v1788
    %v2301 = vpop.f32.mrb[0].mxu0
    %v2302 = vadd.f32 0.0, %v2301
    %v2303 = vpop.f32.mrb[0].mxu0
    %v2304 = vpop.f32.mrb[0].mxu0
    %v2305 = vadd.f32 0.0, %v2304
    %v2306 = vpop.f32.mrb[0].mxu0
    %2307 = vmatprep.mubr.bf16.mxu0 0
    %2308 = vmatmul.mubr.bf16.gmra.mrb[0].mxu0 %v1789
    %v2309 = vpop.f32.mrb[0].mxu0
    %v2310 = vadd.f32 0.0, %v2309
    %v2311 = vpop.f32.mrb[0].mxu0
    %v2312 = vpop.f32.mrb[0].mxu0
    %v2313 = vadd.f32 0.0, %v2312
    %v2314 = vpop.f32.mrb[0].mxu0
    %2315 = vmatprep.mubr.bf16.mxu0 0
    %2316 = vmatmul.mubr.bf16.gmra.mrb[0].mxu0 %v1790
    %v2317 = vpop.f32.mrb[0].mxu0
    %v2318 = vadd.f32 0.0, %v2317
    %v2319 = vpop.f32.mrb[0].mxu0
    %v2320 = vpop.f32.mrb[0].mxu0
    %v2321 = vadd.f32 0.0, %v2320
    %v2322 = vpop.f32.mrb[0].mxu0
    %2323 = vmatprep.mubr.bf16.mxu0 0
    %2324 = vmatmul.mubr.bf16.gmra.mrb[0].mxu0 %v1791
    %v2325 = vpop.f32.mrb[0].mxu0
    %v2326 = vadd.f32 0.0, %v2325
    %v2327 = vpop.f32.mrb[0].mxu0
    %v2328 = vpop.f32.mrb[0].mxu0
    %v2329 = vadd.f32 0.0, %v2328
    %v2330 = vpop.f32.mrb[0].mxu0
    %2331 = vdwg.mxu0
    %2332 = vmatprep.subr.bf16.mxu0 0
    %2333 = vmatpush1.bf16.msra.mxu0 %v2187
    %2334 = vmatprep.subr.bf16.mxu0 0
    %2335 = vmatpush1.bf16.msra.mxu0 %v2188
    %2336 = vmatprep.subr.bf16.mxu0 0
    %2337 = vmatpush1.bf16.msra.mxu0 %v2189
    %2338 = vmatprep.subr.bf16.mxu0 0
    %2339 = vmatpush1.bf16.msra.mxu0 %v2190
    %2340 = vmatprep.subr.bf16.mxu0 0
    %2341 = vmatpush1.bf16.msra.mxu0 %v2191
    %2342 = vmatprep.subr.bf16.mxu0 0
    %2343 = vmatpush1.bf16.msra.mxu0 %v2192
    %2344 = vmatprep.subr.bf16.mxu0 0
    %2345 = vmatpush1.bf16.msra.mxu0 %v2193
    %2346 = vmatprep.subr.bf16.mxu0 0
    %2347 = vmatpush1.bf16.msra.mxu0 %v2194
    %2348 = vmatprep.subr.bf16.mxu0 0
    %2349 = vmatpush1.bf16.msra.mxu0 0
    %2350 = vmatprep.subr.bf16.mxu0 0
    %2351 = vmatpush1.bf16.msra.mxu0 0
    %2352 = vmatprep.subr.bf16.mxu0 0
    %2353 = vmatpush1.bf16.msra.mxu0 0
    %2354 = vmatprep.subr.bf16.mxu0 0
    %2355 = vmatpush1.bf16.msra.mxu0 0
    %2356 = vmatprep.subr.bf16.mxu0 0
    %2357 = vmatpush1.bf16.msra.mxu0 0
    %2358 = vmatprep.subr.bf16.mxu0 0
    %2359 = vmatpush1.bf16.msra.mxu0 0
    %2360 = vmatprep.subr.bf16.mxu0 0
    %2361 = vmatpush1.bf16.msra.mxu0 0
    %2362 = vmatprep.subr.bf16.mxu0 0
    %2363 = vmatpush1.bf16.msra.mxu0 0
    %2364 = vmatprep.mubr.bf16.mxu0 0
    %2365 = vmatmul.mubr.bf16.gmra.mrb[0].mxu0 %v1784
    %v2366 = vpop.f32.mrb[0].mxu0
    %v2367 = vadd.f32 %v2270, %v2366
    %v2368 = vpop.f32.mrb[0].mxu0
    %v2369 = vpop.f32.mrb[0].mxu0
    %v2370 = vadd.f32 %v2273, %v2369
    %v2371 = vpop.f32.mrb[0].mxu0
    %2372 = vmatprep.mubr.bf16.mxu0 0
    %2373 = vmatmul.mubr.bf16.gmra.mrb[0].mxu0 %v1785
    %v2374 = vpop.f32.mrb[0].mxu0
    %v2375 = vadd.f32 %v2278, %v2374
    %v2376 = vpop.f32.mrb[0].mxu0
    %v2377 = vpop.f32.mrb[0].mxu0
    %v2378 = vadd.f32 %v2281, %v2377
    %v2379 = vpop.f32.mrb[0].mxu0
    %2380 = vmatprep.mubr.bf16.mxu0 0
    %2381 = vmatmul.mubr.bf16.gmra.mrb[0].mxu0 %v1786
    %v2382 = vpop.f32.mrb[0].mxu0
    %v2383 = vadd.f32 %v2286, %v2382
    %v2384 = vpop.f32.mrb[0].mxu0
    %v2385 = vpop.f32.mrb[0].mxu0
    %v2386 = vadd.f32 %v2289, %v2385
    %v2387 = vpop.f32.mrb[0].mxu0
    %2388 = vmatprep.mubr.bf16.mxu0 0
    %2389 = vmatmul.mubr.bf16.gmra.mrb[0].mxu0 %v1787
    %v2390 = vpop.f32.mrb[0].mxu0
    %v2391 = vadd.f32 %v2294, %v2390
    %v2392 = vpop.f32.mrb[0].mxu0
    %v2393 = vpop.f32.mrb[0].mxu0
    %v2394 = vadd.f32 %v2297, %v2393
    %v2395 = vpop.f32.mrb[0].mxu0
    %2396 = vmatprep.mubr.bf16.mxu0 0
    %2397 = vmatmul.mubr.bf16.gmra.mrb[0].mxu0 %v1788
    %v2398 = vpop.f32.mrb[0].mxu0
    %v2399 = vadd.f32 %v2302, %v2398
    %v2400 = vpop.f32.mrb[0].mxu0
    %v2401 = vpop.f32.mrb[0].mxu0
    %v2402 = vadd.f32 %v2305, %v2401
    %v2403 = vpop.f32.mrb[0].mxu0
    %2404 = vmatprep.mubr.bf16.mxu0 0
    %2405 = vmatmul.mubr.bf16.gmra.mrb[0].mxu0 %v1789
    %v2406 = vpop.f32.mrb[0].mxu0
    %v2407 = vadd.f32 %v2310, %v2406
    %v2408 = vpop.f32.mrb[0].mxu0
    %v2409 = vpop.f32.mrb[0].mxu0
    %v2410 = vadd.f32 %v2313, %v2409
    %v2411 = vpop.f32.mrb[0].mxu0
    %2412 = vmatprep.mubr.bf16.mxu0 0
    %2413 = vmatmul.mubr.bf16.gmra.mrb[0].mxu0 %v1790
    %v2414 = vpop.f32.mrb[0].mxu0
    %v2415 = vadd.f32 %v2318, %v2414
    %v2416 = vpop.f32.mrb[0].mxu0
    %v2417 = vpop.f32.mrb[0].mxu0
    %v2418 = vadd.f32 %v2321, %v2417
    %v2419 = vpop.f32.mrb[0].mxu0
    %2420 = vmatprep.mubr.bf16.mxu0 0
    %2421 = vmatmul.mubr.bf16.gmra.mrb[0].mxu0 %v1791
    %v2422 = vpop.f32.mrb[0].mxu0
    %v2423 = vadd.f32 %v2326, %v2422
    %v2424 = vpop.f32.mrb[0].mxu0
    %v2425 = vpop.f32.mrb[0].mxu0
    %v2426 = vadd.f32 %v2329, %v2425
    %v2427 = vpop.f32.mrb[0].mxu0
    %2428 = vdwg.mxu0
    %2429 = vmatprep.subr.bf16.mxu0 0
    %2430 = vmatpush1.bf16.msra.mxu0 %v2187
    %2431 = vmatprep.subr.bf16.mxu0 0
    %2432 = vmatpush1.bf16.msra.mxu0 %v2188
    %2433 = vmatprep.subr.bf16.mxu0 0
    %2434 = vmatpush1.bf16.msra.mxu0 %v2189
    %2435 = vmatprep.subr.bf16.mxu0 0
    %2436 = vmatpush1.bf16.msra.mxu0 %v2190
    %2437 = vmatprep.subr.bf16.mxu0 0
    %2438 = vmatpush1.bf16.msra.mxu0 %v2191
    %2439 = vmatprep.subr.bf16.mxu0 0
    %2440 = vmatpush1.bf16.msra.mxu0 %v2192
    %2441 = vmatprep.subr.bf16.mxu0 0
    %2442 = vmatpush1.bf16.msra.mxu0 %v2193
    %2443 = vmatprep.subr.bf16.mxu0 0
    %2444 = vmatpush1.bf16.msra.mxu0 %v2194
    %2445 = vmatprep.subr.bf16.mxu0 0
    %2446 = vmatpush1.bf16.msra.mxu0 0
    %2447 = vmatprep.subr.bf16.mxu0 0
    %2448 = vmatpush1.bf16.msra.mxu0 0
    %2449 = vmatprep.subr.bf16.mxu0 0
    %2450 = vmatpush1.bf16.msra.mxu0 0
    %2451 = vmatprep.subr.bf16.mxu0 0
    %2452 = vmatpush1.bf16.msra.mxu0 0
    %2453 = vmatprep.subr.bf16.mxu0 0
    %2454 = vmatpush1.bf16.msra.mxu0 0
    %2455 = vmatprep.subr.bf16.mxu0 0
    %2456 = vmatpush1.bf16.msra.mxu0 0
    %2457 = vmatprep.subr.bf16.mxu0 0
    %2458 = vmatpush1.bf16.msra.mxu0 0
    %2459 = vmatprep.subr.bf16.mxu0 0
    %2460 = vmatpush1.bf16.msra.mxu0 0
    %2461 = vmatprep.mubr.bf16.mxu0 0
    %2462 = vmatmul.mubr.bf16.gmra.mrb[0].mxu0 %v1824
    %v2463 = vpop.f32.mrb[0].mxu0
    %v2464 = vadd.f32 0.0, %v2463
    %v2465 = vpop.f32.mrb[0].mxu0
    %v2466 = vpop.f32.mrb[0].mxu0
    %v2467 = vadd.f32 0.0, %v2466
    %v2468 = vpop.f32.mrb[0].mxu0
    %2469 = vmatprep.mubr.bf16.mxu0 0
    %2470 = vmatmul.mubr.bf16.gmra.mrb[0].mxu0 %v1825
    %v2471 = vpop.f32.mrb[0].mxu0
    %v2472 = vadd.f32 0.0, %v2471
    %v2473 = vpop.f32.mrb[0].mxu0
    %v2474 = vpop.f32.mrb[0].mxu0
    %v2475 = vadd.f32 0.0, %v2474
    %v2476 = vpop.f32.mrb[0].mxu0
    %2477 = vmatprep.mubr.bf16.mxu0 0
    %2478 = vmatmul.mubr.bf16.gmra.mrb[0].mxu0 %v1826
    %v2479 = vpop.f32.mrb[0].mxu0
    %v2480 = vadd.f32 0.0, %v2479
    %v2481 = vpop.f32.mrb[0].mxu0
    %v2482 = vpop.f32.mrb[0].mxu0
    %v2483 = vadd.f32 0.0, %v2482
    %v2484 = vpop.f32.mrb[0].mxu0
    %2485 = vmatprep.mubr.bf16.mxu0 0
    %2486 = vmatmul.mubr.bf16.gmra.mrb[0].mxu0 %v1827
    %v2487 = vpop.f32.mrb[0].mxu0
    %v2488 = vadd.f32 0.0, %v2487
    %v2489 = vpop.f32.mrb[0].mxu0
    %v2490 = vpop.f32.mrb[0].mxu0
    %v2491 = vadd.f32 0.0, %v2490
    %v2492 = vpop.f32.mrb[0].mxu0
    %2493 = vmatprep.mubr.bf16.mxu0 0
    %2494 = vmatmul.mubr.bf16.gmra.mrb[0].mxu0 %v1828
    %v2495 = vpop.f32.mrb[0].mxu0
    %v2496 = vadd.f32 0.0, %v2495
    %v2497 = vpop.f32.mrb[0].mxu0
    %v2498 = vpop.f32.mrb[0].mxu0
    %v2499 = vadd.f32 0.0, %v2498
    %v2500 = vpop.f32.mrb[0].mxu0
    %2501 = vmatprep.mubr.bf16.mxu0 0
    %2502 = vmatmul.mubr.bf16.gmra.mrb[0].mxu0 %v1829
    %v2503 = vpop.f32.mrb[0].mxu0
    %v2504 = vadd.f32 0.0, %v2503
    %v2505 = vpop.f32.mrb[0].mxu0
    %v2506 = vpop.f32.mrb[0].mxu0
    %v2507 = vadd.f32 0.0, %v2506
    %v2508 = vpop.f32.mrb[0].mxu0
    %2509 = vmatprep.mubr.bf16.mxu0 0
    %2510 = vmatmul.mubr.bf16.gmra.mrb[0].mxu0 %v1830
    %v2511 = vpop.f32.mrb[0].mxu0
    %v2512 = vadd.f32 0.0, %v2511
    %v2513 = vpop.f32.mrb[0].mxu0
    %v2514 = vpop.f32.mrb[0].mxu0
    %v2515 = vadd.f32 0.0, %v2514
    %v2516 = vpop.f32.mrb[0].mxu0
    %2517 = vmatprep.mubr.bf16.mxu0 0
    %2518 = vmatmul.mubr.bf16.gmra.mrb[0].mxu0 %v1831
    %v2519 = vpop.f32.mrb[0].mxu0
    %v2520 = vadd.f32 0.0, %v2519
    %v2521 = vpop.f32.mrb[0].mxu0
    %v2522 = vpop.f32.mrb[0].mxu0
    %v2523 = vadd.f32 0.0, %v2522
    %v2524 = vpop.f32.mrb[0].mxu0
    %2525 = vdwg.mxu0
    %v2526 = vadd.f32 %v2367, %v2464
    %v2527 = vadd.f32 %v2370, %v2467
    %v2528 = vadd.f32 %v2375, %v2472
    %v2529 = vadd.f32 %v2378, %v2475
    %v2530 = vadd.f32 %v2383, %v2480
    %v2531 = vadd.f32 %v2386, %v2483
    %v2532 = vadd.f32 %v2391, %v2488
    %v2533 = vadd.f32 %v2394, %v2491
    %v2534 = vadd.f32 %v2399, %v2496
    %v2535 = vadd.f32 %v2402, %v2499
    %v2536 = vadd.f32 %v2407, %v2504
    %v2537 = vadd.f32 %v2410, %v2507
    %v2538 = vadd.f32 %v2415, %v2512
    %v2539 = vadd.f32 %v2418, %v2515
    %v2540 = vadd.f32 %v2423, %v2520
    %v2541 = vadd.f32 %v2426, %v2523
    %v2542 = vpack.c.bf16 %v1721, %v1720
    %v2543 = vpack.c.bf16 %v1723, %v1722
    %v2544 = vpack.c.bf16 %v1725, %v1724
    %v2545 = vpack.c.bf16 %v1727, %v1726
    %v2546 = vpack.c.bf16 %v1729, %v1728
    %v2547 = vpack.c.bf16 %v1731, %v1730
    %v2548 = vpack.c.bf16 %v1733, %v1732
    %v2549 = vpack.c.bf16 %v1735, %v1734
    %v2550 = vunpack.c.l.bf16 %v2542
    %v2551 = vunpack.c.h.bf16 %v2542
    %v2552 = vunpack.c.l.bf16 %v2543
    %v2553 = vunpack.c.h.bf16 %v2543
    %v2554 = vunpack.c.l.bf16 %v2544
    %v2555 = vunpack.c.h.bf16 %v2544
    %v2556 = vunpack.c.l.bf16 %v2545
    %v2557 = vunpack.c.h.bf16 %v2545
    %v2558 = vunpack.c.l.bf16 %v2546
    %v2559 = vunpack.c.h.bf16 %v2546
    %v2560 = vunpack.c.l.bf16 %v2547
    %v2561 = vunpack.c.h.bf16 %v2547
    %v2562 = vunpack.c.l.bf16 %v2548
    %v2563 = vunpack.c.h.bf16 %v2548
    %v2564 = vunpack.c.l.bf16 %v2549
    %v2565 = vunpack.c.h.bf16 %v2549
    %v2566 = vsub.f32 %v1720, %v2550
    %v2567 = vsub.f32 %v1721, %v2551
    %v2568 = vsub.f32 %v1722, %v2552
    %v2569 = vsub.f32 %v1723, %v2553
    %v2570 = vsub.f32 %v1724, %v2554
    %v2571 = vsub.f32 %v1725, %v2555
    %v2572 = vsub.f32 %v1726, %v2556
    %v2573 = vsub.f32 %v1727, %v2557
    %v2574 = vsub.f32 %v1728, %v2558
    %v2575 = vsub.f32 %v1729, %v2559
    %v2576 = vsub.f32 %v1730, %v2560
    %v2577 = vsub.f32 %v1731, %v2561
    %v2578 = vsub.f32 %v1732, %v2562
    %v2579 = vsub.f32 %v1733, %v2563
    %v2580 = vsub.f32 %v1734, %v2564
    %v2581 = vsub.f32 %v1735, %v2565
    %v2582 = vpack.c.bf16 %v2567, %v2566
    %v2583 = vpack.c.bf16 %v2569, %v2568
    %v2584 = vpack.c.bf16 %v2571, %v2570
    %v2585 = vpack.c.bf16 %v2573, %v2572
    %v2586 = vpack.c.bf16 %v2575, %v2574
    %v2587 = vpack.c.bf16 %v2577, %v2576
    %v2588 = vpack.c.bf16 %v2579, %v2578
    %v2589 = vpack.c.bf16 %v2581, %v2580
    %2590 = vmatprep.subr.bf16.mxu0 0
    %2591 = vmatpush1.bf16.msra.mxu0 %v2582
    %2592 = vmatprep.subr.bf16.mxu0 0
    %2593 = vmatpush1.bf16.msra.mxu0 %v2583
    %2594 = vmatprep.subr.bf16.mxu0 0
    %2595 = vmatpush1.bf16.msra.mxu0 %v2584
    %2596 = vmatprep.subr.bf16.mxu0 0
    %2597 = vmatpush1.bf16.msra.mxu0 %v2585
    %2598 = vmatprep.subr.bf16.mxu0 0
    %2599 = vmatpush1.bf16.msra.mxu0 %v2586
    %2600 = vmatprep.subr.bf16.mxu0 0
    %2601 = vmatpush1.bf16.msra.mxu0 %v2587
    %2602 = vmatprep.subr.bf16.mxu0 0
    %2603 = vmatpush1.bf16.msra.mxu0 %v2588
    %2604 = vmatprep.subr.bf16.mxu0 0
    %2605 = vmatpush1.bf16.msra.mxu0 %v2589
    %2606 = vmatprep.subr.bf16.mxu0 0
    %2607 = vmatpush1.bf16.msra.mxu0 0
    %2608 = vmatprep.subr.bf16.mxu0 0
    %2609 = vmatpush1.bf16.msra.mxu0 0
    %2610 = vmatprep.subr.bf16.mxu0 0
    %2611 = vmatpush1.bf16.msra.mxu0 0
    %2612 = vmatprep.subr.bf16.mxu0 0
    %2613 = vmatpush1.bf16.msra.mxu0 0
    %2614 = vmatprep.subr.bf16.mxu0 0
    %2615 = vmatpush1.bf16.msra.mxu0 0
    %2616 = vmatprep.subr.bf16.mxu0 0
    %2617 = vmatpush1.bf16.msra.mxu0 0
    %2618 = vmatprep.subr.bf16.mxu0 0
    %2619 = vmatpush1.bf16.msra.mxu0 0
    %2620 = vmatprep.subr.bf16.mxu0 0
    %2621 = vmatpush1.bf16.msra.mxu0 0
    %2622 = vmatprep.mubr.bf16.mxu0 0
    %2623 = vmatmul.mubr.bf16.gmra.mrb[0].mxu0 %v1784
    %v2624 = vpop.f32.mrb[0].mxu0
    %v2625 = vadd.f32 0.0, %v2624
    %v2626 = vpop.f32.mrb[0].mxu0
    %v2627 = vpop.f32.mrb[0].mxu0
    %v2628 = vadd.f32 0.0, %v2627
    %v2629 = vpop.f32.mrb[0].mxu0
    %2630 = vmatprep.mubr.bf16.mxu0 0
    %2631 = vmatmul.mubr.bf16.gmra.mrb[0].mxu0 %v1785
    %v2632 = vpop.f32.mrb[0].mxu0
    %v2633 = vadd.f32 0.0, %v2632
    %v2634 = vpop.f32.mrb[0].mxu0
    %v2635 = vpop.f32.mrb[0].mxu0
    %v2636 = vadd.f32 0.0, %v2635
    %v2637 = vpop.f32.mrb[0].mxu0
    %2638 = vmatprep.mubr.bf16.mxu0 0
    %2639 = vmatmul.mubr.bf16.gmra.mrb[0].mxu0 %v1786
    %v2640 = vpop.f32.mrb[0].mxu0
    %v2641 = vadd.f32 0.0, %v2640
    %v2642 = vpop.f32.mrb[0].mxu0
    %v2643 = vpop.f32.mrb[0].mxu0
    %v2644 = vadd.f32 0.0, %v2643
    %v2645 = vpop.f32.mrb[0].mxu0
    %2646 = vmatprep.mubr.bf16.mxu0 0
    %2647 = vmatmul.mubr.bf16.gmra.mrb[0].mxu0 %v1787
    %v2648 = vpop.f32.mrb[0].mxu0
    %v2649 = vadd.f32 0.0, %v2648
    %v2650 = vpop.f32.mrb[0].mxu0
    %v2651 = vpop.f32.mrb[0].mxu0
    %v2652 = vadd.f32 0.0, %v2651
    %v2653 = vpop.f32.mrb[0].mxu0
    %2654 = vmatprep.mubr.bf16.mxu0 0
    %2655 = vmatmul.mubr.bf16.gmra.mrb[0].mxu0 %v1788
    %v2656 = vpop.f32.mrb[0].mxu0
    %v2657 = vadd.f32 0.0, %v2656
    %v2658 = vpop.f32.mrb[0].mxu0
    %v2659 = vpop.f32.mrb[0].mxu0
    %v2660 = vadd.f32 0.0, %v2659
    %v2661 = vpop.f32.mrb[0].mxu0
    %2662 = vmatprep.mubr.bf16.mxu0 0
    %2663 = vmatmul.mubr.bf16.gmra.mrb[0].mxu0 %v1789
    %v2664 = vpop.f32.mrb[0].mxu0
    %v2665 = vadd.f32 0.0, %v2664
    %v2666 = vpop.f32.mrb[0].mxu0
    %v2667 = vpop.f32.mrb[0].mxu0
    %v2668 = vadd.f32 0.0, %v2667
    %v2669 = vpop.f32.mrb[0].mxu0
    %2670 = vmatprep.mubr.bf16.mxu0 0
    %2671 = vmatmul.mubr.bf16.gmra.mrb[0].mxu0 %v1790
    %v2672 = vpop.f32.mrb[0].mxu0
    %v2673 = vadd.f32 0.0, %v2672
    %v2674 = vpop.f32.mrb[0].mxu0
    %v2675 = vpop.f32.mrb[0].mxu0
    %v2676 = vadd.f32 0.0, %v2675
    %v2677 = vpop.f32.mrb[0].mxu0
    %2678 = vmatprep.mubr.bf16.mxu0 0
    %2679 = vmatmul.mubr.bf16.gmra.mrb[0].mxu0 %v1791
    %v2680 = vpop.f32.mrb[0].mxu0
    %v2681 = vadd.f32 0.0, %v2680
    %v2682 = vpop.f32.mrb[0].mxu0
    %v2683 = vpop.f32.mrb[0].mxu0
    %v2684 = vadd.f32 0.0, %v2683
    %v2685 = vpop.f32.mrb[0].mxu0
    %2686 = vdwg.mxu0
    %2687 = vmatprep.subr.bf16.mxu0 0
    %2688 = vmatpush1.bf16.msra.mxu0 %v2542
    %2689 = vmatprep.subr.bf16.mxu0 0
    %2690 = vmatpush1.bf16.msra.mxu0 %v2543
    %2691 = vmatprep.subr.bf16.mxu0 0
    %2692 = vmatpush1.bf16.msra.mxu0 %v2544
    %2693 = vmatprep.subr.bf16.mxu0 0
    %2694 = vmatpush1.bf16.msra.mxu0 %v2545
    %2695 = vmatprep.subr.bf16.mxu0 0
    %2696 = vmatpush1.bf16.msra.mxu0 %v2546
    %2697 = vmatprep.subr.bf16.mxu0 0
    %2698 = vmatpush1.bf16.msra.mxu0 %v2547
    %2699 = vmatprep.subr.bf16.mxu0 0
    %2700 = vmatpush1.bf16.msra.mxu0 %v2548
    %2701 = vmatprep.subr.bf16.mxu0 0
    %2702 = vmatpush1.bf16.msra.mxu0 %v2549
    %2703 = vmatprep.subr.bf16.mxu0 0
    %2704 = vmatpush1.bf16.msra.mxu0 0
    %2705 = vmatprep.subr.bf16.mxu0 0
    %2706 = vmatpush1.bf16.msra.mxu0 0
    %2707 = vmatprep.subr.bf16.mxu0 0
    %2708 = vmatpush1.bf16.msra.mxu0 0
    %2709 = vmatprep.subr.bf16.mxu0 0
    %2710 = vmatpush1.bf16.msra.mxu0 0
    %2711 = vmatprep.subr.bf16.mxu0 0
    %2712 = vmatpush1.bf16.msra.mxu0 0
    %2713 = vmatprep.subr.bf16.mxu0 0
    %2714 = vmatpush1.bf16.msra.mxu0 0
    %2715 = vmatprep.subr.bf16.mxu0 0
    %2716 = vmatpush1.bf16.msra.mxu0 0
    %2717 = vmatprep.subr.bf16.mxu0 0
    %2718 = vmatpush1.bf16.msra.mxu0 0
    %2719 = vmatprep.mubr.bf16.mxu0 0
    %2720 = vmatmul.mubr.bf16.gmra.mrb[0].mxu0 %v1784
    %v2721 = vpop.f32.mrb[0].mxu0
    %v2722 = vadd.f32 %v2625, %v2721
    %v2723 = vpop.f32.mrb[0].mxu0
    %v2724 = vpop.f32.mrb[0].mxu0
    %v2725 = vadd.f32 %v2628, %v2724
    %v2726 = vpop.f32.mrb[0].mxu0
    %2727 = vmatprep.mubr.bf16.mxu0 0
    %2728 = vmatmul.mubr.bf16.gmra.mrb[0].mxu0 %v1785
    %v2729 = vpop.f32.mrb[0].mxu0
    %v2730 = vadd.f32 %v2633, %v2729
    %v2731 = vpop.f32.mrb[0].mxu0
    %v2732 = vpop.f32.mrb[0].mxu0
    %v2733 = vadd.f32 %v2636, %v2732
    %v2734 = vpop.f32.mrb[0].mxu0
    %2735 = vmatprep.mubr.bf16.mxu0 0
    %2736 = vmatmul.mubr.bf16.gmra.mrb[0].mxu0 %v1786
    %v2737 = vpop.f32.mrb[0].mxu0
    %v2738 = vadd.f32 %v2641, %v2737
    %v2739 = vpop.f32.mrb[0].mxu0
    %v2740 = vpop.f32.mrb[0].mxu0
    %v2741 = vadd.f32 %v2644, %v2740
    %v2742 = vpop.f32.mrb[0].mxu0
    %2743 = vmatprep.mubr.bf16.mxu0 0
    %2744 = vmatmul.mubr.bf16.gmra.mrb[0].mxu0 %v1787
    %v2745 = vpop.f32.mrb[0].mxu0
    %v2746 = vadd.f32 %v2649, %v2745
    %v2747 = vpop.f32.mrb[0].mxu0
    %v2748 = vpop.f32.mrb[0].mxu0
    %v2749 = vadd.f32 %v2652, %v2748
    %v2750 = vpop.f32.mrb[0].mxu0
    %2751 = vmatprep.mubr.bf16.mxu0 0
    %2752 = vmatmul.mubr.bf16.gmra.mrb[0].mxu0 %v1788
    %v2753 = vpop.f32.mrb[0].mxu0
    %v2754 = vadd.f32 %v2657, %v2753
    %v2755 = vpop.f32.mrb[0].mxu0
    %v2756 = vpop.f32.mrb[0].mxu0
    %v2757 = vadd.f32 %v2660, %v2756
    %v2758 = vpop.f32.mrb[0].mxu0
    %2759 = vmatprep.mubr.bf16.mxu0 0
    %2760 = vmatmul.mubr.bf16.gmra.mrb[0].mxu0 %v1789
    %v2761 = vpop.f32.mrb[0].mxu0
    %v2762 = vadd.f32 %v2665, %v2761
    %v2763 = vpop.f32.mrb[0].mxu0
    %v2764 = vpop.f32.mrb[0].mxu0
    %v2765 = vadd.f32 %v2668, %v2764
    %v2766 = vpop.f32.mrb[0].mxu0
    %2767 = vmatprep.mubr.bf16.mxu0 0
    %2768 = vmatmul.mubr.bf16.gmra.mrb[0].mxu0 %v1790
    %v2769 = vpop.f32.mrb[0].mxu0
    %v2770 = vadd.f32 %v2673, %v2769
    %v2771 = vpop.f32.mrb[0].mxu0
    %v2772 = vpop.f32.mrb[0].mxu0
    %v2773 = vadd.f32 %v2676, %v2772
    %v2774 = vpop.f32.mrb[0].mxu0
    %2775 = vmatprep.mubr.bf16.mxu0 0
    %2776 = vmatmul.mubr.bf16.gmra.mrb[0].mxu0 %v1791
    %v2777 = vpop.f32.mrb[0].mxu0
    %v2778 = vadd.f32 %v2681, %v2777
    %v2779 = vpop.f32.mrb[0].mxu0
    %v2780 = vpop.f32.mrb[0].mxu0
    %v2781 = vadd.f32 %v2684, %v2780
    %v2782 = vpop.f32.mrb[0].mxu0
    %2783 = vdwg.mxu0
    %2784 = vmatprep.subr.bf16.mxu0 0
    %2785 = vmatpush1.bf16.msra.mxu0 %v2542
    %2786 = vmatprep.subr.bf16.mxu0 0
    %2787 = vmatpush1.bf16.msra.mxu0 %v2543
    %2788 = vmatprep.subr.bf16.mxu0 0
    %2789 = vmatpush1.bf16.msra.mxu0 %v2544
    %2790 = vmatprep.subr.bf16.mxu0 0
    %2791 = vmatpush1.bf16.msra.mxu0 %v2545
    %2792 = vmatprep.subr.bf16.mxu0 0
    %2793 = vmatpush1.bf16.msra.mxu0 %v2546
    %2794 = vmatprep.subr.bf16.mxu0 0
    %2795 = vmatpush1.bf16.msra.mxu0 %v2547
    %2796 = vmatprep.subr.bf16.mxu0 0
    %2797 = vmatpush1.bf16.msra.mxu0 %v2548
    %2798 = vmatprep.subr.bf16.mxu0 0
    %2799 = vmatpush1.bf16.msra.mxu0 %v2549
    %2800 = vmatprep.subr.bf16.mxu0 0
    %2801 = vmatpush1.bf16.msra.mxu0 0
    %2802 = vmatprep.subr.bf16.mxu0 0
    %2803 = vmatpush1.bf16.msra.mxu0 0
    %2804 = vmatprep.subr.bf16.mxu0 0
    %2805 = vmatpush1.bf16.msra.mxu0 0
    %2806 = vmatprep.subr.bf16.mxu0 0
    %2807 = vmatpush1.bf16.msra.mxu0 0
    %2808 = vmatprep.subr.bf16.mxu0 0
    %2809 = vmatpush1.bf16.msra.mxu0 0
    %2810 = vmatprep.subr.bf16.mxu0 0
    %2811 = vmatpush1.bf16.msra.mxu0 0
    %2812 = vmatprep.subr.bf16.mxu0 0
    %2813 = vmatpush1.bf16.msra.mxu0 0
    %2814 = vmatprep.subr.bf16.mxu0 0
    %2815 = vmatpush1.bf16.msra.mxu0 0
    %2816 = vmatprep.mubr.bf16.mxu0 0
    %2817 = vmatmul.mubr.bf16.gmra.mrb[0].mxu0 %v1824
    %v2818 = vpop.f32.mrb[0].mxu0
    %v2819 = vadd.f32 0.0, %v2818
    %v2820 = vpop.f32.mrb[0].mxu0
    %v2821 = vpop.f32.mrb[0].mxu0
    %v2822 = vadd.f32 0.0, %v2821
    %v2823 = vpop.f32.mrb[0].mxu0
    %2824 = vmatprep.mubr.bf16.mxu0 0
    %2825 = vmatmul.mubr.bf16.gmra.mrb[0].mxu0 %v1825
    %v2826 = vpop.f32.mrb[0].mxu0
    %v2827 = vadd.f32 0.0, %v2826
    %v2828 = vpop.f32.mrb[0].mxu0
    %v2829 = vpop.f32.mrb[0].mxu0
    %v2830 = vadd.f32 0.0, %v2829
    %v2831 = vpop.f32.mrb[0].mxu0
    %2832 = vmatprep.mubr.bf16.mxu0 0
    %2833 = vmatmul.mubr.bf16.gmra.mrb[0].mxu0 %v1826
    %v2834 = vpop.f32.mrb[0].mxu0
    %v2835 = vadd.f32 0.0, %v2834
    %v2836 = vpop.f32.mrb[0].mxu0
    %v2837 = vpop.f32.mrb[0].mxu0
    %v2838 = vadd.f32 0.0, %v2837
    %v2839 = vpop.f32.mrb[0].mxu0
    %2840 = vmatprep.mubr.bf16.mxu0 0
    %2841 = vmatmul.mubr.bf16.gmra.mrb[0].mxu0 %v1827
    %v2842 = vpop.f32.mrb[0].mxu0
    %v2843 = vadd.f32 0.0, %v2842
    %v2844 = vpop.f32.mrb[0].mxu0
    %v2845 = vpop.f32.mrb[0].mxu0
    %v2846 = vadd.f32 0.0, %v2845
    %v2847 = vpop.f32.mrb[0].mxu0
    %2848 = vmatprep.mubr.bf16.mxu0 0
    %2849 = vmatmul.mubr.bf16.gmra.mrb[0].mxu0 %v1828
    %v2850 = vpop.f32.mrb[0].mxu0
    %v2851 = vadd.f32 0.0, %v2850
    %v2852 = vpop.f32.mrb[0].mxu0
    %v2853 = vpop.f32.mrb[0].mxu0
    %v2854 = vadd.f32 0.0, %v2853
    %v2855 = vpop.f32.mrb[0].mxu0
    %2856 = vmatprep.mubr.bf16.mxu0 0
    %2857 = vmatmul.mubr.bf16.gmra.mrb[0].mxu0 %v1829
    %v2858 = vpop.f32.mrb[0].mxu0
    %v2859 = vadd.f32 0.0, %v2858
    %v2860 = vpop.f32.mrb[0].mxu0
    %v2861 = vpop.f32.mrb[0].mxu0
    %v2862 = vadd.f32 0.0, %v2861
    %v2863 = vpop.f32.mrb[0].mxu0
    %2864 = vmatprep.mubr.bf16.mxu0 0
    %2865 = vmatmul.mubr.bf16.gmra.mrb[0].mxu0 %v1830
    %v2866 = vpop.f32.mrb[0].mxu0
    %v2867 = vadd.f32 0.0, %v2866
    %v2868 = vpop.f32.mrb[0].mxu0
    %v2869 = vpop.f32.mrb[0].mxu0
    %v2870 = vadd.f32 0.0, %v2869
    %v2871 = vpop.f32.mrb[0].mxu0
    %2872 = vmatprep.mubr.bf16.mxu0 0
    %2873 = vmatmul.mubr.bf16.gmra.mrb[0].mxu0 %v1831
    %v2874 = vpop.f32.mrb[0].mxu0
    %v2875 = vadd.f32 0.0, %v2874
    %v2876 = vpop.f32.mrb[0].mxu0
    %v2877 = vpop.f32.mrb[0].mxu0
    %v2878 = vadd.f32 0.0, %v2877
    %v2879 = vpop.f32.mrb[0].mxu0
    %2880 = vdwg.mxu0
    %v2881 = vadd.f32 %v2722, %v2819
    %v2882 = vadd.f32 %v2725, %v2822
    %v2883 = vadd.f32 %v2730, %v2827
    %v2884 = vadd.f32 %v2733, %v2830
    %v2885 = vadd.f32 %v2738, %v2835
    %v2886 = vadd.f32 %v2741, %v2838
    %v2887 = vadd.f32 %v2746, %v2843
    %v2888 = vadd.f32 %v2749, %v2846
    %v2889 = vadd.f32 %v2754, %v2851
    %v2890 = vadd.f32 %v2757, %v2854
    %v2891 = vadd.f32 %v2762, %v2859
    %v2892 = vadd.f32 %v2765, %v2862
    %v2893 = vadd.f32 %v2770, %v2867
    %v2894 = vadd.f32 %v2773, %v2870
    %v2895 = vadd.f32 %v2778, %v2875
    %v2896 = vadd.f32 %v2781, %v2878
    %v2897 = vpack.c.bf16 %v1737, %v1736
    %v2898 = vpack.c.bf16 %v1739, %v1738
    %v2899 = vpack.c.bf16 %v1741, %v1740
    %v2900 = vpack.c.bf16 %v1743, %v1742
    %v2901 = vpack.c.bf16 %v1745, %v1744
    %v2902 = vpack.c.bf16 %v1747, %v1746
    %v2903 = vpack.c.bf16 %v1749, %v1748
    %v2904 = vpack.c.bf16 %v1751, %v1750
    %v2905 = vunpack.c.l.bf16 %v2897
    %v2906 = vunpack.c.h.bf16 %v2897
    %v2907 = vunpack.c.l.bf16 %v2898
    %v2908 = vunpack.c.h.bf16 %v2898
    %v2909 = vunpack.c.l.bf16 %v2899
    %v2910 = vunpack.c.h.bf16 %v2899
    %v2911 = vunpack.c.l.bf16 %v2900
    %v2912 = vunpack.c.h.bf16 %v2900
    %v2913 = vunpack.c.l.bf16 %v2901
    %v2914 = vunpack.c.h.bf16 %v2901
    %v2915 = vunpack.c.l.bf16 %v2902
    %v2916 = vunpack.c.h.bf16 %v2902
    %v2917 = vunpack.c.l.bf16 %v2903
    %v2918 = vunpack.c.h.bf16 %v2903
    %v2919 = vunpack.c.l.bf16 %v2904
    %v2920 = vunpack.c.h.bf16 %v2904
    %v2921 = vsub.f32 %v1736, %v2905
    %v2922 = vsub.f32 %v1737, %v2906
    %v2923 = vsub.f32 %v1738, %v2907
    %v2924 = vsub.f32 %v1739, %v2908
    %v2925 = vsub.f32 %v1740, %v2909
    %v2926 = vsub.f32 %v1741, %v2910
    %v2927 = vsub.f32 %v1742, %v2911
    %v2928 = vsub.f32 %v1743, %v2912
    %v2929 = vsub.f32 %v1744, %v2913
    %v2930 = vsub.f32 %v1745, %v2914
    %v2931 = vsub.f32 %v1746, %v2915
    %v2932 = vsub.f32 %v1747, %v2916
    %v2933 = vsub.f32 %v1748, %v2917
    %v2934 = vsub.f32 %v1749, %v2918
    %v2935 = vsub.f32 %v1750, %v2919
    %v2936 = vsub.f32 %v1751, %v2920
    %v2937 = vpack.c.bf16 %v2922, %v2921
    %v2938 = vpack.c.bf16 %v2924, %v2923
    %v2939 = vpack.c.bf16 %v2926, %v2925
    %v2940 = vpack.c.bf16 %v2928, %v2927
    %v2941 = vpack.c.bf16 %v2930, %v2929
    %v2942 = vpack.c.bf16 %v2932, %v2931
    %v2943 = vpack.c.bf16 %v2934, %v2933
    %v2944 = vpack.c.bf16 %v2936, %v2935
    %2945 = vmatprep.subr.bf16.mxu0 0
    %2946 = vmatpush1.bf16.msra.mxu0 %v2937
    %2947 = vmatprep.subr.bf16.mxu0 0
    %2948 = vmatpush1.bf16.msra.mxu0 %v2938
    %2949 = vmatprep.subr.bf16.mxu0 0
    %2950 = vmatpush1.bf16.msra.mxu0 %v2939
    %2951 = vmatprep.subr.bf16.mxu0 0
    %2952 = vmatpush1.bf16.msra.mxu0 %v2940
    %2953 = vmatprep.subr.bf16.mxu0 0
    %2954 = vmatpush1.bf16.msra.mxu0 %v2941
    %2955 = vmatprep.subr.bf16.mxu0 0
    %2956 = vmatpush1.bf16.msra.mxu0 %v2942
    %2957 = vmatprep.subr.bf16.mxu0 0
    %2958 = vmatpush1.bf16.msra.mxu0 %v2943
    %2959 = vmatprep.subr.bf16.mxu0 0
    %2960 = vmatpush1.bf16.msra.mxu0 %v2944
    %2961 = vmatprep.subr.bf16.mxu0 0
    %2962 = vmatpush1.bf16.msra.mxu0 0
    %2963 = vmatprep.subr.bf16.mxu0 0
    %2964 = vmatpush1.bf16.msra.mxu0 0
    %2965 = vmatprep.subr.bf16.mxu0 0
    %2966 = vmatpush1.bf16.msra.mxu0 0
    %2967 = vmatprep.subr.bf16.mxu0 0
    %2968 = vmatpush1.bf16.msra.mxu0 0
    %2969 = vmatprep.subr.bf16.mxu0 0
    %2970 = vmatpush1.bf16.msra.mxu0 0
    %2971 = vmatprep.subr.bf16.mxu0 0
    %2972 = vmatpush1.bf16.msra.mxu0 0
    %2973 = vmatprep.subr.bf16.mxu0 0
    %2974 = vmatpush1.bf16.msra.mxu0 0
    %2975 = vmatprep.subr.bf16.mxu0 0
    %2976 = vmatpush1.bf16.msra.mxu0 0
    %2977 = vmatprep.mubr.bf16.mxu0 0
    %2978 = vmatmul.mubr.bf16.gmra.mrb[0].mxu0 %v1784
    %v2979 = vpop.f32.mrb[0].mxu0
    %v2980 = vadd.f32 0.0, %v2979
    %v2981 = vpop.f32.mrb[0].mxu0
    %v2982 = vpop.f32.mrb[0].mxu0
    %v2983 = vadd.f32 0.0, %v2982
    %v2984 = vpop.f32.mrb[0].mxu0
    %2985 = vmatprep.mubr.bf16.mxu0 0
    %2986 = vmatmul.mubr.bf16.gmra.mrb[0].mxu0 %v1785
    %v2987 = vpop.f32.mrb[0].mxu0
    %v2988 = vadd.f32 0.0, %v2987
    %v2989 = vpop.f32.mrb[0].mxu0
    %v2990 = vpop.f32.mrb[0].mxu0
    %v2991 = vadd.f32 0.0, %v2990
    %v2992 = vpop.f32.mrb[0].mxu0
    %2993 = vmatprep.mubr.bf16.mxu0 0
    %2994 = vmatmul.mubr.bf16.gmra.mrb[0].mxu0 %v1786
    %v2995 = vpop.f32.mrb[0].mxu0
    %v2996 = vadd.f32 0.0, %v2995
    %v2997 = vpop.f32.mrb[0].mxu0
    %v2998 = vpop.f32.mrb[0].mxu0
    %v2999 = vadd.f32 0.0, %v2998
    %v3000 = vpop.f32.mrb[0].mxu0
    %3001 = vmatprep.mubr.bf16.mxu0 0
    %3002 = vmatmul.mubr.bf16.gmra.mrb[0].mxu0 %v1787
    %v3003 = vpop.f32.mrb[0].mxu0
    %v3004 = vadd.f32 0.0, %v3003
    %v3005 = vpop.f32.mrb[0].mxu0
    %v3006 = vpop.f32.mrb[0].mxu0
    %v3007 = vadd.f32 0.0, %v3006
    %v3008 = vpop.f32.mrb[0].mxu0
    %3009 = vmatprep.mubr.bf16.mxu0 0
    %3010 = vmatmul.mubr.bf16.gmra.mrb[0].mxu0 %v1788
    %v3011 = vpop.f32.mrb[0].mxu0
    %v3012 = vadd.f32 0.0, %v3011
    %v3013 = vpop.f32.mrb[0].mxu0
    %v3014 = vpop.f32.mrb[0].mxu0
    %v3015 = vadd.f32 0.0, %v3014
    %v3016 = vpop.f32.mrb[0].mxu0
    %3017 = vmatprep.mubr.bf16.mxu0 0
    %3018 = vmatmul.mubr.bf16.gmra.mrb[0].mxu0 %v1789
    %v3019 = vpop.f32.mrb[0].mxu0
    %v3020 = vadd.f32 0.0, %v3019
    %v3021 = vpop.f32.mrb[0].mxu0
    %v3022 = vpop.f32.mrb[0].mxu0
    %v3023 = vadd.f32 0.0, %v3022
    %v3024 = vpop.f32.mrb[0].mxu0
    %3025 = vmatprep.mubr.bf16.mxu0 0
    %3026 = vmatmul.mubr.bf16.gmra.mrb[0].mxu0 %v1790
    %v3027 = vpop.f32.mrb[0].mxu0
    %v3028 = vadd.f32 0.0, %v3027
    %v3029 = vpop.f32.mrb[0].mxu0
    %v3030 = vpop.f32.mrb[0].mxu0
    %v3031 = vadd.f32 0.0, %v3030
    %v3032 = vpop.f32.mrb[0].mxu0
    %3033 = vmatprep.mubr.bf16.mxu0 0
    %3034 = vmatmul.mubr.bf16.gmra.mrb[0].mxu0 %v1791
    %v3035 = vpop.f32.mrb[0].mxu0
    %v3036 = vadd.f32 0.0, %v3035
    %v3037 = vpop.f32.mrb[0].mxu0
    %v3038 = vpop.f32.mrb[0].mxu0
    %v3039 = vadd.f32 0.0, %v3038
    %v3040 = vpop.f32.mrb[0].mxu0
    %3041 = vdwg.mxu0
    %3042 = vmatprep.subr.bf16.mxu0 0
    %3043 = vmatpush1.bf16.msra.mxu0 %v2897
    %3044 = vmatprep.subr.bf16.mxu0 0
    %3045 = vmatpush1.bf16.msra.mxu0 %v2898
    %3046 = vmatprep.subr.bf16.mxu0 0
    %3047 = vmatpush1.bf16.msra.mxu0 %v2899
    %3048 = vmatprep.subr.bf16.mxu0 0
    %3049 = vmatpush1.bf16.msra.mxu0 %v2900
    %3050 = vmatprep.subr.bf16.mxu0 0
    %3051 = vmatpush1.bf16.msra.mxu0 %v2901
    %3052 = vmatprep.subr.bf16.mxu0 0
    %3053 = vmatpush1.bf16.msra.mxu0 %v2902
    %3054 = vmatprep.subr.bf16.mxu0 0
    %3055 = vmatpush1.bf16.msra.mxu0 %v2903
    %3056 = vmatprep.subr.bf16.mxu0 0
    %3057 = vmatpush1.bf16.msra.mxu0 %v2904
    %3058 = vmatprep.subr.bf16.mxu0 0
    %3059 = vmatpush1.bf16.msra.mxu0 0
    %3060 = vmatprep.subr.bf16.mxu0 0
    %3061 = vmatpush1.bf16.msra.mxu0 0
    %3062 = vmatprep.subr.bf16.mxu0 0
    %3063 = vmatpush1.bf16.msra.mxu0 0
    %3064 = vmatprep.subr.bf16.mxu0 0
    %3065 = vmatpush1.bf16.msra.mxu0 0
    %3066 = vmatprep.subr.bf16.mxu0 0
    %3067 = vmatpush1.bf16.msra.mxu0 0
    %3068 = vmatprep.subr.bf16.mxu0 0
    %3069 = vmatpush1.bf16.msra.mxu0 0
    %3070 = vmatprep.subr.bf16.mxu0 0
    %3071 = vmatpush1.bf16.msra.mxu0 0
    %3072 = vmatprep.subr.bf16.mxu0 0
    %3073 = vmatpush1.bf16.msra.mxu0 0
    %3074 = vmatprep.mubr.bf16.mxu0 0
    %3075 = vmatmul.mubr.bf16.gmra.mrb[0].mxu0 %v1784
    %v3076 = vpop.f32.mrb[0].mxu0
    %v3077 = vadd.f32 %v2980, %v3076
    %v3078 = vpop.f32.mrb[0].mxu0
    %v3079 = vpop.f32.mrb[0].mxu0
    %v3080 = vadd.f32 %v2983, %v3079
    %v3081 = vpop.f32.mrb[0].mxu0
    %3082 = vmatprep.mubr.bf16.mxu0 0
    %3083 = vmatmul.mubr.bf16.gmra.mrb[0].mxu0 %v1785
    %v3084 = vpop.f32.mrb[0].mxu0
    %v3085 = vadd.f32 %v2988, %v3084
    %v3086 = vpop.f32.mrb[0].mxu0
    %v3087 = vpop.f32.mrb[0].mxu0
    %v3088 = vadd.f32 %v2991, %v3087
    %v3089 = vpop.f32.mrb[0].mxu0
    %3090 = vmatprep.mubr.bf16.mxu0 0
    %3091 = vmatmul.mubr.bf16.gmra.mrb[0].mxu0 %v1786
    %v3092 = vpop.f32.mrb[0].mxu0
    %v3093 = vadd.f32 %v2996, %v3092
    %v3094 = vpop.f32.mrb[0].mxu0
    %v3095 = vpop.f32.mrb[0].mxu0
    %v3096 = vadd.f32 %v2999, %v3095
    %v3097 = vpop.f32.mrb[0].mxu0
    %3098 = vmatprep.mubr.bf16.mxu0 0
    %3099 = vmatmul.mubr.bf16.gmra.mrb[0].mxu0 %v1787
    %v3100 = vpop.f32.mrb[0].mxu0
    %v3101 = vadd.f32 %v3004, %v3100
    %v3102 = vpop.f32.mrb[0].mxu0
    %v3103 = vpop.f32.mrb[0].mxu0
    %v3104 = vadd.f32 %v3007, %v3103
    %v3105 = vpop.f32.mrb[0].mxu0
    %3106 = vmatprep.mubr.bf16.mxu0 0
    %3107 = vmatmul.mubr.bf16.gmra.mrb[0].mxu0 %v1788
    %v3108 = vpop.f32.mrb[0].mxu0
    %v3109 = vadd.f32 %v3012, %v3108
    %v3110 = vpop.f32.mrb[0].mxu0
    %v3111 = vpop.f32.mrb[0].mxu0
    %v3112 = vadd.f32 %v3015, %v3111
    %v3113 = vpop.f32.mrb[0].mxu0
    %3114 = vmatprep.mubr.bf16.mxu0 0
    %3115 = vmatmul.mubr.bf16.gmra.mrb[0].mxu0 %v1789
    %v3116 = vpop.f32.mrb[0].mxu0
    %v3117 = vadd.f32 %v3020, %v3116
    %v3118 = vpop.f32.mrb[0].mxu0
    %v3119 = vpop.f32.mrb[0].mxu0
    %v3120 = vadd.f32 %v3023, %v3119
    %v3121 = vpop.f32.mrb[0].mxu0
    %3122 = vmatprep.mubr.bf16.mxu0 0
    %3123 = vmatmul.mubr.bf16.gmra.mrb[0].mxu0 %v1790
    %v3124 = vpop.f32.mrb[0].mxu0
    %v3125 = vadd.f32 %v3028, %v3124
    %v3126 = vpop.f32.mrb[0].mxu0
    %v3127 = vpop.f32.mrb[0].mxu0
    %v3128 = vadd.f32 %v3031, %v3127
    %v3129 = vpop.f32.mrb[0].mxu0
    %3130 = vmatprep.mubr.bf16.mxu0 0
    %3131 = vmatmul.mubr.bf16.gmra.mrb[0].mxu0 %v1791
    %v3132 = vpop.f32.mrb[0].mxu0
    %v3133 = vadd.f32 %v3036, %v3132
    %v3134 = vpop.f32.mrb[0].mxu0
    %v3135 = vpop.f32.mrb[0].mxu0
    %v3136 = vadd.f32 %v3039, %v3135
    %v3137 = vpop.f32.mrb[0].mxu0
    %3138 = vdwg.mxu0
    %3139 = vmatprep.subr.bf16.mxu0 0
    %3140 = vmatpush1.bf16.msra.mxu0 %v2897
    %3141 = vmatprep.subr.bf16.mxu0 0
    %3142 = vmatpush1.bf16.msra.mxu0 %v2898
    %3143 = vmatprep.subr.bf16.mxu0 0
    %3144 = vmatpush1.bf16.msra.mxu0 %v2899
    %3145 = vmatprep.subr.bf16.mxu0 0
    %3146 = vmatpush1.bf16.msra.mxu0 %v2900
    %3147 = vmatprep.subr.bf16.mxu0 0
    %3148 = vmatpush1.bf16.msra.mxu0 %v2901
    %3149 = vmatprep.subr.bf16.mxu0 0
    %3150 = vmatpush1.bf16.msra.mxu0 %v2902
    %3151 = vmatprep.subr.bf16.mxu0 0
    %3152 = vmatpush1.bf16.msra.mxu0 %v2903
    %3153 = vmatprep.subr.bf16.mxu0 0
    %3154 = vmatpush1.bf16.msra.mxu0 %v2904
    %3155 = vmatprep.subr.bf16.mxu0 0
    %3156 = vmatpush1.bf16.msra.mxu0 0
    %3157 = vmatprep.subr.bf16.mxu0 0
    %3158 = vmatpush1.bf16.msra.mxu0 0
    %3159 = vmatprep.subr.bf16.mxu0 0
    %3160 = vmatpush1.bf16.msra.mxu0 0
    %3161 = vmatprep.subr.bf16.mxu0 0
    %3162 = vmatpush1.bf16.msra.mxu0 0
    %3163 = vmatprep.subr.bf16.mxu0 0
    %3164 = vmatpush1.bf16.msra.mxu0 0
    %3165 = vmatprep.subr.bf16.mxu0 0
    %3166 = vmatpush1.bf16.msra.mxu0 0
    %3167 = vmatprep.subr.bf16.mxu0 0
    %3168 = vmatpush1.bf16.msra.mxu0 0
    %3169 = vmatprep.subr.bf16.mxu0 0
    %3170 = vmatpush1.bf16.msra.mxu0 0
    %3171 = vmatprep.mubr.bf16.mxu0 0
    %3172 = vmatmul.mubr.bf16.gmra.mrb[0].mxu0 %v1824
    %v3173 = vpop.f32.mrb[0].mxu0
    %v3174 = vadd.f32 0.0, %v3173
    %v3175 = vpop.f32.mrb[0].mxu0
    %v3176 = vpop.f32.mrb[0].mxu0
    %v3177 = vadd.f32 0.0, %v3176
    %v3178 = vpop.f32.mrb[0].mxu0
    %3179 = vmatprep.mubr.bf16.mxu0 0
    %3180 = vmatmul.mubr.bf16.gmra.mrb[0].mxu0 %v1825
    %v3181 = vpop.f32.mrb[0].mxu0
    %v3182 = vadd.f32 0.0, %v3181
    %v3183 = vpop.f32.mrb[0].mxu0
    %v3184 = vpop.f32.mrb[0].mxu0
    %v3185 = vadd.f32 0.0, %v3184
    %v3186 = vpop.f32.mrb[0].mxu0
    %3187 = vmatprep.mubr.bf16.mxu0 0
    %3188 = vmatmul.mubr.bf16.gmra.mrb[0].mxu0 %v1826
    %v3189 = vpop.f32.mrb[0].mxu0
    %v3190 = vadd.f32 0.0, %v3189
    %v3191 = vpop.f32.mrb[0].mxu0
    %v3192 = vpop.f32.mrb[0].mxu0
    %v3193 = vadd.f32 0.0, %v3192
    %v3194 = vpop.f32.mrb[0].mxu0
    %3195 = vmatprep.mubr.bf16.mxu0 0
    %3196 = vmatmul.mubr.bf16.gmra.mrb[0].mxu0 %v1827
    %v3197 = vpop.f32.mrb[0].mxu0
    %v3198 = vadd.f32 0.0, %v3197
    %v3199 = vpop.f32.mrb[0].mxu0
    %v3200 = vpop.f32.mrb[0].mxu0
    %v3201 = vadd.f32 0.0, %v3200
    %v3202 = vpop.f32.mrb[0].mxu0
    %3203 = vmatprep.mubr.bf16.mxu0 0
    %3204 = vmatmul.mubr.bf16.gmra.mrb[0].mxu0 %v1828
    %v3205 = vpop.f32.mrb[0].mxu0
    %v3206 = vadd.f32 0.0, %v3205
    %v3207 = vpop.f32.mrb[0].mxu0
    %v3208 = vpop.f32.mrb[0].mxu0
    %v3209 = vadd.f32 0.0, %v3208
    %v3210 = vpop.f32.mrb[0].mxu0
    %3211 = vmatprep.mubr.bf16.mxu0 0
    %3212 = vmatmul.mubr.bf16.gmra.mrb[0].mxu0 %v1829
    %v3213 = vpop.f32.mrb[0].mxu0
    %v3214 = vadd.f32 0.0, %v3213
    %v3215 = vpop.f32.mrb[0].mxu0
    %v3216 = vpop.f32.mrb[0].mxu0
    %v3217 = vadd.f32 0.0, %v3216
    %v3218 = vpop.f32.mrb[0].mxu0
    %3219 = vmatprep.mubr.bf16.mxu0 0
    %3220 = vmatmul.mubr.bf16.gmra.mrb[0].mxu0 %v1830
    %v3221 = vpop.f32.mrb[0].mxu0
    %v3222 = vadd.f32 0.0, %v3221
    %v3223 = vpop.f32.mrb[0].mxu0
    %v3224 = vpop.f32.mrb[0].mxu0
    %v3225 = vadd.f32 0.0, %v3224
    %v3226 = vpop.f32.mrb[0].mxu0
    %3227 = vmatprep.mubr.bf16.mxu0 0
    %3228 = vmatmul.mubr.bf16.gmra.mrb[0].mxu0 %v1831
    %v3229 = vpop.f32.mrb[0].mxu0
    %v3230 = vadd.f32 0.0, %v3229
    %v3231 = vpop.f32.mrb[0].mxu0
    %v3232 = vpop.f32.mrb[0].mxu0
    %v3233 = vadd.f32 0.0, %v3232
    %v3234 = vpop.f32.mrb[0].mxu0
    %3235 = vdwg.mxu0
    %v3236 = vadd.f32 %v3077, %v3174
    %v3237 = vadd.f32 %v3080, %v3177
    %v3238 = vadd.f32 %v3085, %v3182
    %v3239 = vadd.f32 %v3088, %v3185
    %v3240 = vadd.f32 %v3093, %v3190
    %v3241 = vadd.f32 %v3096, %v3193
    %v3242 = vadd.f32 %v3101, %v3198
    %v3243 = vadd.f32 %v3104, %v3201
    %v3244 = vadd.f32 %v3109, %v3206
    %v3245 = vadd.f32 %v3112, %v3209
    %v3246 = vadd.f32 %v3117, %v3214
    %v3247 = vadd.f32 %v3120, %v3217
    %v3248 = vadd.f32 %v3125, %v3222
    %v3249 = vadd.f32 %v3128, %v3225
    %v3250 = vadd.f32 %v3133, %v3230
    %v3251 = vadd.f32 %v3136, %v3233
    %v3252 = vpack.c.bf16 %v1753, %v1752
    %v3253 = vpack.c.bf16 %v1755, %v1754
    %v3254 = vpack.c.bf16 %v1757, %v1756
    %v3255 = vpack.c.bf16 %v1759, %v1758
    %v3256 = vpack.c.bf16 %v1761, %v1760
    %v3257 = vpack.c.bf16 %v1763, %v1762
    %v3258 = vpack.c.bf16 %v1765, %v1764
    %v3259 = vpack.c.bf16 %v1767, %v1766
    %v3260 = vunpack.c.l.bf16 %v3252
    %v3261 = vunpack.c.h.bf16 %v3252
    %v3262 = vunpack.c.l.bf16 %v3253
    %v3263 = vunpack.c.h.bf16 %v3253
    %v3264 = vunpack.c.l.bf16 %v3254
    %v3265 = vunpack.c.h.bf16 %v3254
    %v3266 = vunpack.c.l.bf16 %v3255
    %v3267 = vunpack.c.h.bf16 %v3255
    %v3268 = vunpack.c.l.bf16 %v3256
    %v3269 = vunpack.c.h.bf16 %v3256
    %v3270 = vunpack.c.l.bf16 %v3257
    %v3271 = vunpack.c.h.bf16 %v3257
    %v3272 = vunpack.c.l.bf16 %v3258
    %v3273 = vunpack.c.h.bf16 %v3258
    %v3274 = vunpack.c.l.bf16 %v3259
    %v3275 = vunpack.c.h.bf16 %v3259
    %v3276 = vsub.f32 %v1752, %v3260
    %v3277 = vsub.f32 %v1753, %v3261
    %v3278 = vsub.f32 %v1754, %v3262
    %v3279 = vsub.f32 %v1755, %v3263
    %v3280 = vsub.f32 %v1756, %v3264
    %v3281 = vsub.f32 %v1757, %v3265
    %v3282 = vsub.f32 %v1758, %v3266
    %v3283 = vsub.f32 %v1759, %v3267
    %v3284 = vsub.f32 %v1760, %v3268
    %v3285 = vsub.f32 %v1761, %v3269
    %v3286 = vsub.f32 %v1762, %v3270
    %v3287 = vsub.f32 %v1763, %v3271
    %v3288 = vsub.f32 %v1764, %v3272
    %v3289 = vsub.f32 %v1765, %v3273
    %v3290 = vsub.f32 %v1766, %v3274
    %v3291 = vsub.f32 %v1767, %v3275
    %v3292 = vpack.c.bf16 %v3277, %v3276
    %v3293 = vpack.c.bf16 %v3279, %v3278
    %v3294 = vpack.c.bf16 %v3281, %v3280
    %v3295 = vpack.c.bf16 %v3283, %v3282
    %v3296 = vpack.c.bf16 %v3285, %v3284
    %v3297 = vpack.c.bf16 %v3287, %v3286
    %v3298 = vpack.c.bf16 %v3289, %v3288
    %v3299 = vpack.c.bf16 %v3291, %v3290
    %3300 = vmatprep.subr.bf16.mxu0 0
    %3301 = vmatpush1.bf16.msra.mxu0 %v3292
    %3302 = vmatprep.subr.bf16.mxu0 0
    %3303 = vmatpush1.bf16.msra.mxu0 %v3293
    %3304 = vmatprep.subr.bf16.mxu0 0
    %3305 = vmatpush1.bf16.msra.mxu0 %v3294
    %3306 = vmatprep.subr.bf16.mxu0 0
    %3307 = vmatpush1.bf16.msra.mxu0 %v3295
    %3308 = vmatprep.subr.bf16.mxu0 0
    %3309 = vmatpush1.bf16.msra.mxu0 %v3296
    %3310 = vmatprep.subr.bf16.mxu0 0
    %3311 = vmatpush1.bf16.msra.mxu0 %v3297
    %3312 = vmatprep.subr.bf16.mxu0 0
    %3313 = vmatpush1.bf16.msra.mxu0 %v3298
    %3314 = vmatprep.subr.bf16.mxu0 0
    %3315 = vmatpush1.bf16.msra.mxu0 %v3299
    %3316 = vmatprep.subr.bf16.mxu0 0
    %3317 = vmatpush1.bf16.msra.mxu0 0
    %3318 = vmatprep.subr.bf16.mxu0 0
    %3319 = vmatpush1.bf16.msra.mxu0 0
    %3320 = vmatprep.subr.bf16.mxu0 0
    %3321 = vmatpush1.bf16.msra.mxu0 0
    %3322 = vmatprep.subr.bf16.mxu0 0
    %3323 = vmatpush1.bf16.msra.mxu0 0
    %3324 = vmatprep.subr.bf16.mxu0 0
    %3325 = vmatpush1.bf16.msra.mxu0 0
    %3326 = vmatprep.subr.bf16.mxu0 0
    %3327 = vmatpush1.bf16.msra.mxu0 0
    %3328 = vmatprep.subr.bf16.mxu0 0
    %3329 = vmatpush1.bf16.msra.mxu0 0
    %3330 = vmatprep.subr.bf16.mxu0 0
    %3331 = vmatpush1.bf16.msra.mxu0 0
    %3332 = vmatprep.mubr.bf16.mxu0 0
    %3333 = vmatmul.mubr.bf16.gmra.mrb[0].mxu0 %v1784
    %v3334 = vpop.f32.mrb[0].mxu0
    %v3335 = vadd.f32 0.0, %v3334
    %v3336 = vpop.f32.mrb[0].mxu0
    %v3337 = vpop.f32.mrb[0].mxu0
    %v3338 = vadd.f32 0.0, %v3337
    %v3339 = vpop.f32.mrb[0].mxu0
    %3340 = vmatprep.mubr.bf16.mxu0 0
    %3341 = vmatmul.mubr.bf16.gmra.mrb[0].mxu0 %v1785
    %v3342 = vpop.f32.mrb[0].mxu0
    %v3343 = vadd.f32 0.0, %v3342
    %v3344 = vpop.f32.mrb[0].mxu0
    %v3345 = vpop.f32.mrb[0].mxu0
    %v3346 = vadd.f32 0.0, %v3345
    %v3347 = vpop.f32.mrb[0].mxu0
    %3348 = vmatprep.mubr.bf16.mxu0 0
    %3349 = vmatmul.mubr.bf16.gmra.mrb[0].mxu0 %v1786
    %v3350 = vpop.f32.mrb[0].mxu0
    %v3351 = vadd.f32 0.0, %v3350
    %v3352 = vpop.f32.mrb[0].mxu0
    %v3353 = vpop.f32.mrb[0].mxu0
    %v3354 = vadd.f32 0.0, %v3353
    %v3355 = vpop.f32.mrb[0].mxu0
    %3356 = vmatprep.mubr.bf16.mxu0 0
    %3357 = vmatmul.mubr.bf16.gmra.mrb[0].mxu0 %v1787
    %v3358 = vpop.f32.mrb[0].mxu0
    %v3359 = vadd.f32 0.0, %v3358
    %v3360 = vpop.f32.mrb[0].mxu0
    %v3361 = vpop.f32.mrb[0].mxu0
    %v3362 = vadd.f32 0.0, %v3361
    %v3363 = vpop.f32.mrb[0].mxu0
    %3364 = vmatprep.mubr.bf16.mxu0 0
    %3365 = vmatmul.mubr.bf16.gmra.mrb[0].mxu0 %v1788
    %v3366 = vpop.f32.mrb[0].mxu0
    %v3367 = vadd.f32 0.0, %v3366
    %v3368 = vpop.f32.mrb[0].mxu0
    %v3369 = vpop.f32.mrb[0].mxu0
    %v3370 = vadd.f32 0.0, %v3369
    %v3371 = vpop.f32.mrb[0].mxu0
    %3372 = vmatprep.mubr.bf16.mxu0 0
    %3373 = vmatmul.mubr.bf16.gmra.mrb[0].mxu0 %v1789
    %v3374 = vpop.f32.mrb[0].mxu0
    %v3375 = vadd.f32 0.0, %v3374
    %v3376 = vpop.f32.mrb[0].mxu0
    %v3377 = vpop.f32.mrb[0].mxu0
    %v3378 = vadd.f32 0.0, %v3377
    %v3379 = vpop.f32.mrb[0].mxu0
    %3380 = vmatprep.mubr.bf16.mxu0 0
    %3381 = vmatmul.mubr.bf16.gmra.mrb[0].mxu0 %v1790
    %v3382 = vpop.f32.mrb[0].mxu0
    %v3383 = vadd.f32 0.0, %v3382
    %v3384 = vpop.f32.mrb[0].mxu0
    %v3385 = vpop.f32.mrb[0].mxu0
    %v3386 = vadd.f32 0.0, %v3385
    %v3387 = vpop.f32.mrb[0].mxu0
    %3388 = vmatprep.mubr.bf16.mxu0 0
    %3389 = vmatmul.mubr.bf16.gmra.mrb[0].mxu0 %v1791
    %v3390 = vpop.f32.mrb[0].mxu0
    %v3391 = vadd.f32 0.0, %v3390
    %v3392 = vpop.f32.mrb[0].mxu0
    %v3393 = vpop.f32.mrb[0].mxu0
    %v3394 = vadd.f32 0.0, %v3393
    %v3395 = vpop.f32.mrb[0].mxu0
    %3396 = vdwg.mxu0
    %3397 = vmatprep.subr.bf16.mxu0 0
    %3398 = vmatpush1.bf16.msra.mxu0 %v3252
    %3399 = vmatprep.subr.bf16.mxu0 0
    %3400 = vmatpush1.bf16.msra.mxu0 %v3253
    %3401 = vmatprep.subr.bf16.mxu0 0
    %3402 = vmatpush1.bf16.msra.mxu0 %v3254
    %3403 = vmatprep.subr.bf16.mxu0 0
    %3404 = vmatpush1.bf16.msra.mxu0 %v3255
    %3405 = vmatprep.subr.bf16.mxu0 0
    %3406 = vmatpush1.bf16.msra.mxu0 %v3256
    %3407 = vmatprep.subr.bf16.mxu0 0
    %3408 = vmatpush1.bf16.msra.mxu0 %v3257
    %3409 = vmatprep.subr.bf16.mxu0 0
    %3410 = vmatpush1.bf16.msra.mxu0 %v3258
    %3411 = vmatprep.subr.bf16.mxu0 0
    %3412 = vmatpush1.bf16.msra.mxu0 %v3259
    %3413 = vmatprep.subr.bf16.mxu0 0
    %3414 = vmatpush1.bf16.msra.mxu0 0
    %3415 = vmatprep.subr.bf16.mxu0 0
    %3416 = vmatpush1.bf16.msra.mxu0 0
    %3417 = vmatprep.subr.bf16.mxu0 0
    %3418 = vmatpush1.bf16.msra.mxu0 0
    %3419 = vmatprep.subr.bf16.mxu0 0
    %3420 = vmatpush1.bf16.msra.mxu0 0
    %3421 = vmatprep.subr.bf16.mxu0 0
    %3422 = vmatpush1.bf16.msra.mxu0 0
    %3423 = vmatprep.subr.bf16.mxu0 0
    %3424 = vmatpush1.bf16.msra.mxu0 0
    %3425 = vmatprep.subr.bf16.mxu0 0
    %3426 = vmatpush1.bf16.msra.mxu0 0
    %3427 = vmatprep.subr.bf16.mxu0 0
    %3428 = vmatpush1.bf16.msra.mxu0 0
    %3429 = vmatprep.mubr.bf16.mxu0 0
    %3430 = vmatmul.mubr.bf16.gmra.mrb[0].mxu0 %v1784
    %v3431 = vpop.f32.mrb[0].mxu0
    %v3432 = vadd.f32 %v3335, %v3431
    %v3433 = vpop.f32.mrb[0].mxu0
    %v3434 = vpop.f32.mrb[0].mxu0
    %v3435 = vadd.f32 %v3338, %v3434
    %v3436 = vpop.f32.mrb[0].mxu0
    %3437 = vmatprep.mubr.bf16.mxu0 0
    %3438 = vmatmul.mubr.bf16.gmra.mrb[0].mxu0 %v1785
    %v3439 = vpop.f32.mrb[0].mxu0
    %v3440 = vadd.f32 %v3343, %v3439
    %v3441 = vpop.f32.mrb[0].mxu0
    %v3442 = vpop.f32.mrb[0].mxu0
    %v3443 = vadd.f32 %v3346, %v3442
    %v3444 = vpop.f32.mrb[0].mxu0
    %3445 = vmatprep.mubr.bf16.mxu0 0
    %3446 = vmatmul.mubr.bf16.gmra.mrb[0].mxu0 %v1786
    %v3447 = vpop.f32.mrb[0].mxu0
    %v3448 = vadd.f32 %v3351, %v3447
    %v3449 = vpop.f32.mrb[0].mxu0
    %v3450 = vpop.f32.mrb[0].mxu0
    %v3451 = vadd.f32 %v3354, %v3450
    %v3452 = vpop.f32.mrb[0].mxu0
    %3453 = vmatprep.mubr.bf16.mxu0 0
    %3454 = vmatmul.mubr.bf16.gmra.mrb[0].mxu0 %v1787
    %v3455 = vpop.f32.mrb[0].mxu0
    %v3456 = vadd.f32 %v3359, %v3455
    %v3457 = vpop.f32.mrb[0].mxu0
    %v3458 = vpop.f32.mrb[0].mxu0
    %v3459 = vadd.f32 %v3362, %v3458
    %v3460 = vpop.f32.mrb[0].mxu0
    %3461 = vmatprep.mubr.bf16.mxu0 0
    %3462 = vmatmul.mubr.bf16.gmra.mrb[0].mxu0 %v1788
    %v3463 = vpop.f32.mrb[0].mxu0
    %v3464 = vadd.f32 %v3367, %v3463
    %v3465 = vpop.f32.mrb[0].mxu0
    %v3466 = vpop.f32.mrb[0].mxu0
    %v3467 = vadd.f32 %v3370, %v3466
    %v3468 = vpop.f32.mrb[0].mxu0
    %3469 = vmatprep.mubr.bf16.mxu0 0
    %3470 = vmatmul.mubr.bf16.gmra.mrb[0].mxu0 %v1789
    %v3471 = vpop.f32.mrb[0].mxu0
    %v3472 = vadd.f32 %v3375, %v3471
    %v3473 = vpop.f32.mrb[0].mxu0
    %v3474 = vpop.f32.mrb[0].mxu0
    %v3475 = vadd.f32 %v3378, %v3474
    %v3476 = vpop.f32.mrb[0].mxu0
    %3477 = vmatprep.mubr.bf16.mxu0 0
    %3478 = vmatmul.mubr.bf16.gmra.mrb[0].mxu0 %v1790
    %v3479 = vpop.f32.mrb[0].mxu0
    %v3480 = vadd.f32 %v3383, %v3479
    %v3481 = vpop.f32.mrb[0].mxu0
    %v3482 = vpop.f32.mrb[0].mxu0
    %v3483 = vadd.f32 %v3386, %v3482
    %v3484 = vpop.f32.mrb[0].mxu0
    %3485 = vmatprep.mubr.bf16.mxu0 0
    %3486 = vmatmul.mubr.bf16.gmra.mrb[0].mxu0 %v1791
    %v3487 = vpop.f32.mrb[0].mxu0
    %v3488 = vadd.f32 %v3391, %v3487
    %v3489 = vpop.f32.mrb[0].mxu0
    %v3490 = vpop.f32.mrb[0].mxu0
    %v3491 = vadd.f32 %v3394, %v3490
    %v3492 = vpop.f32.mrb[0].mxu0
    %3493 = vdwg.mxu0
    %3494 = vmatprep.subr.bf16.mxu0 0
    %3495 = vmatpush1.bf16.msra.mxu0 %v3252
    %3496 = vmatprep.subr.bf16.mxu0 0
    %3497 = vmatpush1.bf16.msra.mxu0 %v3253
    %3498 = vmatprep.subr.bf16.mxu0 0
    %3499 = vmatpush1.bf16.msra.mxu0 %v3254
    %3500 = vmatprep.subr.bf16.mxu0 0
    %3501 = vmatpush1.bf16.msra.mxu0 %v3255
    %3502 = vmatprep.subr.bf16.mxu0 0
    %3503 = vmatpush1.bf16.msra.mxu0 %v3256
    %3504 = vmatprep.subr.bf16.mxu0 0
    %3505 = vmatpush1.bf16.msra.mxu0 %v3257
    %3506 = vmatprep.subr.bf16.mxu0 0
    %3507 = vmatpush1.bf16.msra.mxu0 %v3258
    %3508 = vmatprep.subr.bf16.mxu0 0
    %3509 = vmatpush1.bf16.msra.mxu0 %v3259
    %3510 = vmatprep.subr.bf16.mxu0 0
    %3511 = vmatpush1.bf16.msra.mxu0 0
    %3512 = vmatprep.subr.bf16.mxu0 0
    %3513 = vmatpush1.bf16.msra.mxu0 0
    %3514 = vmatprep.subr.bf16.mxu0 0
    %3515 = vmatpush1.bf16.msra.mxu0 0
    %3516 = vmatprep.subr.bf16.mxu0 0
    %3517 = vmatpush1.bf16.msra.mxu0 0
    %3518 = vmatprep.subr.bf16.mxu0 0
    %3519 = vmatpush1.bf16.msra.mxu0 0
    %3520 = vmatprep.subr.bf16.mxu0 0
    %3521 = vmatpush1.bf16.msra.mxu0 0
    %3522 = vmatprep.subr.bf16.mxu0 0
    %3523 = vmatpush1.bf16.msra.mxu0 0
    %3524 = vmatprep.subr.bf16.mxu0 0
    %3525 = vmatpush1.bf16.msra.mxu0 0
    %3526 = vmatprep.mubr.bf16.mxu0 0
    %3527 = vmatmul.mubr.bf16.gmra.mrb[0].mxu0 %v1824
    %v3528 = vpop.f32.mrb[0].mxu0
    %v3529 = vadd.f32 0.0, %v3528
    %v3530 = vpop.f32.mrb[0].mxu0
    %v3531 = vpop.f32.mrb[0].mxu0
    %v3532 = vadd.f32 0.0, %v3531
    %v3533 = vpop.f32.mrb[0].mxu0
    %3534 = vmatprep.mubr.bf16.mxu0 0
    %3535 = vmatmul.mubr.bf16.gmra.mrb[0].mxu0 %v1825
    %v3536 = vpop.f32.mrb[0].mxu0
    %v3537 = vadd.f32 0.0, %v3536
    %v3538 = vpop.f32.mrb[0].mxu0
    %v3539 = vpop.f32.mrb[0].mxu0
    %v3540 = vadd.f32 0.0, %v3539
    %v3541 = vpop.f32.mrb[0].mxu0
    %3542 = vmatprep.mubr.bf16.mxu0 0
    %3543 = vmatmul.mubr.bf16.gmra.mrb[0].mxu0 %v1826
    %v3544 = vpop.f32.mrb[0].mxu0
    %v3545 = vadd.f32 0.0, %v3544
    %v3546 = vpop.f32.mrb[0].mxu0
    %v3547 = vpop.f32.mrb[0].mxu0
    %v3548 = vadd.f32 0.0, %v3547
    %v3549 = vpop.f32.mrb[0].mxu0
    %3550 = vmatprep.mubr.bf16.mxu0 0
    %3551 = vmatmul.mubr.bf16.gmra.mrb[0].mxu0 %v1827
    %v3552 = vpop.f32.mrb[0].mxu0
    %v3553 = vadd.f32 0.0, %v3552
    %v3554 = vpop.f32.mrb[0].mxu0
    %v3555 = vpop.f32.mrb[0].mxu0
    %v3556 = vadd.f32 0.0, %v3555
    %v3557 = vpop.f32.mrb[0].mxu0
    %3558 = vmatprep.mubr.bf16.mxu0 0
    %3559 = vmatmul.mubr.bf16.gmra.mrb[0].mxu0 %v1828
    %v3560 = vpop.f32.mrb[0].mxu0
    %v3561 = vadd.f32 0.0, %v3560
    %v3562 = vpop.f32.mrb[0].mxu0
    %v3563 = vpop.f32.mrb[0].mxu0
    %v3564 = vadd.f32 0.0, %v3563
    %v3565 = vpop.f32.mrb[0].mxu0
    %3566 = vmatprep.mubr.bf16.mxu0 0
    %3567 = vmatmul.mubr.bf16.gmra.mrb[0].mxu0 %v1829
    %v3568 = vpop.f32.mrb[0].mxu0
    %v3569 = vadd.f32 0.0, %v3568
    %v3570 = vpop.f32.mrb[0].mxu0
    %v3571 = vpop.f32.mrb[0].mxu0
    %v3572 = vadd.f32 0.0, %v3571
    %v3573 = vpop.f32.mrb[0].mxu0
    %3574 = vmatprep.mubr.bf16.mxu0 0
    %3575 = vmatmul.mubr.bf16.gmra.mrb[0].mxu0 %v1830
    %v3576 = vpop.f32.mrb[0].mxu0
    %v3577 = vadd.f32 0.0, %v3576
    %v3578 = vpop.f32.mrb[0].mxu0
    %v3579 = vpop.f32.mrb[0].mxu0
    %v3580 = vadd.f32 0.0, %v3579
    %v3581 = vpop.f32.mrb[0].mxu0
    %3582 = vmatprep.mubr.bf16.mxu0 0
    %3583 = vmatmul.mubr.bf16.gmra.mrb[0].mxu0 %v1831
    %v3584 = vpop.f32.mrb[0].mxu0
    %v3585 = vadd.f32 0.0, %v3584
    %v3586 = vpop.f32.mrb[0].mxu0
    %v3587 = vpop.f32.mrb[0].mxu0
    %v3588 = vadd.f32 0.0, %v3587
    %v3589 = vpop.f32.mrb[0].mxu0
    %3590 = vdwg.mxu0
    %v3591 = vadd.f32 %v3432, %v3529
    %v3592 = vadd.f32 %v3435, %v3532
    %v3593 = vadd.f32 %v3440, %v3537
    %v3594 = vadd.f32 %v3443, %v3540
    %v3595 = vadd.f32 %v3448, %v3545
    %v3596 = vadd.f32 %v3451, %v3548
    %v3597 = vadd.f32 %v3456, %v3553
    %v3598 = vadd.f32 %v3459, %v3556
    %v3599 = vadd.f32 %v3464, %v3561
    %v3600 = vadd.f32 %v3467, %v3564
    %v3601 = vadd.f32 %v3472, %v3569
    %v3602 = vadd.f32 %v3475, %v3572
    %v3603 = vadd.f32 %v3480, %v3577
    %v3604 = vadd.f32 %v3483, %v3580
    %v3605 = vadd.f32 %v3488, %v3585
    %v3606 = vadd.f32 %v3491, %v3588
    %v3607 = vmul.f32 %v2171, %v2171
    %v3608 = vmul.f32 %v2172, %v2172
    %v3609 = vmul.f32 %v2173, %v2173
    %v3610 = vmul.f32 %v2174, %v2174
    %v3611 = vmul.f32 %v2175, %v2175
    %v3612 = vmul.f32 %v2176, %v2176
    %v3613 = vmul.f32 %v2177, %v2177
    %v3614 = vmul.f32 %v2178, %v2178
    %v3615 = vmul.f32 %v2179, %v2179
    %v3616 = vmul.f32 %v2180, %v2180
    %v3617 = vmul.f32 %v2181, %v2181
    %v3618 = vmul.f32 %v2182, %v2182
    %v3619 = vmul.f32 %v2183, %v2183
    %v3620 = vmul.f32 %v2184, %v2184
    %v3621 = vmul.f32 %v2185, %v2185
    %v3622 = vmul.f32 %v2186, %v2186
    %v3623 = vmul.f32 %v2526, %v2526
    %v3624 = vmul.f32 %v2527, %v2527
    %v3625 = vmul.f32 %v2528, %v2528
    %v3626 = vmul.f32 %v2529, %v2529
    %v3627 = vmul.f32 %v2530, %v2530
    %v3628 = vmul.f32 %v2531, %v2531
    %v3629 = vmul.f32 %v2532, %v2532
    %v3630 = vmul.f32 %v2533, %v2533
    %v3631 = vmul.f32 %v2534, %v2534
    %v3632 = vmul.f32 %v2535, %v2535
    %v3633 = vmul.f32 %v2536, %v2536
    %v3634 = vmul.f32 %v2537, %v2537
    %v3635 = vmul.f32 %v2538, %v2538
    %v3636 = vmul.f32 %v2539, %v2539
    %v3637 = vmul.f32 %v2540, %v2540
    %v3638 = vmul.f32 %v2541, %v2541
    %v3639 = vmul.f32 %v2171, %v2526
    %v3640 = vmul.f32 %v2172, %v2527
    %v3641 = vmul.f32 %v2173, %v2528
    %v3642 = vmul.f32 %v2174, %v2529
    %v3643 = vmul.f32 %v2175, %v2530
    %v3644 = vmul.f32 %v2176, %v2531
    %v3645 = vmul.f32 %v2177, %v2532
    %v3646 = vmul.f32 %v2178, %v2533
    %v3647 = vmul.f32 %v2179, %v2534
    %v3648 = vmul.f32 %v2180, %v2535
    %v3649 = vmul.f32 %v2181, %v2536
    %v3650 = vmul.f32 %v2182, %v2537
    %v3651 = vmul.f32 %v2183, %v2538
    %v3652 = vmul.f32 %v2184, %v2539
    %v3653 = vmul.f32 %v2185, %v2540
    %v3654 = vmul.f32 %v2186, %v2541
    %v3655 = vsub.f32 %v2881, %v3607
    %v3656 = vsub.f32 %v2882, %v3608
    %v3657 = vsub.f32 %v2883, %v3609
    %v3658 = vsub.f32 %v2884, %v3610
    %v3659 = vsub.f32 %v2885, %v3611
    %v3660 = vsub.f32 %v2886, %v3612
    %v3661 = vsub.f32 %v2887, %v3613
    %v3662 = vsub.f32 %v2888, %v3614
    %v3663 = vsub.f32 %v2889, %v3615
    %v3664 = vsub.f32 %v2890, %v3616
    %v3665 = vsub.f32 %v2891, %v3617
    %v3666 = vsub.f32 %v2892, %v3618
    %v3667 = vsub.f32 %v2893, %v3619
    %v3668 = vsub.f32 %v2894, %v3620
    %v3669 = vsub.f32 %v2895, %v3621
    %v3670 = vsub.f32 %v2896, %v3622
    %v3671 = vsub.f32 %v3236, %v3623
    %v3672 = vsub.f32 %v3237, %v3624
    %v3673 = vsub.f32 %v3238, %v3625
    %v3674 = vsub.f32 %v3239, %v3626
    %v3675 = vsub.f32 %v3240, %v3627
    %v3676 = vsub.f32 %v3241, %v3628
    %v3677 = vsub.f32 %v3242, %v3629
    %v3678 = vsub.f32 %v3243, %v3630
    %v3679 = vsub.f32 %v3244, %v3631
    %v3680 = vsub.f32 %v3245, %v3632
    %v3681 = vsub.f32 %v3246, %v3633
    %v3682 = vsub.f32 %v3247, %v3634
    %v3683 = vsub.f32 %v3248, %v3635
    %v3684 = vsub.f32 %v3249, %v3636
    %v3685 = vsub.f32 %v3250, %v3637
    %v3686 = vsub.f32 %v3251, %v3638
    %v3687 = vsub.f32 %v3591, %v3639
    %v3688 = vsub.f32 %v3592, %v3640
    %v3689 = vsub.f32 %v3593, %v3641
    %v3690 = vsub.f32 %v3594, %v3642
    %v3691 = vsub.f32 %v3595, %v3643
    %v3692 = vsub.f32 %v3596, %v3644
    %v3693 = vsub.f32 %v3597, %v3645
    %v3694 = vsub.f32 %v3598, %v3646
    %v3695 = vsub.f32 %v3599, %v3647
    %v3696 = vsub.f32 %v3600, %v3648
    %v3697 = vsub.f32 %v3601, %v3649
    %v3698 = vsub.f32 %v3602, %v3650
    %v3699 = vsub.f32 %v3603, %v3651
    %v3700 = vsub.f32 %v3604, %v3652
    %v3701 = vsub.f32 %v3605, %v3653
    %v3702 = vsub.f32 %v3606, %v3654
    %v3703 = vmul.f32 %v3639, 2.0
    %v3704 = vmul.f32 %v3640, 2.0
    %v3705 = vmul.f32 %v3641, 2.0
    %v3706 = vmul.f32 %v3642, 2.0
    %v3707 = vmul.f32 %v3643, 2.0
    %v3708 = vmul.f32 %v3644, 2.0
    %v3709 = vmul.f32 %v3645, 2.0
    %v3710 = vmul.f32 %v3646, 2.0
    %v3711 = vmul.f32 %v3647, 2.0
    %v3712 = vmul.f32 %v3648, 2.0
    %v3713 = vmul.f32 %v3649, 2.0
    %v3714 = vmul.f32 %v3650, 2.0
    %v3715 = vmul.f32 %v3651, 2.0
    %v3716 = vmul.f32 %v3652, 2.0
    %v3717 = vmul.f32 %v3653, 2.0
    %v3718 = vmul.f32 %v3654, 2.0
    %v3719 = vadd.f32 %v3703, 0.0001
    %v3720 = vadd.f32 %v3704, 0.0001
    %v3721 = vadd.f32 %v3705, 0.0001
    %v3722 = vadd.f32 %v3706, 0.0001
    %v3723 = vadd.f32 %v3707, 0.0001
    %v3724 = vadd.f32 %v3708, 0.0001
    %v3725 = vadd.f32 %v3709, 0.0001
    %v3726 = vadd.f32 %v3710, 0.0001
    %v3727 = vadd.f32 %v3711, 0.0001
    %v3728 = vadd.f32 %v3712, 0.0001
    %v3729 = vadd.f32 %v3713, 0.0001
    %v3730 = vadd.f32 %v3714, 0.0001
    %v3731 = vadd.f32 %v3715, 0.0001
    %v3732 = vadd.f32 %v3716, 0.0001
    %v3733 = vadd.f32 %v3717, 0.0001
    %v3734 = vadd.f32 %v3718, 0.0001
    %v3735 = vmul.f32 %v3687, 2.0
    %v3736 = vmul.f32 %v3688, 2.0
    %v3737 = vmul.f32 %v3689, 2.0
    %v3738 = vmul.f32 %v3690, 2.0
    %v3739 = vmul.f32 %v3691, 2.0
    %v3740 = vmul.f32 %v3692, 2.0
    %v3741 = vmul.f32 %v3693, 2.0
    %v3742 = vmul.f32 %v3694, 2.0
    %v3743 = vmul.f32 %v3695, 2.0
    %v3744 = vmul.f32 %v3696, 2.0
    %v3745 = vmul.f32 %v3697, 2.0
    %v3746 = vmul.f32 %v3698, 2.0
    %v3747 = vmul.f32 %v3699, 2.0
    %v3748 = vmul.f32 %v3700, 2.0
    %v3749 = vmul.f32 %v3701, 2.0
    %v3750 = vmul.f32 %v3702, 2.0
    %v3751 = vadd.f32 %v3735, 0.0009
    %v3752 = vadd.f32 %v3736, 0.0009
    %v3753 = vadd.f32 %v3737, 0.0009
    %v3754 = vadd.f32 %v3738, 0.0009
    %v3755 = vadd.f32 %v3739, 0.0009
    %v3756 = vadd.f32 %v3740, 0.0009
    %v3757 = vadd.f32 %v3741, 0.0009
    %v3758 = vadd.f32 %v3742, 0.0009
    %v3759 = vadd.f32 %v3743, 0.0009
    %v3760 = vadd.f32 %v3744, 0.0009
    %v3761 = vadd.f32 %v3745, 0.0009
    %v3762 = vadd.f32 %v3746, 0.0009
    %v3763 = vadd.f32 %v3747, 0.0009
    %v3764 = vadd.f32 %v3748, 0.0009
    %v3765 = vadd.f32 %v3749, 0.0009
    %v3766 = vadd.f32 %v3750, 0.0009
    %v3767 = vmul.f32 %v3719, %v3751
    %v3768 = vmul.f32 %v3720, %v3752
    %v3769 = vmul.f32 %v3721, %v3753
    %v3770 = vmul.f32 %v3722, %v3754
    %v3771 = vmul.f32 %v3723, %v3755
    %v3772 = vmul.f32 %v3724, %v3756
    %v3773 = vmul.f32 %v3725, %v3757
    %v3774 = vmul.f32 %v3726, %v3758
    %v3775 = vmul.f32 %v3727, %v3759
    %v3776 = vmul.f32 %v3728, %v3760
    %v3777 = vmul.f32 %v3729, %v3761
    %v3778 = vmul.f32 %v3730, %v3762
    %v3779 = vmul.f32 %v3731, %v3763
    %v3780 = vmul.f32 %v3732, %v3764
    %v3781 = vmul.f32 %v3733, %v3765
    %v3782 = vmul.f32 %v3734, %v3766
    %v3783 = vadd.f32 %v3607, %v3623
    %v3784 = vadd.f32 %v3608, %v3624
    %v3785 = vadd.f32 %v3609, %v3625
    %v3786 = vadd.f32 %v3610, %v3626
    %v3787 = vadd.f32 %v3611, %v3627
    %v3788 = vadd.f32 %v3612, %v3628
    %v3789 = vadd.f32 %v3613, %v3629
    %v3790 = vadd.f32 %v3614, %v3630
    %v3791 = vadd.f32 %v3615, %v3631
    %v3792 = vadd.f32 %v3616, %v3632
    %v3793 = vadd.f32 %v3617, %v3633
    %v3794 = vadd.f32 %v3618, %v3634
    %v3795 = vadd.f32 %v3619, %v3635
    %v3796 = vadd.f32 %v3620, %v3636
    %v3797 = vadd.f32 %v3621, %v3637
    %v3798 = vadd.f32 %v3622, %v3638
    %v3799 = vadd.f32 %v3783, 0.0001
    %v3800 = vadd.f32 %v3784, 0.0001
    %v3801 = vadd.f32 %v3785, 0.0001
    %v3802 = vadd.f32 %v3786, 0.0001
    %v3803 = vadd.f32 %v3787, 0.0001
    %v3804 = vadd.f32 %v3788, 0.0001
    %v3805 = vadd.f32 %v3789, 0.0001
    %v3806 = vadd.f32 %v3790, 0.0001
    %v3807 = vadd.f32 %v3791, 0.0001
    %v3808 = vadd.f32 %v3792, 0.0001
    %v3809 = vadd.f32 %v3793, 0.0001
    %v3810 = vadd.f32 %v3794, 0.0001
    %v3811 = vadd.f32 %v3795, 0.0001
    %v3812 = vadd.f32 %v3796, 0.0001
    %v3813 = vadd.f32 %v3797, 0.0001
    %v3814 = vadd.f32 %v3798, 0.0001
    %v3815 = vadd.f32 %v3655, %v3671
    %v3816 = vadd.f32 %v3656, %v3672
    %v3817 = vadd.f32 %v3657, %v3673
    %v3818 = vadd.f32 %v3658, %v3674
    %v3819 = vadd.f32 %v3659, %v3675
    %v3820 = vadd.f32 %v3660, %v3676
    %v3821 = vadd.f32 %v3661, %v3677
    %v3822 = vadd.f32 %v3662, %v3678
    %v3823 = vadd.f32 %v3663, %v3679
    %v3824 = vadd.f32 %v3664, %v3680
    %v3825 = vadd.f32 %v3665, %v3681
    %v3826 = vadd.f32 %v3666, %v3682
    %v3827 = vadd.f32 %v3667, %v3683
    %v3828 = vadd.f32 %v3668, %v3684
    %v3829 = vadd.f32 %v3669, %v3685
    %v3830 = vadd.f32 %v3670, %v3686
    %v3831 = vadd.f32 %v3815, 0.0009
    %v3832 = vadd.f32 %v3816, 0.0009
    %v3833 = vadd.f32 %v3817, 0.0009
    %v3834 = vadd.f32 %v3818, 0.0009
    %v3835 = vadd.f32 %v3819, 0.0009
    %v3836 = vadd.f32 %v3820, 0.0009
    %v3837 = vadd.f32 %v3821, 0.0009
    %v3838 = vadd.f32 %v3822, 0.0009
    %v3839 = vadd.f32 %v3823, 0.0009
    %v3840 = vadd.f32 %v3824, 0.0009
    %v3841 = vadd.f32 %v3825, 0.0009
    %v3842 = vadd.f32 %v3826, 0.0009
    %v3843 = vadd.f32 %v3827, 0.0009
    %v3844 = vadd.f32 %v3828, 0.0009
    %v3845 = vadd.f32 %v3829, 0.0009
    %v3846 = vadd.f32 %v3830, 0.0009
    %v3847 = vmul.f32 %v3799, %v3831
    %v3848 = vmul.f32 %v3800, %v3832
    %v3849 = vmul.f32 %v3801, %v3833
    %v3850 = vmul.f32 %v3802, %v3834
    %v3851 = vmul.f32 %v3803, %v3835
    %v3852 = vmul.f32 %v3804, %v3836
    %v3853 = vmul.f32 %v3805, %v3837
    %v3854 = vmul.f32 %v3806, %v3838
    %v3855 = vmul.f32 %v3807, %v3839
    %v3856 = vmul.f32 %v3808, %v3840
    %v3857 = vmul.f32 %v3809, %v3841
    %v3858 = vmul.f32 %v3810, %v3842
    %v3859 = vmul.f32 %v3811, %v3843
    %v3860 = vmul.f32 %v3812, %v3844
    %v3861 = vmul.f32 %v3813, %v3845
    %v3862 = vmul.f32 %v3814, %v3846
    %v3863 = vrcp.pop %v3847
    %v3864 = vmul.f32 %v3767, %v3863
    %v3865 = vrcp.pop %v3848
    %v3866 = vmul.f32 %v3768, %v3865
    %v3867 = vrcp.pop %v3849
    %v3868 = vmul.f32 %v3769, %v3867
    %v3869 = vrcp.pop %v3850
    %v3870 = vmul.f32 %v3770, %v3869
    %v3871 = vrcp.pop %v3851
    %v3872 = vmul.f32 %v3771, %v3871
    %v3873 = vrcp.pop %v3852
    %v3874 = vmul.f32 %v3772, %v3873
    %v3875 = vrcp.pop %v3853
    %v3876 = vmul.f32 %v3773, %v3875
    %v3877 = vrcp.pop %v3854
    %v3878 = vmul.f32 %v3774, %v3877
    %v3879 = vrcp.pop %v3855
    %v3880 = vmul.f32 %v3775, %v3879
    %v3881 = vrcp.pop %v3856
    %v3882 = vmul.f32 %v3776, %v3881
    %v3883 = vrcp.pop %v3857
    %v3884 = vmul.f32 %v3777, %v3883
    %v3885 = vrcp.pop %v3858
    %v3886 = vmul.f32 %v3778, %v3885
    %v3887 = vrcp.pop %v3859
    %v3888 = vmul.f32 %v3779, %v3887
    %v3889 = vrcp.pop %v3860
    %v3890 = vmul.f32 %v3780, %v3889
    %v3891 = vrcp.pop %v3861
    %v3892 = vmul.f32 %v3781, %v3891
    %v3893 = vrcp.pop %v3862
    %v3894 = vmul.f32 %v3782, %v3893
    %v3895 = vsub.f32 1.0, %v3864
    %v3896 = vsub.f32 1.0, %v3866
    %v3897 = vsub.f32 1.0, %v3868
    %v3898 = vsub.f32 1.0, %v3870
    %v3899 = vsub.f32 1.0, %v3872
    %v3900 = vsub.f32 1.0, %v3874
    %v3901 = vsub.f32 1.0, %v3876
    %v3902 = vsub.f32 1.0, %v3878
    %v3903 = vsub.f32 1.0, %v3880
    %v3904 = vsub.f32 1.0, %v3882
    %v3905 = vsub.f32 1.0, %v3884
    %v3906 = vsub.f32 1.0, %v3886
    %v3907 = vsub.f32 1.0, %v3888
    %v3908 = vsub.f32 1.0, %v3890
    %v3909 = vsub.f32 1.0, %v3892
    %v3910 = vsub.f32 1.0, %v3894
    %v3911 = vmax.f32 %v3895, 0.0
    %v3912 = vmax.f32 %v3896, 0.0
    %v3913 = vmax.f32 %v3897, 0.0
    %v3914 = vmax.f32 %v3898, 0.0
    %v3915 = vmax.f32 %v3899, 0.0
    %v3916 = vmax.f32 %v3900, 0.0
    %v3917 = vmax.f32 %v3901, 0.0
    %v3918 = vmax.f32 %v3902, 0.0
    %v3919 = vmax.f32 %v3903, 0.0
    %v3920 = vmax.f32 %v3904, 0.0
    %v3921 = vmax.f32 %v3905, 0.0
    %v3922 = vmax.f32 %v3906, 0.0
    %v3923 = vmax.f32 %v3907, 0.0
    %v3924 = vmax.f32 %v3908, 0.0
    %v3925 = vmax.f32 %v3909, 0.0
    %v3926 = vmax.f32 %v3910, 0.0
    %v3927 = vmin.f32 %v3911, 1.0
    %v3928 = vmin.f32 %v3912, 1.0
    %v3929 = vmin.f32 %v3913, 1.0
    %v3930 = vmin.f32 %v3914, 1.0
    %v3931 = vmin.f32 %v3915, 1.0
    %v3932 = vmin.f32 %v3916, 1.0
    %v3933 = vmin.f32 %v3917, 1.0
    %v3934 = vmin.f32 %v3918, 1.0
    %v3935 = vmin.f32 %v3919, 1.0
    %v3936 = vmin.f32 %v3920, 1.0
    %v3937 = vmin.f32 %v3921, 1.0
    %v3938 = vmin.f32 %v3922, 1.0
    %v3939 = vmin.f32 %v3923, 1.0
    %v3940 = vmin.f32 %v3924, 1.0
    %v3941 = vmin.f32 %v3925, 1.0
    %v3942 = vmin.f32 %v3926, 1.0
    %v3943 = vmul.f32 %v3927, 0.5
    %v3944 = vmul.f32 %v3928, 0.5
    %v3945 = vmul.f32 %v3929, 0.5
    %v3946 = vmul.f32 %v3930, 0.5
    %v3947 = vmul.f32 %v3931, 0.5
    %v3948 = vmul.f32 %v3932, 0.5
    %v3949 = vmul.f32 %v3933, 0.5
    %v3950 = vmul.f32 %v3934, 0.5
    %v3951 = vmul.f32 %v3935, 0.5
    %v3952 = vmul.f32 %v3936, 0.5
    %v3953 = vmul.f32 %v3937, 0.5
    %v3954 = vmul.f32 %v3938, 0.5
    %v3955 = vmul.f32 %v3939, 0.5
    %v3956 = vmul.f32 %v3940, 0.5
    %v3957 = vmul.f32 %v3941, 0.5
    %v3958 = vmul.f32 %v3942, 0.5
    %v3959 = vsel %vm388, %v3943, 0.0
    %v3960 = vsel %vm388, %v3944, 0.0
    %v3961 = vadd.f32 %v3959, %v3960
    %v3962 = vsel %vm388, %v3945, 0.0
    %v3963 = vadd.f32 %v3961, %v3962
    %v3964 = vsel %vm388, %v3946, 0.0
    %v3965 = vadd.f32 %v3963, %v3964
    %v3966 = vsel %vm388, %v3947, 0.0
    %v3967 = vadd.f32 %v3965, %v3966
    %v3968 = vsel %vm388, %v3948, 0.0
    %v3969 = vadd.f32 %v3967, %v3968
    %v3970 = vsel %vm388, %v3949, 0.0
    %v3971 = vadd.f32 %v3969, %v3970
    %v3972 = vsel %vm388, %v3950, 0.0
    %v3973 = vadd.f32 %v3971, %v3972
    %v3974 = vsel %vm388, %v3951, 0.0
    %v3975 = vadd.f32 %v3973, %v3974
    %v3976 = vsel %vm388, %v3952, 0.0
    %v3977 = vadd.f32 %v3975, %v3976
    %v3978 = vsel %vm388, %v3953, 0.0
    %v3979 = vadd.f32 %v3977, %v3978
    %v3980 = vsel %vm388, %v3954, 0.0
    %v3981 = vadd.f32 %v3979, %v3980
    %v3982 = vsel %vm388, %v3955, 0.0
    %v3983 = vadd.f32 %v3981, %v3982
    %v3984 = vsel %vm388, %v3956, 0.0
    %v3985 = vadd.f32 %v3983, %v3984
    %v3986 = vsel %vm388, %v3957, 0.0
    %v3987 = vadd.f32 %v3985, %v3986
    %v3988 = vsel %vm388, %v3958, 0.0
    %v3989 = vadd.f32 %v3987, %v3988
    %3990 = vadd.xlane.f32.xlu0 %v3989
    %v3991 = vpop.xlane.xlu0 %3990
    %v3992 = vrot.slane %v3991, 4
    %v3993 = vadd.f32 %v3991, %v3992
    %v3994 = vrot.slane %v3993, 2
    %v3995 = vadd.f32 %v3993, %v3994
    %v3996 = vrot.slane %v3995, 1
    %v3997 = vadd.f32 %v3995, %v3996
    %s3998 = vtos %v3997
    %s3999 = scalar_lea.smem [#allocation8], 0
    %4000 = sst [smem:[%s3999]] %s3998
    // Predicated region
    $region30: #{_ssim_loss_impl.1} parent=1 // pred_check
      _
    $region31: #{_ssim_loss_impl.1} parent=1 // pred_check_branch
      %4002 = sbr.rel (0) target = $region33
    $region32: #{_ssim_loss_impl.1} parent=1 // pred_region
      %s4004 = ssub.s32 16, 16
      %4005 = vsyncadd [#allocation4], %s4004
      %4008 = dma.smem_to_hbm [#allocation8], 16, %s4, [#allocation4]
    $region33: #{_ssim_loss_impl.1} parent=1 // pred_fallthru
      _
    // Predicated region
    $region34: #{_ssim_loss_impl.1} parent=1 // pred_check
      _
    $region35: #{_ssim_loss_impl.1} parent=1 // pred_check_branch
      %4010 = sbr.rel (0) target = $region37
    $region36: #{_ssim_loss_impl.1} parent=1 // pred_region
      %4011 = dma.done [#allocation4], 16
    $region37: #{_ssim_loss_impl.1} parent=1 // pred_fallthru
      _
    %4012 = sfence
    %4013 = vsyncpa [#allocation3], 1
    %4014 = vsyncpa [#allocation6], 1
    %4015 = vsyncpa [#allocation4], 1

</llo_original>
